<compile_context>
chip_gen: v7x
topology: tpu7x:2x2x1
jax: 0.10.0
libtpu: 0.0.40
codegen_flags: <defaults>
</compile_context>

<pallas_src>
import functools

import jax
import jax.numpy as jnp
import numpy as np
from jax import lax
from jax.experimental import pallas as pl
from jax.experimental.pallas import tpu as pltpu

EPS = 1e-5
LANE = 128

# Fixed module hyperparameters (from InfoGen.__init__)
T_EMB = 8
OUTPUT_SIZE = 16
CHANNELS = [T_EMB, 512, 128, 64, OUTPUT_SIZE]
STRIDES = [(2, 2), (2, 2), (2, 2), (2, 1)]
PADDINGS = [(1, 1), (1, 1), (1, 1), (1, 0)]
KERNEL = (3, 3)


def _rup(v, m):
    return ((v + m - 1) // m) * m


def _full_spec(arr):
    """Full-array BlockSpec for a grid=(1,) pallas_call."""
    nd = arr.ndim
    return pl.BlockSpec(arr.shape, lambda i, _nd=nd: (0,) * _nd)


# ---------------------------------------------------------------------------
# Pallas kernel: whole 4-layer forward fused (conv-transpose + BN + ReLU x4)
# ---------------------------------------------------------------------------
def _infogen_fused_kernel(*refs, layer_meta, rows, eps):
    n_layers = len(layer_meta)
    x_ref = refs[0]
    layer_refs = refs[1:1 + 4 * n_layers]
    o_ref = refs[1 + 4 * n_layers]
    p_cat_ref, q_cat_ref = refs[2 + 4 * n_layers:]

    a = x_ref[...]                      # bf16 (rows, Cin_pad) channels-last activation
    y_act = None
    for li, (mode, n_taps, cin_p, cout_p, m_real) in enumerate(layer_meta):
        s_ref, w_ref, g_ref, b_ref = layer_refs[4 * li: 4 * li + 4]

        if mode == "s_first":
            # Stage p_t = S_t @ a (exact 0/1 row-gather, so the bf16 round-trip is
            # exact) into adjacent lane-aligned column blocks of the bf16 scratch,
            # then ONE wide-K MXU GEMM does the tap accumulation.
            for t in range(n_taps):
                p = jnp.dot(s_ref[t], a, preferred_element_type=jnp.float32)
                p_cat_ref[:, t * cin_p:(t + 1) * cin_p] = p.astype(jnp.bfloat16)
            acc = jnp.dot(p_cat_ref[:, :n_taps * cin_p], w_ref[...],
                          preferred_element_type=jnp.float32)
        else:
            # W-first (Cin_p > Cout_p): channel contraction before the selection
            # matrices.  q_all = a @ [W_0|...|W_{T-1}] (one K=Cin_p GEMM), restack
            # the tap blocks vertically in the bf16 scratch (cast rides the store),
            # then one selection GEMM [S_0|...|S_{T-1}] @ vstack(q_t).
            q_all = jnp.dot(a, w_ref[...], preferred_element_type=jnp.float32)
            for t in range(n_taps):
                q_cat_ref[t * rows:(t + 1) * rows, :cout_p] = (
                    q_all[:, t * cout_p:(t + 1) * cout_p].astype(jnp.bfloat16))
            acc = jnp.dot(s_ref[...], q_cat_ref[:n_taps * rows, :cout_p],
                          preferred_element_type=jnp.float32)

        # BatchNorm2d (training mode), per-channel stats over the REAL rows only.
        # Zero-padded rows are exactly 0 pre-BN, so sums with an explicit 1/m_real
        # divisor are exact.  Two-pass centered variance: each of the
        # (rows - m_real) padded rows contributes exactly mean^2 to `ss`, which is
        # subtracted back out.  rsqrt goes to the EUP.
        inv_m = 1.0 / float(m_real)
        mean = jnp.sum(acc, axis=0, keepdims=True) * inv_m
        cen = acc - mean
        ss = jnp.sum(cen * cen, axis=0, keepdims=True)
        var = jnp.maximum((ss - float(rows - m_real) * (mean * mean)) * inv_m, 0.0)
        scale = g_ref[...] * lax.rsqrt(var + eps)
        y_act = jnp.maximum(cen * scale + b_ref[...], 0.0)   # fused BN + ReLU, f32
        if li + 1 < n_layers:
            a = y_act.astype(jnp.bfloat16)                   # next layer's GEMM input

    o_ref[...] = y_act                                       # lane-dense f32 store


# ---------------------------------------------------------------------------
# Trace-time (numpy) construction of the per-tap 0/1 selection matrices that
# implement zero-dilation + pad(k-1-p) + im2col for a ConvTranspose2d layer.
# ---------------------------------------------------------------------------
def _build_tap_selectors(N, H, W, OH, OW, sh, sw, ph, pw, rows):
    kh, kw = KERNEL
    pt, plf = kh - 1 - ph, kw - 1 - pw
    assert N * H * W <= rows and N * OH * OW <= rows
    taps = []
    for dh in range(kh):
        for dw in range(kw):
            sel = np.zeros((rows, rows), np.float32)
            nonzero = False
            for oh in range(OH):
                hh = oh + dh - pt
                if hh < 0 or hh % sh != 0:
                    continue
                h = hh // sh
                if h >= H:
                    continue
                for ow in range(OW):
                    ww = ow + dw - plf
                    if ww < 0 or ww % sw != 0:
                        continue
                    w = ww // sw
                    if w >= W:
                        continue
                    nonzero = True
                    for n in range(N):
                        sel[n * OH * OW + oh * OW + ow, n * H * W + h * W + w] = 1.0
            if nonzero:
                taps.append(((dh, dw), sel))
    return taps


# ---------------------------------------------------------------------------
def infogen_forward(t_embedding, params):
    N, C0, H, W = t_embedding.shape
    kh, kw = KERNEL

    # Static per-layer geometry.
    geoms = []
    ih, iw = H, W
    for (sh, sw), (ph, pw) in zip(STRIDES, PADDINGS):
        oh = (ih - 1) * sh - 2 * ph + kh
        ow = (iw - 1) * sw - 2 * pw + kw
        geoms.append((ih, iw, oh, ow))
        ih, iw = oh, ow

    m_all = [N * H * W] + [N * oh * ow for (_, _, oh, ow) in geoms]
    rows = _rup(max(m_all), LANE)                         # common sublane/row padding
    cpad = [_rup(c, LANE) for c in CHANNELS]              # lane-aligned channel padding

    # Channels-last, flattened, zero-padded, bf16 input activation.
    x = jnp.transpose(t_embedding, (0, 2, 3, 1)).reshape(N * H * W, C0)
    x = jnp.pad(x, ((0, rows - N * H * W), (0, cpad[0] - C0))).astype(jnp.bfloat16)

    kernel_inputs = [x]
    in_specs = [_full_spec(x)]
    layer_meta = []
    p_cols, q_taps, q_cols = LANE, 1, LANE                # scratch-size minimums

    for li, ((wgt, gamma, beta), (sh, sw), (ph, pw), (ih, iw, oh, ow)) in enumerate(
            zip(params, STRIDES, PADDINGS, geoms)):
        cin_p, cout_p = cpad[li], cpad[li + 1]
        cin, cout = wgt.shape[0], wgt.shape[1]
        taps = _build_tap_selectors(N, ih, iw, oh, ow, sh, sw, ph, pw, rows)
        n_taps = len(taps)
        mode = "s_first" if cout_p >= cin_p else "w_first"

        # Spatially-flipped, channel-padded weight taps.
        w_taps = []
        for (dh, dw), _ in taps:
            tap = wgt[:, :, kh - 1 - dh, kw - 1 - dw]
            tap = jnp.pad(tap, ((0, cin_p - cin), (0, cout_p - cout)))
            w_taps.append(tap)

        if mode == "s_first":
            s_op = jnp.asarray(np.stack([s for _, s in taps], 0), jnp.bfloat16)        # (T,rows,rows)
            w_op = jnp.concatenate(w_taps, axis=0).astype(jnp.bfloat16)                # (T*Cin_p,Cout_p)
            p_cols = max(p_cols, n_taps * cin_p)
        else:
            s_op = jnp.asarray(np.concatenate([s for _, s in taps], 1), jnp.bfloat16)  # (rows,T*rows)
            w_op = jnp.concatenate(w_taps, axis=1).astype(jnp.bfloat16)                # (Cin_p,T*Cout_p)
            q_taps = max(q_taps, n_taps)
            q_cols = max(q_cols, cout_p)

        g = jnp.pad(gamma.astype(jnp.float32).reshape(1, -1), ((0, 0), (0, cout_p - cout)))
        b = jnp.pad(beta.astype(jnp.float32).reshape(1, -1), ((0, 0), (0, cout_p - cout)))

        kernel_inputs += [s_op, w_op, g, b]
        in_specs += [_full_spec(s_op), _full_spec(w_op), _full_spec(g), _full_spec(b)]
        layer_meta.append((mode, n_taps, cin_p, cout_p, N * oh * ow))

    out_padded = pl.pallas_call(
        functools.partial(_infogen_fused_kernel, layer_meta=tuple(layer_meta),
                          rows=rows, eps=EPS),
        out_shape=jax.ShapeDtypeStruct((rows, cpad[-1]), jnp.float32),
        grid=(1,),
        in_specs=in_specs,
        out_specs=pl.BlockSpec((rows, cpad[-1]), lambda i: (0, 0)),
        scratch_shapes=[
            pltpu.VMEM((rows, p_cols), jnp.bfloat16),          # S-first staging p_cat
            pltpu.VMEM((q_taps * rows, q_cols), jnp.bfloat16), # W-first staging q_cat
        ],
        compiler_params=pltpu.CompilerParams(dimension_semantics=("arbitrary",)),
    )(*kernel_inputs)

    _, _, oh, ow = geoms[-1]
    cout = CHANNELS[-1]
    out = out_padded[:N * oh * ow, :cout].reshape(N, oh, ow, cout)
    return jnp.transpose(out, (0, 3, 1, 2))               # back to NCHW


# ---------------------------------------------------------------------------
# Pure-JAX reference (lax.conv_general_dilated) for cross-checking.
# ---------------------------------------------------------------------------
def reference_forward(t_embedding, params):
    x = t_embedding
    for (w, g, b), (sh, sw), (ph, pw) in zip(params, STRIDES, PADDINGS):
        kh, kw = w.shape[2], w.shape[3]
        w_conv = jnp.transpose(w, (1, 0, 2, 3))[:, :, ::-1, ::-1]  # OIHW
        y = lax.conv_general_dilated(
            x, w_conv, window_strides=(1, 1),
            padding=[(kh - 1 - ph, kh - 1 - ph), (kw - 1 - pw, kw - 1 - pw)],
            lhs_dilation=(sh, sw), rhs_dilation=(1, 1),
            dimension_numbers=("NCHW", "OIHW", "NCHW"),
            precision=lax.Precision.HIGHEST)
        mean = jnp.mean(y, axis=(0, 2, 3), keepdims=True)
        var = jnp.mean(jnp.square(y - mean), axis=(0, 2, 3), keepdims=True)
        y = (y - mean) * lax.rsqrt(var + EPS) * g.reshape(1, -1, 1, 1) + b.reshape(1, -1, 1, 1)
        x = jnp.maximum(y, 0.0)
    return x


# ---------------------------------------------------------------------------
def make_params(key):
    params = []
    for li in range(4):
        cin, cout = CHANNELS[li], CHANNELS[li + 1]
        kw_, kb_, kg_ = jax.random.split(jax.random.fold_in(key, li), 3)
        fan = cin * KERNEL[0] * KERNEL[1]
        w = jax.random.normal(kw_, (cin, cout, *KERNEL), jnp.float32) / np.sqrt(fan)
        gamma = 1.0 + 0.1 * jax.random.normal(kg_, (cout,), jnp.float32)
        beta = 0.1 * jax.random.normal(kb_, (cout,), jnp.float32)
        params.append((w, gamma, beta))
    return params
    # TODO(synk): BatchNorm running_mean/running_var momentum-buffer updates (a
    # training side effect, not part of the returned tensor) are not modeled.


if __name__ == "__main__":
    key = jax.random.PRNGKey(0)
    k_x, k_p = jax.random.split(key)
    # TSRN feeds InfoGen a (N, t_emb, 1, L) text-embedding map.
    x = jax.random.normal(k_x, (2, T_EMB, 1, 8), jnp.float32)
    params = make_params(k_p)

    out = jax.jit(infogen_forward)(x, params)
    out = jax.block_until_ready(out)

    assert out.shape == (2, OUTPUT_SIZE, 1, 59), out.shape

    ref = jax.block_until_ready(reference_forward(x, params))
    # Tolerance accounts for bf16 MXU inputs (f32 accumulation) across 4 layers
    # plus the extra bf16 staging round-trip on the W-first layer, vs. the
    # Precision.HIGHEST f32 reference.
    np.testing.assert_allclose(np.asarray(out), np.asarray(ref), rtol=4e-2, atol=4e-2)

    print("KERNEL_OK")
</pallas_src>

<mosaic_0001>
module attributes {stable_mosaic.version = 11 : i64} {
  func.func @_infogen_fused_kernel(%arg0: i32, %arg1: memref<128x128xbf16, #tpu.memory_space<vmem>>, %arg2: memref<3x128x128xbf16, #tpu.memory_space<vmem>>, %arg3: memref<384x512xbf16, #tpu.memory_space<vmem>>, %arg4: memref<1x512xf32, #tpu.memory_space<vmem>>, %arg5: memref<1x512xf32, #tpu.memory_space<vmem>>, %arg6: memref<128x384xbf16, #tpu.memory_space<vmem>>, %arg7: memref<512x384xbf16, #tpu.memory_space<vmem>>, %arg8: memref<1x128xf32, #tpu.memory_space<vmem>>, %arg9: memref<1x128xf32, #tpu.memory_space<vmem>>, %arg10: memref<3x128x128xbf16, #tpu.memory_space<vmem>>, %arg11: memref<384x128xbf16, #tpu.memory_space<vmem>>, %arg12: memref<1x128xf32, #tpu.memory_space<vmem>>, %arg13: memref<1x128xf32, #tpu.memory_space<vmem>>, %arg14: memref<3x128x128xbf16, #tpu.memory_space<vmem>>, %arg15: memref<384x128xbf16, #tpu.memory_space<vmem>>, %arg16: memref<1x128xf32, #tpu.memory_space<vmem>>, %arg17: memref<1x128xf32, #tpu.memory_space<vmem>>, %arg18: memref<128x128xf32, #tpu.memory_space<vmem>>, %arg19: memref<128x384xbf16, #tpu.memory_space<vmem>>, %arg20: memref<384x128xbf16, #tpu.memory_space<vmem>>) attributes {dimension_semantics = [#tpu.dimension_semantics<arbitrary>], iteration_bounds = array<i64: 1>, scalar_prefetch = 0 : i64, scratch_operands = 2 : i64, tpu.core_type = #tpu.core_type<tc>, window_params = [{pipeline_mode = #tpu.pipeline_mode<synchronous>, transform_indices = @transform_0, window_bounds = array<i64: 128, 128>}, {pipeline_mode = #tpu.pipeline_mode<synchronous>, transform_indices = @transform_1, window_bounds = array<i64: 3, 128, 128>}, {pipeline_mode = #tpu.pipeline_mode<synchronous>, transform_indices = @transform_2, window_bounds = array<i64: 384, 512>}, {pipeline_mode = #tpu.pipeline_mode<synchronous>, transform_indices = @transform_3, window_bounds = array<i64: 1, 512>}, {pipeline_mode = #tpu.pipeline_mode<synchronous>, transform_indices = @transform_4, window_bounds = array<i64: 1, 512>}, {pipeline_mode = #tpu.pipeline_mode<synchronous>, transform_indices = @transform_5, window_bounds = array<i64: 128, 384>}, {pipeline_mode = #tpu.pipeline_mode<synchronous>, transform_indices = @transform_6, window_bounds = array<i64: 512, 384>}, {pipeline_mode = #tpu.pipeline_mode<synchronous>, transform_indices = @transform_7, window_bounds = array<i64: 1, 128>}, {pipeline_mode = #tpu.pipeline_mode<synchronous>, transform_indices = @transform_8, window_bounds = array<i64: 1, 128>}, {pipeline_mode = #tpu.pipeline_mode<synchronous>, transform_indices = @transform_9, window_bounds = array<i64: 3, 128, 128>}, {pipeline_mode = #tpu.pipeline_mode<synchronous>, transform_indices = @transform_10, window_bounds = array<i64: 384, 128>}, {pipeline_mode = #tpu.pipeline_mode<synchronous>, transform_indices = @transform_11, window_bounds = array<i64: 1, 128>}, {pipeline_mode = #tpu.pipeline_mode<synchronous>, transform_indices = @transform_12, window_bounds = array<i64: 1, 128>}, {pipeline_mode = #tpu.pipeline_mode<synchronous>, transform_indices = @transform_13, window_bounds = array<i64: 3, 128, 128>}, {pipeline_mode = #tpu.pipeline_mode<synchronous>, transform_indices = @transform_14, window_bounds = array<i64: 384, 128>}, {pipeline_mode = #tpu.pipeline_mode<synchronous>, transform_indices = @transform_15, window_bounds = array<i64: 1, 128>}, {pipeline_mode = #tpu.pipeline_mode<synchronous>, transform_indices = @transform_16, window_bounds = array<i64: 1, 128>}, {pipeline_mode = #tpu.pipeline_mode<synchronous>, transform_indices = @transform_17, window_bounds = array<i64: 128, 128>}]} {
    %c0 = arith.constant 0 : index
    %c0_0 = arith.constant 0 : index
    %0 = vector.load %arg1[%c0, %c0_0] : memref<128x128xbf16, #tpu.memory_space<vmem>>, vector<128x128xbf16>
    %c0_1 = arith.constant 0 : index
    %c0_2 = arith.constant 0 : index
    %c0_3 = arith.constant 0 : index
    %1 = vector.load %arg2[%c0_1, %c0_2, %c0_3] : memref<3x128x128xbf16, #tpu.memory_space<vmem>>, vector<1x128x128xbf16>
    %2 = vector.shape_cast %1 : vector<1x128x128xbf16> to vector<128x128xbf16>
    %cst = arith.constant dense<0.000000e+00> : vector<128x128xf32>
    %3 = tpu.matmul %2, %0, %cst {dimension_numbers = #tpu.dot_dimension_numbers<[1], [0], [0], [1], [0, 0, 1, 1], [], []>} : vector<128x128xbf16>, vector<128x128xbf16>, vector<128x128xf32> -> vector<128x128xf32>
    %4 = arith.truncf %3 : vector<128x128xf32> to vector<128x128xbf16>
    %c0_4 = arith.constant 0 : index
    %c0_5 = arith.constant 0 : index
    %5 = vector.load %arg19[%c0_4, %c0_5] : memref<128x384xbf16, #tpu.memory_space<vmem>>, vector<128x128xbf16>
    tpu.vector_store %arg19[%c0_4, %c0_5], %4 {strides = array<i32>} : memref<128x384xbf16, #tpu.memory_space<vmem>>, vector<128x128xbf16>,
    %c1 = arith.constant 1 : index
    %c0_6 = arith.constant 0 : index
    %c0_7 = arith.constant 0 : index
    %6 = vector.load %arg2[%c1, %c0_6, %c0_7] : memref<3x128x128xbf16, #tpu.memory_space<vmem>>, vector<1x128x128xbf16>
    %7 = vector.shape_cast %6 : vector<1x128x128xbf16> to vector<128x128xbf16>
    %cst_8 = arith.constant dense<0.000000e+00> : vector<128x128xf32>
    %8 = tpu.matmul %7, %0, %cst_8 {dimension_numbers = #tpu.dot_dimension_numbers<[1], [0], [0], [1], [0, 0, 1, 1], [], []>} : vector<128x128xbf16>, vector<128x128xbf16>, vector<128x128xf32> -> vector<128x128xf32>
    %9 = arith.truncf %8 : vector<128x128xf32> to vector<128x128xbf16>
    %c0_9 = arith.constant 0 : index
    %c128 = arith.constant 128 : index
    %10 = vector.load %arg19[%c0_9, %c128] : memref<128x384xbf16, #tpu.memory_space<vmem>>, vector<128x128xbf16>
    tpu.vector_store %arg19[%c0_9, %c128], %9 {strides = array<i32>} : memref<128x384xbf16, #tpu.memory_space<vmem>>, vector<128x128xbf16>,
    %c2 = arith.constant 2 : index
    %c0_10 = arith.constant 0 : index
    %c0_11 = arith.constant 0 : index
    %11 = vector.load %arg2[%c2, %c0_10, %c0_11] : memref<3x128x128xbf16, #tpu.memory_space<vmem>>, vector<1x128x128xbf16>
    %12 = vector.shape_cast %11 : vector<1x128x128xbf16> to vector<128x128xbf16>
    %cst_12 = arith.constant dense<0.000000e+00> : vector<128x128xf32>
    %13 = tpu.matmul %12, %0, %cst_12 {dimension_numbers = #tpu.dot_dimension_numbers<[1], [0], [0], [1], [0, 0, 1, 1], [], []>} : vector<128x128xbf16>, vector<128x128xbf16>, vector<128x128xf32> -> vector<128x128xf32>
    %14 = arith.truncf %13 : vector<128x128xf32> to vector<128x128xbf16>
    %c0_13 = arith.constant 0 : index
    %c256 = arith.constant 256 : index
    %15 = vector.load %arg19[%c0_13, %c256] : memref<128x384xbf16, #tpu.memory_space<vmem>>, vector<128x128xbf16>
    tpu.vector_store %arg19[%c0_13, %c256], %14 {strides = array<i32>} : memref<128x384xbf16, #tpu.memory_space<vmem>>, vector<128x128xbf16>,
    %c0_14 = arith.constant 0 : index
    %c0_15 = arith.constant 0 : index
    %16 = vector.load %arg19[%c0_14, %c0_15] : memref<128x384xbf16, #tpu.memory_space<vmem>>, vector<128x384xbf16>
    %c0_16 = arith.constant 0 : index
    %c0_17 = arith.constant 0 : index
    %17 = vector.load %arg3[%c0_16, %c0_17] : memref<384x512xbf16, #tpu.memory_space<vmem>>, vector<384x512xbf16>
    %cst_18 = arith.constant dense<0.000000e+00> : vector<128x512xf32>
    %18 = tpu.matmul %16, %17, %cst_18 {dimension_numbers = #tpu.dot_dimension_numbers<[1], [0], [0], [1], [0, 0, 1, 1], [], []>} : vector<128x384xbf16>, vector<384x512xbf16>, vector<128x512xf32> -> vector<128x512xf32>
    %cst_19 = arith.constant dense<0.000000e+00> : vector<512xf32>
    %19 = vector.multi_reduction <add>, %18, %cst_19 [0] : vector<128x512xf32> to vector<512xf32>
    %20 = vector.shape_cast %19 : vector<512xf32> to vector<1x512xf32>
    %cst_20 = arith.constant 0.0333333351 : f32
    %21 = vector.broadcast %cst_20 : f32 to vector<1x512xf32>
    %22 = arith.mulf %20, %21 : vector<1x512xf32>
    %23 = vector.broadcast %22 : vector<1x512xf32> to vector<128x512xf32>
    %24 = arith.subf %18, %23 : vector<128x512xf32>
    %25 = arith.mulf %24, %24 : vector<128x512xf32>
    %cst_21 = arith.constant dense<0.000000e+00> : vector<512xf32>
    %26 = vector.multi_reduction <add>, %25, %cst_21 [0] : vector<128x512xf32> to vector<512xf32>
    %27 = vector.shape_cast %26 : vector<512xf32> to vector<1x512xf32>
    %28 = arith.mulf %22, %22 : vector<1x512xf32>
    %cst_22 = arith.constant 9.800000e+01 : f32
    %29 = vector.broadcast %cst_22 : f32 to vector<1x512xf32>
    %30 = arith.mulf %29, %28 : vector<1x512xf32>
    %31 = arith.subf %27, %30 : vector<1x512xf32>
    %cst_23 = arith.constant 0.0333333351 : f32
    %32 = vector.broadcast %cst_23 : f32 to vector<1x512xf32>
    %33 = arith.mulf %31, %32 : vector<1x512xf32>
    %cst_24 = arith.constant 0.000000e+00 : f32
    %34 = vector.broadcast %cst_24 : f32 to vector<1x512xf32>
    %35 = arith.maximumf %33, %34 : vector<1x512xf32>
    %c0_25 = arith.constant 0 : index
    %c0_26 = arith.constant 0 : index
    %36 = vector.load %arg4[%c0_25, %c0_26] : memref<1x512xf32, #tpu.memory_space<vmem>>, vector<1x512xf32>
    %cst_27 = arith.constant 9.99999974E-6 : f32
    %37 = vector.broadcast %cst_27 : f32 to vector<1x512xf32>
    %38 = arith.addf %35, %37 : vector<1x512xf32>
    %39 = math.rsqrt %38 : vector<1x512xf32>
    %40 = arith.mulf %36, %39 : vector<1x512xf32>
    %41 = vector.broadcast %40 : vector<1x512xf32> to vector<128x512xf32>
    %42 = arith.mulf %24, %41 : vector<128x512xf32>
    %c0_28 = arith.constant 0 : index
    %c0_29 = arith.constant 0 : index
    %43 = vector.load %arg5[%c0_28, %c0_29] : memref<1x512xf32, #tpu.memory_space<vmem>>, vector<1x512xf32>
    %44 = vector.broadcast %43 : vector<1x512xf32> to vector<128x512xf32>
    %45 = arith.addf %42, %44 : vector<128x512xf32>
    %cst_30 = arith.constant 0.000000e+00 : f32
    %46 = vector.broadcast %cst_30 : f32 to vector<128x512xf32>
    %47 = arith.maximumf %45, %46 : vector<128x512xf32>
    %48 = arith.truncf %47 : vector<128x512xf32> to vector<128x512xbf16>
    %c0_31 = arith.constant 0 : index
    %c0_32 = arith.constant 0 : index
    %49 = vector.load %arg7[%c0_31, %c0_32] : memref<512x384xbf16, #tpu.memory_space<vmem>>, vector<512x384xbf16>
    %cst_33 = arith.constant dense<0.000000e+00> : vector<128x384xf32>
    %50 = tpu.matmul %48, %49, %cst_33 {dimension_numbers = #tpu.dot_dimension_numbers<[1], [0], [0], [1], [0, 0, 1, 1], [], []>} : vector<128x512xbf16>, vector<512x384xbf16>, vector<128x384xf32> -> vector<128x384xf32>
    %51 = vector.extract_strided_slice %50 {offsets = [0, 0], sizes = [128, 128], strides = [1, 1]} : vector<128x384xf32> to vector<128x128xf32>
    %52 = arith.truncf %51 : vector<128x128xf32> to vector<128x128xbf16>
    %c0_34 = arith.constant 0 : index
    %c0_35 = arith.constant 0 : index
    %53 = vector.load %arg20[%c0_34, %c0_35] : memref<384x128xbf16, #tpu.memory_space<vmem>>, vector<128x128xbf16>
    tpu.vector_store %arg20[%c0_34, %c0_35], %52 {strides = array<i32>} : memref<384x128xbf16, #tpu.memory_space<vmem>>, vector<128x128xbf16>,
    %54 = vector.extract_strided_slice %50 {offsets = [0, 128], sizes = [128, 128], strides = [1, 1]} : vector<128x384xf32> to vector<128x128xf32>
    %55 = arith.truncf %54 : vector<128x128xf32> to vector<128x128xbf16>
    %c128_36 = arith.constant 128 : index
    %c0_37 = arith.constant 0 : index
    %56 = vector.load %arg20[%c128_36, %c0_37] : memref<384x128xbf16, #tpu.memory_space<vmem>>, vector<128x128xbf16>
    tpu.vector_store %arg20[%c128_36, %c0_37], %55 {strides = array<i32>} : memref<384x128xbf16, #tpu.memory_space<vmem>>, vector<128x128xbf16>,
    %57 = vector.extract_strided_slice %50 {offsets = [0, 256], sizes = [128, 128], strides = [1, 1]} : vector<128x384xf32> to vector<128x128xf32>
    %58 = arith.truncf %57 : vector<128x128xf32> to vector<128x128xbf16>
    %c256_38 = arith.constant 256 : index
    %c0_39 = arith.constant 0 : index
    %59 = vector.load %arg20[%c256_38, %c0_39] : memref<384x128xbf16, #tpu.memory_space<vmem>>, vector<128x128xbf16>
    tpu.vector_store %arg20[%c256_38, %c0_39], %58 {strides = array<i32>} : memref<384x128xbf16, #tpu.memory_space<vmem>>, vector<128x128xbf16>,
    %c0_40 = arith.constant 0 : index
    %c0_41 = arith.constant 0 : index
    %60 = vector.load %arg6[%c0_40, %c0_41] : memref<128x384xbf16, #tpu.memory_space<vmem>>, vector<128x384xbf16>
    %c0_42 = arith.constant 0 : index
    %c0_43 = arith.constant 0 : index
    %61 = vector.load %arg20[%c0_42, %c0_43] : memref<384x128xbf16, #tpu.memory_space<vmem>>, vector<384x128xbf16>
    %cst_44 = arith.constant dense<0.000000e+00> : vector<128x128xf32>
    %62 = tpu.matmul %60, %61, %cst_44 {dimension_numbers = #tpu.dot_dimension_numbers<[1], [0], [0], [1], [0, 0, 1, 1], [], []>} : vector<128x384xbf16>, vector<384x128xbf16>, vector<128x128xf32> -> vector<128x128xf32>
    %cst_45 = arith.constant dense<0.000000e+00> : vector<128xf32>
    %63 = vector.multi_reduction <add>, %62, %cst_45 [0] : vector<128x128xf32> to vector<128xf32>
    %64 = vector.shape_cast %63 : vector<128xf32> to vector<1x128xf32>
    %cst_46 = arith.constant 0.0172413792 : f32
    %65 = vector.broadcast %cst_46 : f32 to vector<1x128xf32>
    %66 = arith.mulf %64, %65 : vector<1x128xf32>
    %67 = vector.broadcast %66 : vector<1x128xf32> to vector<128x128xf32>
    %68 = arith.subf %62, %67 : vector<128x128xf32>
    %69 = arith.mulf %68, %68 : vector<128x128xf32>
    %cst_47 = arith.constant dense<0.000000e+00> : vector<128xf32>
    %70 = vector.multi_reduction <add>, %69, %cst_47 [0] : vector<128x128xf32> to vector<128xf32>
    %71 = vector.shape_cast %70 : vector<128xf32> to vector<1x128xf32>
    %72 = arith.mulf %66, %66 : vector<1x128xf32>
    %cst_48 = arith.constant 7.000000e+01 : f32
    %73 = vector.broadcast %cst_48 : f32 to vector<1x128xf32>
    %74 = arith.mulf %73, %72 : vector<1x128xf32>
    %75 = arith.subf %71, %74 : vector<1x128xf32>
    %cst_49 = arith.constant 0.0172413792 : f32
    %76 = vector.broadcast %cst_49 : f32 to vector<1x128xf32>
    %77 = arith.mulf %75, %76 : vector<1x128xf32>
    %cst_50 = arith.constant 0.000000e+00 : f32
    %78 = vector.broadcast %cst_50 : f32 to vector<1x128xf32>
    %79 = arith.maximumf %77, %78 : vector<1x128xf32>
    %c0_51 = arith.constant 0 : index
    %c0_52 = arith.constant 0 : index
    %80 = vector.load %arg8[%c0_51, %c0_52] : memref<1x128xf32, #tpu.memory_space<vmem>>, vector<1x128xf32>
    %cst_53 = arith.constant 9.99999974E-6 : f32
    %81 = vector.broadcast %cst_53 : f32 to vector<1x128xf32>
    %82 = arith.addf %79, %81 : vector<1x128xf32>
    %83 = math.rsqrt %82 : vector<1x128xf32>
    %84 = arith.mulf %80, %83 : vector<1x128xf32>
    %85 = vector.broadcast %84 : vector<1x128xf32> to vector<128x128xf32>
    %86 = arith.mulf %68, %85 : vector<128x128xf32>
    %c0_54 = arith.constant 0 : index
    %c0_55 = arith.constant 0 : index
    %87 = vector.load %arg9[%c0_54, %c0_55] : memref<1x128xf32, #tpu.memory_space<vmem>>, vector<1x128xf32>
    %88 = vector.broadcast %87 : vector<1x128xf32> to vector<128x128xf32>
    %89 = arith.addf %86, %88 : vector<128x128xf32>
    %cst_56 = arith.constant 0.000000e+00 : f32
    %90 = vector.broadcast %cst_56 : f32 to vector<128x128xf32>
    %91 = arith.maximumf %89, %90 : vector<128x128xf32>
    %92 = arith.truncf %91 : vector<128x128xf32> to vector<128x128xbf16>
    %c0_57 = arith.constant 0 : index
    %c0_58 = arith.constant 0 : index
    %c0_59 = arith.constant 0 : index
    %93 = vector.load %arg10[%c0_57, %c0_58, %c0_59] : memref<3x128x128xbf16, #tpu.memory_space<vmem>>, vector<1x128x128xbf16>
    %94 = vector.shape_cast %93 : vector<1x128x128xbf16> to vector<128x128xbf16>
    %cst_60 = arith.constant dense<0.000000e+00> : vector<128x128xf32>
    %95 = tpu.matmul %94, %92, %cst_60 {dimension_numbers = #tpu.dot_dimension_numbers<[1], [0], [0], [1], [0, 0, 1, 1], [], []>} : vector<128x128xbf16>, vector<128x128xbf16>, vector<128x128xf32> -> vector<128x128xf32>
    %96 = arith.truncf %95 : vector<128x128xf32> to vector<128x128xbf16>
    %c0_61 = arith.constant 0 : index
    %c0_62 = arith.constant 0 : index
    %97 = vector.load %arg19[%c0_61, %c0_62] : memref<128x384xbf16, #tpu.memory_space<vmem>>, vector<128x128xbf16>
    tpu.vector_store %arg19[%c0_61, %c0_62], %96 {strides = array<i32>} : memref<128x384xbf16, #tpu.memory_space<vmem>>, vector<128x128xbf16>,
    %c1_63 = arith.constant 1 : index
    %c0_64 = arith.constant 0 : index
    %c0_65 = arith.constant 0 : index
    %98 = vector.load %arg10[%c1_63, %c0_64, %c0_65] : memref<3x128x128xbf16, #tpu.memory_space<vmem>>, vector<1x128x128xbf16>
    %99 = vector.shape_cast %98 : vector<1x128x128xbf16> to vector<128x128xbf16>
    %cst_66 = arith.constant dense<0.000000e+00> : vector<128x128xf32>
    %100 = tpu.matmul %99, %92, %cst_66 {dimension_numbers = #tpu.dot_dimension_numbers<[1], [0], [0], [1], [0, 0, 1, 1], [], []>} : vector<128x128xbf16>, vector<128x128xbf16>, vector<128x128xf32> -> vector<128x128xf32>
    %101 = arith.truncf %100 : vector<128x128xf32> to vector<128x128xbf16>
    %c0_67 = arith.constant 0 : index
    %c128_68 = arith.constant 128 : index
    %102 = vector.load %arg19[%c0_67, %c128_68] : memref<128x384xbf16, #tpu.memory_space<vmem>>, vector<128x128xbf16>
    tpu.vector_store %arg19[%c0_67, %c128_68], %101 {strides = array<i32>} : memref<128x384xbf16, #tpu.memory_space<vmem>>, vector<128x128xbf16>,
    %c2_69 = arith.constant 2 : index
    %c0_70 = arith.constant 0 : index
    %c0_71 = arith.constant 0 : index
    %103 = vector.load %arg10[%c2_69, %c0_70, %c0_71] : memref<3x128x128xbf16, #tpu.memory_space<vmem>>, vector<1x128x128xbf16>
    %104 = vector.shape_cast %103 : vector<1x128x128xbf16> to vector<128x128xbf16>
    %cst_72 = arith.constant dense<0.000000e+00> : vector<128x128xf32>
    %105 = tpu.matmul %104, %92, %cst_72 {dimension_numbers = #tpu.dot_dimension_numbers<[1], [0], [0], [1], [0, 0, 1, 1], [], []>} : vector<128x128xbf16>, vector<128x128xbf16>, vector<128x128xf32> -> vector<128x128xf32>
    %106 = arith.truncf %105 : vector<128x128xf32> to vector<128x128xbf16>
    %c0_73 = arith.constant 0 : index
    %c256_74 = arith.constant 256 : index
    %107 = vector.load %arg19[%c0_73, %c256_74] : memref<128x384xbf16, #tpu.memory_space<vmem>>, vector<128x128xbf16>
    tpu.vector_store %arg19[%c0_73, %c256_74], %106 {strides = array<i32>} : memref<128x384xbf16, #tpu.memory_space<vmem>>, vector<128x128xbf16>,
    %c0_75 = arith.constant 0 : index
    %c0_76 = arith.constant 0 : index
    %108 = vector.load %arg19[%c0_75, %c0_76] : memref<128x384xbf16, #tpu.memory_space<vmem>>, vector<128x384xbf16>
    %c0_77 = arith.constant 0 : index
    %c0_78 = arith.constant 0 : index
    %109 = vector.load %arg11[%c0_77, %c0_78] : memref<384x128xbf16, #tpu.memory_space<vmem>>, vector<384x128xbf16>
    %cst_79 = arith.constant dense<0.000000e+00> : vector<128x128xf32>
    %110 = tpu.matmul %108, %109, %cst_79 {dimension_numbers = #tpu.dot_dimension_numbers<[1], [0], [0], [1], [0, 0, 1, 1], [], []>} : vector<128x384xbf16>, vector<384x128xbf16>, vector<128x128xf32> -> vector<128x128xf32>
    %cst_80 = arith.constant dense<0.000000e+00> : vector<128xf32>
    %111 = vector.multi_reduction <add>, %110, %cst_80 [0] : vector<128x128xf32> to vector<128xf32>
    %112 = vector.shape_cast %111 : vector<128xf32> to vector<1x128xf32>
    %cst_81 = arith.constant 0.00877192988 : f32
    %113 = vector.broadcast %cst_81 : f32 to vector<1x128xf32>
    %114 = arith.mulf %112, %113 : vector<1x128xf32>
    %115 = vector.broadcast %114 : vector<1x128xf32> to vector<128x128xf32>
    %116 = arith.subf %110, %115 : vector<128x128xf32>
    %117 = arith.mulf %116, %116 : vector<128x128xf32>
    %cst_82 = arith.constant dense<0.000000e+00> : vector<128xf32>
    %118 = vector.multi_reduction <add>, %117, %cst_82 [0] : vector<128x128xf32> to vector<128xf32>
    %119 = vector.shape_cast %118 : vector<128xf32> to vector<1x128xf32>
    %120 = arith.mulf %114, %114 : vector<1x128xf32>
    %cst_83 = arith.constant 1.400000e+01 : f32
    %121 = vector.broadcast %cst_83 : f32 to vector<1x128xf32>
    %122 = arith.mulf %121, %120 : vector<1x128xf32>
    %123 = arith.subf %119, %122 : vector<1x128xf32>
    %cst_84 = arith.constant 0.00877192988 : f32
    %124 = vector.broadcast %cst_84 : f32 to vector<1x128xf32>
    %125 = arith.mulf %123, %124 : vector<1x128xf32>
    %cst_85 = arith.constant 0.000000e+00 : f32
    %126 = vector.broadcast %cst_85 : f32 to vector<1x128xf32>
    %127 = arith.maximumf %125, %126 : vector<1x128xf32>
    %c0_86 = arith.constant 0 : index
    %c0_87 = arith.constant 0 : index
    %128 = vector.load %arg12[%c0_86, %c0_87] : memref<1x128xf32, #tpu.memory_space<vmem>>, vector<1x128xf32>
    %cst_88 = arith.constant 9.99999974E-6 : f32
    %129 = vector.broadcast %cst_88 : f32 to vector<1x128xf32>
    %130 = arith.addf %127, %129 : vector<1x128xf32>
    %131 = math.rsqrt %130 : vector<1x128xf32>
    %132 = arith.mulf %128, %131 : vector<1x128xf32>
    %133 = vector.broadcast %132 : vector<1x128xf32> to vector<128x128xf32>
    %134 = arith.mulf %116, %133 : vector<128x128xf32>
    %c0_89 = arith.constant 0 : index
    %c0_90 = arith.constant 0 : index
    %135 = vector.load %arg13[%c0_89, %c0_90] : memref<1x128xf32, #tpu.memory_space<vmem>>, vector<1x128xf32>
    %136 = vector.broadcast %135 : vector<1x128xf32> to vector<128x128xf32>
    %137 = arith.addf %134, %136 : vector<128x128xf32>
    %cst_91 = arith.constant 0.000000e+00 : f32
    %138 = vector.broadcast %cst_91 : f32 to vector<128x128xf32>
    %139 = arith.maximumf %137, %138 : vector<128x128xf32>
    %140 = arith.truncf %139 : vector<128x128xf32> to vector<128x128xbf16>
    %c0_92 = arith.constant 0 : index
    %c0_93 = arith.constant 0 : index
    %c0_94 = arith.constant 0 : index
    %141 = vector.load %arg14[%c0_92, %c0_93, %c0_94] : memref<3x128x128xbf16, #tpu.memory_space<vmem>>, vector<1x128x128xbf16>
    %142 = vector.shape_cast %141 : vector<1x128x128xbf16> to vector<128x128xbf16>
    %cst_95 = arith.constant dense<0.000000e+00> : vector<128x128xf32>
    %143 = tpu.matmul %142, %140, %cst_95 {dimension_numbers = #tpu.dot_dimension_numbers<[1], [0], [0], [1], [0, 0, 1, 1], [], []>} : vector<128x128xbf16>, vector<128x128xbf16>, vector<128x128xf32> -> vector<128x128xf32>
    %144 = arith.truncf %143 : vector<128x128xf32> to vector<128x128xbf16>
    %c0_96 = arith.constant 0 : index
    %c0_97 = arith.constant 0 : index
    %145 = vector.load %arg19[%c0_96, %c0_97] : memref<128x384xbf16, #tpu.memory_space<vmem>>, vector<128x128xbf16>
    tpu.vector_store %arg19[%c0_96, %c0_97], %144 {strides = array<i32>} : memref<128x384xbf16, #tpu.memory_space<vmem>>, vector<128x128xbf16>,
    %c1_98 = arith.constant 1 : index
    %c0_99 = arith.constant 0 : index
    %c0_100 = arith.constant 0 : index
    %146 = vector.load %arg14[%c1_98, %c0_99, %c0_100] : memref<3x128x128xbf16, #tpu.memory_space<vmem>>, vector<1x128x128xbf16>
    %147 = vector.shape_cast %146 : vector<1x128x128xbf16> to vector<128x128xbf16>
    %cst_101 = arith.constant dense<0.000000e+00> : vector<128x128xf32>
    %148 = tpu.matmul %147, %140, %cst_101 {dimension_numbers = #tpu.dot_dimension_numbers<[1], [0], [0], [1], [0, 0, 1, 1], [], []>} : vector<128x128xbf16>, vector<128x128xbf16>, vector<128x128xf32> -> vector<128x128xf32>
    %149 = arith.truncf %148 : vector<128x128xf32> to vector<128x128xbf16>
    %c0_102 = arith.constant 0 : index
    %c128_103 = arith.constant 128 : index
    %150 = vector.load %arg19[%c0_102, %c128_103] : memref<128x384xbf16, #tpu.memory_space<vmem>>, vector<128x128xbf16>
    tpu.vector_store %arg19[%c0_102, %c128_103], %149 {strides = array<i32>} : memref<128x384xbf16, #tpu.memory_space<vmem>>, vector<128x128xbf16>,
    %c2_104 = arith.constant 2 : index
    %c0_105 = arith.constant 0 : index
    %c0_106 = arith.constant 0 : index
    %151 = vector.load %arg14[%c2_104, %c0_105, %c0_106] : memref<3x128x128xbf16, #tpu.memory_space<vmem>>, vector<1x128x128xbf16>
    %152 = vector.shape_cast %151 : vector<1x128x128xbf16> to vector<128x128xbf16>
    %cst_107 = arith.constant dense<0.000000e+00> : vector<128x128xf32>
    %153 = tpu.matmul %152, %140, %cst_107 {dimension_numbers = #tpu.dot_dimension_numbers<[1], [0], [0], [1], [0, 0, 1, 1], [], []>} : vector<128x128xbf16>, vector<128x128xbf16>, vector<128x128xf32> -> vector<128x128xf32>
    %154 = arith.truncf %153 : vector<128x128xf32> to vector<128x128xbf16>
    %c0_108 = arith.constant 0 : index
    %c256_109 = arith.constant 256 : index
    %155 = vector.load %arg19[%c0_108, %c256_109] : memref<128x384xbf16, #tpu.memory_space<vmem>>, vector<128x128xbf16>
    tpu.vector_store %arg19[%c0_108, %c256_109], %154 {strides = array<i32>} : memref<128x384xbf16, #tpu.memory_space<vmem>>, vector<128x128xbf16>,
    %c0_110 = arith.constant 0 : index
    %c0_111 = arith.constant 0 : index
    %156 = vector.load %arg19[%c0_110, %c0_111] : memref<128x384xbf16, #tpu.memory_space<vmem>>, vector<128x384xbf16>
    %c0_112 = arith.constant 0 : index
    %c0_113 = arith.constant 0 : index
    %157 = vector.load %arg15[%c0_112, %c0_113] : memref<384x128xbf16, #tpu.memory_space<vmem>>, vector<384x128xbf16>
    %cst_114 = arith.constant dense<0.000000e+00> : vector<128x128xf32>
    %158 = tpu.matmul %156, %157, %cst_114 {dimension_numbers = #tpu.dot_dimension_numbers<[1], [0], [0], [1], [0, 0, 1, 1], [], []>} : vector<128x384xbf16>, vector<384x128xbf16>, vector<128x128xf32> -> vector<128x128xf32>
    %cst_115 = arith.constant dense<0.000000e+00> : vector<128xf32>
    %159 = vector.multi_reduction <add>, %158, %cst_115 [0] : vector<128x128xf32> to vector<128xf32>
    %160 = vector.shape_cast %159 : vector<128xf32> to vector<1x128xf32>
    %cst_116 = arith.constant 0.00847457629 : f32
    %161 = vector.broadcast %cst_116 : f32 to vector<1x128xf32>
    %162 = arith.mulf %160, %161 : vector<1x128xf32>
    %163 = vector.broadcast %162 : vector<1x128xf32> to vector<128x128xf32>
    %164 = arith.subf %158, %163 : vector<128x128xf32>
    %165 = arith.mulf %164, %164 : vector<128x128xf32>
    %cst_117 = arith.constant dense<0.000000e+00> : vector<128xf32>
    %166 = vector.multi_reduction <add>, %165, %cst_117 [0] : vector<128x128xf32> to vector<128xf32>
    %167 = vector.shape_cast %166 : vector<128xf32> to vector<1x128xf32>
    %168 = arith.mulf %162, %162 : vector<1x128xf32>
    %cst_118 = arith.constant 1.000000e+01 : f32
    %169 = vector.broadcast %cst_118 : f32 to vector<1x128xf32>
    %170 = arith.mulf %169, %168 : vector<1x128xf32>
    %171 = arith.subf %167, %170 : vector<1x128xf32>
    %cst_119 = arith.constant 0.00847457629 : f32
    %172 = vector.broadcast %cst_119 : f32 to vector<1x128xf32>
    %173 = arith.mulf %171, %172 : vector<1x128xf32>
    %cst_120 = arith.constant 0.000000e+00 : f32
    %174 = vector.broadcast %cst_120 : f32 to vector<1x128xf32>
    %175 = arith.maximumf %173, %174 : vector<1x128xf32>
    %c0_121 = arith.constant 0 : index
    %c0_122 = arith.constant 0 : index
    %176 = vector.load %arg16[%c0_121, %c0_122] : memref<1x128xf32, #tpu.memory_space<vmem>>, vector<1x128xf32>
    %cst_123 = arith.constant 9.99999974E-6 : f32
    %177 = vector.broadcast %cst_123 : f32 to vector<1x128xf32>
    %178 = arith.addf %175, %177 : vector<1x128xf32>
    %179 = math.rsqrt %178 : vector<1x128xf32>
    %180 = arith.mulf %176, %179 : vector<1x128xf32>
    %181 = vector.broadcast %180 : vector<1x128xf32> to vector<128x128xf32>
    %182 = arith.mulf %164, %181 : vector<128x128xf32>
    %c0_124 = arith.constant 0 : index
    %c0_125 = arith.constant 0 : index
    %183 = vector.load %arg17[%c0_124, %c0_125] : memref<1x128xf32, #tpu.memory_space<vmem>>, vector<1x128xf32>
    %184 = vector.broadcast %183 : vector<1x128xf32> to vector<128x128xf32>
    %185 = arith.addf %182, %184 : vector<128x128xf32>
    %cst_126 = arith.constant 0.000000e+00 : f32
    %186 = vector.broadcast %cst_126 : f32 to vector<128x128xf32>
    %187 = arith.maximumf %185, %186 : vector<128x128xf32>
    %c0_127 = arith.constant 0 : index
    %c0_128 = arith.constant 0 : index
    %188 = vector.load %arg18[%c0_127, %c0_128] : memref<128x128xf32, #tpu.memory_space<vmem>>, vector<128x128xf32>
    tpu.vector_store %arg18[%c0_127, %c0_128], %187 {strides = array<i32>} : memref<128x128xf32, #tpu.memory_space<vmem>>, vector<128x128xf32>,
    return
  }
  func.func @transform_0(%arg0: i32) -> (i32, i32) {
    %c0_i32 = arith.constant 0 : i32
    %c0_i32_0 = arith.constant 0 : i32
    %c0_i32_1 = arith.constant 0 : i32
    return %c0_i32, %c0_i32_0 : i32, i32
  }
  func.func @transform_1(%arg0: i32) -> (i32, i32, i32) {
    %c0_i32 = arith.constant 0 : i32
    %c0_i32_0 = arith.constant 0 : i32
    %c0_i32_1 = arith.constant 0 : i32
    %c0_i32_2 = arith.constant 0 : i32
    return %c0_i32, %c0_i32_0, %c0_i32_1 : i32, i32, i32
  }
  func.func @transform_2(%arg0: i32) -> (i32, i32) {
    %c0_i32 = arith.constant 0 : i32
    %c0_i32_0 = arith.constant 0 : i32
    %c0_i32_1 = arith.constant 0 : i32
    return %c0_i32, %c0_i32_0 : i32, i32
  }
  func.func @transform_3(%arg0: i32) -> (i32, i32) {
    %c0_i32 = arith.constant 0 : i32
    %c0_i32_0 = arith.constant 0 : i32
    %c0_i32_1 = arith.constant 0 : i32
    return %c0_i32, %c0_i32_0 : i32, i32
  }
  func.func @transform_4(%arg0: i32) -> (i32, i32) {
    %c0_i32 = arith.constant 0 : i32
    %c0_i32_0 = arith.constant 0 : i32
    %c0_i32_1 = arith.constant 0 : i32
    return %c0_i32, %c0_i32_0 : i32, i32
  }
  func.func @transform_5(%arg0: i32) -> (i32, i32) {
    %c0_i32 = arith.constant 0 : i32
    %c0_i32_0 = arith.constant 0 : i32
    %c0_i32_1 = arith.constant 0 : i32
    return %c0_i32, %c0_i32_0 : i32, i32
  }
  func.func @transform_6(%arg0: i32) -> (i32, i32) {
    %c0_i32 = arith.constant 0 : i32
    %c0_i32_0 = arith.constant 0 : i32
    %c0_i32_1 = arith.constant 0 : i32
    return %c0_i32, %c0_i32_0 : i32, i32
  }
  func.func @transform_7(%arg0: i32) -> (i32, i32) {
    %c0_i32 = arith.constant 0 : i32
    %c0_i32_0 = arith.constant 0 : i32
    %c0_i32_1 = arith.constant 0 : i32
    return %c0_i32, %c0_i32_0 : i32, i32
  }
  func.func @transform_8(%arg0: i32) -> (i32, i32) {
    %c0_i32 = arith.constant 0 : i32
    %c0_i32_0 = arith.constant 0 : i32
    %c0_i32_1 = arith.constant 0 : i32
    return %c0_i32, %c0_i32_0 : i32, i32
  }
  func.func @transform_9(%arg0: i32) -> (i32, i32, i32) {
    %c0_i32 = arith.constant 0 : i32
    %c0_i32_0 = arith.constant 0 : i32
    %c0_i32_1 = arith.constant 0 : i32
    %c0_i32_2 = arith.constant 0 : i32
    return %c0_i32, %c0_i32_0, %c0_i32_1 : i32, i32, i32
  }
  func.func @transform_10(%arg0: i32) -> (i32, i32) {
    %c0_i32 = arith.constant 0 : i32
    %c0_i32_0 = arith.constant 0 : i32
    %c0_i32_1 = arith.constant 0 : i32
    return %c0_i32, %c0_i32_0 : i32, i32
  }
  func.func @transform_11(%arg0: i32) -> (i32, i32) {
    %c0_i32 = arith.constant 0 : i32
    %c0_i32_0 = arith.constant 0 : i32
    %c0_i32_1 = arith.constant 0 : i32
    return %c0_i32, %c0_i32_0 : i32, i32
  }
  func.func @transform_12(%arg0: i32) -> (i32, i32) {
    %c0_i32 = arith.constant 0 : i32
    %c0_i32_0 = arith.constant 0 : i32
    %c0_i32_1 = arith.constant 0 : i32
    return %c0_i32, %c0_i32_0 : i32, i32
  }
  func.func @transform_13(%arg0: i32) -> (i32, i32, i32) {
    %c0_i32 = arith.constant 0 : i32
    %c0_i32_0 = arith.constant 0 : i32
    %c0_i32_1 = arith.constant 0 : i32
    %c0_i32_2 = arith.constant 0 : i32
    return %c0_i32, %c0_i32_0, %c0_i32_1 : i32, i32, i32
  }
  func.func @transform_14(%arg0: i32) -> (i32, i32) {
    %c0_i32 = arith.constant 0 : i32
    %c0_i32_0 = arith.constant 0 : i32
    %c0_i32_1 = arith.constant 0 : i32
    return %c0_i32, %c0_i32_0 : i32, i32
  }
  func.func @transform_15(%arg0: i32) -> (i32, i32) {
    %c0_i32 = arith.constant 0 : i32
    %c0_i32_0 = arith.constant 0 : i32
    %c0_i32_1 = arith.constant 0 : i32
    return %c0_i32, %c0_i32_0 : i32, i32
  }
  func.func @transform_16(%arg0: i32) -> (i32, i32) {
    %c0_i32 = arith.constant 0 : i32
    %c0_i32_0 = arith.constant 0 : i32
    %c0_i32_1 = arith.constant 0 : i32
    return %c0_i32, %c0_i32_0 : i32, i32
  }
  func.func @transform_17(%arg0: i32) -> (i32, i32) {
    %c0_i32 = arith.constant 0 : i32
    %c0_i32_0 = arith.constant 0 : i32
    %c0_i32_1 = arith.constant 0 : i32
    return %c0_i32, %c0_i32_0 : i32, i32
  }
}

</mosaic_0001>

<llo_original>
// kernel: infogen_forward.1
$region0: #{infogen_forward.1}
  #allocation0 [shape = 'u32[]', space=smem, size = 0x4, offset = 0x4, fixed_abs, tag = 'smem constant byte address 0x4 - core index']
  #allocation1 [shape = 'u32[144,128]{1,0:T(1,128)}', space=vmem, size = 0x12000, scoped, tag = 'internal scratch']
  #allocation2 [shape = 'bf16[128,384]{1,0:T(16,128)(2,1)}', space=vmem, size = 0x18000, scoped, tag = 'scratch operand']
  #allocation3 [shape = 'bf16[384,128]{1,0:T(16,128)(2,1)}', space=vmem, size = 0x18000, scoped, tag = 'scratch operand']
  %s0 = inlined_call_operand.vmem [shape: bf16[128,128], index: 0, kind: input, shape index: {}]
  %s1 = inlined_call_operand.vmem [shape: bf16[3,128,128], index: 1, kind: input, shape index: {}]
  %s2 = inlined_call_operand.vmem [shape: bf16[384,512], index: 2, kind: input, shape index: {}]
  %s3 = inlined_call_operand.vmem [shape: f32[1,512], index: 3, kind: input, shape index: {}]
  %s4 = inlined_call_operand.vmem [shape: f32[1,512], index: 4, kind: input, shape index: {}]
  %s5 = inlined_call_operand.vmem [shape: bf16[128,384], index: 5, kind: input, shape index: {}]
  %s6 = inlined_call_operand.vmem [shape: bf16[512,384], index: 6, kind: input, shape index: {}]
  %s7 = inlined_call_operand.vmem [shape: f32[1,128], index: 7, kind: input, shape index: {}]
  %s8 = inlined_call_operand.vmem [shape: f32[1,128], index: 8, kind: input, shape index: {}]
  %s9 = inlined_call_operand.vmem [shape: bf16[3,128,128], index: 9, kind: input, shape index: {}]
  %s10 = inlined_call_operand.vmem [shape: bf16[384,128], index: 10, kind: input, shape index: {}]
  %s11 = inlined_call_operand.vmem [shape: f32[1,128], index: 11, kind: input, shape index: {}]
  %s12 = inlined_call_operand.vmem [shape: f32[1,128], index: 12, kind: input, shape index: {}]
  %s13 = inlined_call_operand.vmem [shape: bf16[3,128,128], index: 13, kind: input, shape index: {}]
  %s14 = inlined_call_operand.vmem [shape: bf16[384,128], index: 14, kind: input, shape index: {}]
  %s15 = inlined_call_operand.vmem [shape: f32[1,128], index: 15, kind: input, shape index: {}]
  %s16 = inlined_call_operand.vmem [shape: f32[1,128], index: 16, kind: input, shape index: {}]
  %s17 = inlined_call_operand.vmem [shape: f32[128,128], index: 17, kind: output, shape index: {}]
  %s18 = sld [smem:[#allocation0]]
  $region78: #{infogen_forward.1} parent=0
    _
  %s20 = ssub.s32 1, %s18
  %s21 = scalar_select 0, %s20, %s18
  // Predicated region
  $region2: #{infogen_forward.1} parent=0 // pred_check
    _
  $region3: #{infogen_forward.1} parent=0 // pred_check_branch
    %23 = sbr.rel (0) target = $region5
  $region4: #{infogen_forward.1} parent=0 // pred_region
    _
  $region5: #{infogen_forward.1} parent=0 // pred_fallthru
    _
  // Predicated region
  $region6: #{infogen_forward.1} parent=0 // pred_check
    _
  $region7: #{infogen_forward.1} parent=0 // pred_check_branch
    %25 = sbr.rel (0) target = $region9
  $region8: #{infogen_forward.1} parent=0 // pred_region
    _
  $region9: #{infogen_forward.1} parent=0 // pred_fallthru
    _
  // Predicated region
  $region10: #{infogen_forward.1} parent=0 // pred_check
    _
  $region11: #{infogen_forward.1} parent=0 // pred_check_branch
    %27 = sbr.rel (0) target = $region13
  $region12: #{infogen_forward.1} parent=0 // pred_region
    _
  $region13: #{infogen_forward.1} parent=0 // pred_fallthru
    _
  // Predicated region
  $region14: #{infogen_forward.1} parent=0 // pred_check
    _
  $region15: #{infogen_forward.1} parent=0 // pred_check_branch
    %29 = sbr.rel (0) target = $region17
  $region16: #{infogen_forward.1} parent=0 // pred_region
    _
  $region17: #{infogen_forward.1} parent=0 // pred_fallthru
    _
  // Predicated region
  $region18: #{infogen_forward.1} parent=0 // pred_check
    _
  $region19: #{infogen_forward.1} parent=0 // pred_check_branch
    %31 = sbr.rel (0) target = $region21
  $region20: #{infogen_forward.1} parent=0 // pred_region
    _
  $region21: #{infogen_forward.1} parent=0 // pred_fallthru
    _
  // Predicated region
  $region22: #{infogen_forward.1} parent=0 // pred_check
    _
  $region23: #{infogen_forward.1} parent=0 // pred_check_branch
    %33 = sbr.rel (0) target = $region25
  $region24: #{infogen_forward.1} parent=0 // pred_region
    _
  $region25: #{infogen_forward.1} parent=0 // pred_fallthru
    _
  // Predicated region
  $region26: #{infogen_forward.1} parent=0 // pred_check
    _
  $region27: #{infogen_forward.1} parent=0 // pred_check_branch
    %35 = sbr.rel (0) target = $region29
  $region28: #{infogen_forward.1} parent=0 // pred_region
    _
  $region29: #{infogen_forward.1} parent=0 // pred_fallthru
    _
  // Predicated region
  $region30: #{infogen_forward.1} parent=0 // pred_check
    _
  $region31: #{infogen_forward.1} parent=0 // pred_check_branch
    %37 = sbr.rel (0) target = $region33
  $region32: #{infogen_forward.1} parent=0 // pred_region
    _
  $region33: #{infogen_forward.1} parent=0 // pred_fallthru
    _
  // Predicated region
  $region34: #{infogen_forward.1} parent=0 // pred_check
    _
  $region35: #{infogen_forward.1} parent=0 // pred_check_branch
    %39 = sbr.rel (0) target = $region37
  $region36: #{infogen_forward.1} parent=0 // pred_region
    _
  $region37: #{infogen_forward.1} parent=0 // pred_fallthru
    _
  // Predicated region
  $region38: #{infogen_forward.1} parent=0 // pred_check
    _
  $region39: #{infogen_forward.1} parent=0 // pred_check_branch
    %41 = sbr.rel (0) target = $region41
  $region40: #{infogen_forward.1} parent=0 // pred_region
    _
  $region41: #{infogen_forward.1} parent=0 // pred_fallthru
    _
  // Predicated region
  $region42: #{infogen_forward.1} parent=0 // pred_check
    _
  $region43: #{infogen_forward.1} parent=0 // pred_check_branch
    %43 = sbr.rel (0) target = $region45
  $region44: #{infogen_forward.1} parent=0 // pred_region
    _
  $region45: #{infogen_forward.1} parent=0 // pred_fallthru
    _
  // Predicated region
  $region46: #{infogen_forward.1} parent=0 // pred_check
    _
  $region47: #{infogen_forward.1} parent=0 // pred_check_branch
    %45 = sbr.rel (0) target = $region49
  $region48: #{infogen_forward.1} parent=0 // pred_region
    _
  $region49: #{infogen_forward.1} parent=0 // pred_fallthru
    _
  // Predicated region
  $region50: #{infogen_forward.1} parent=0 // pred_check
    _
  $region51: #{infogen_forward.1} parent=0 // pred_check_branch
    %47 = sbr.rel (0) target = $region53
  $region52: #{infogen_forward.1} parent=0 // pred_region
    _
  $region53: #{infogen_forward.1} parent=0 // pred_fallthru
    _
  // Predicated region
  $region54: #{infogen_forward.1} parent=0 // pred_check
    _
  $region55: #{infogen_forward.1} parent=0 // pred_check_branch
    %49 = sbr.rel (0) target = $region57
  $region56: #{infogen_forward.1} parent=0 // pred_region
    _
  $region57: #{infogen_forward.1} parent=0 // pred_fallthru
    _
  // Predicated region
  $region58: #{infogen_forward.1} parent=0 // pred_check
    _
  $region59: #{infogen_forward.1} parent=0 // pred_check_branch
    %51 = sbr.rel (0) target = $region61
  $region60: #{infogen_forward.1} parent=0 // pred_region
    _
  $region61: #{infogen_forward.1} parent=0 // pred_fallthru
    _
  // Predicated region
  $region62: #{infogen_forward.1} parent=0 // pred_check
    _
  $region63: #{infogen_forward.1} parent=0 // pred_check_branch
    %53 = sbr.rel (0) target = $region65
  $region64: #{infogen_forward.1} parent=0 // pred_region
    _
  $region65: #{infogen_forward.1} parent=0 // pred_fallthru
    _
  // Predicated region
  $region66: #{infogen_forward.1} parent=0 // pred_check
    _
  $region67: #{infogen_forward.1} parent=0 // pred_check_branch
    %55 = sbr.rel (0) target = $region69
  $region68: #{infogen_forward.1} parent=0 // pred_region
    _
  $region69: #{infogen_forward.1} parent=0 // pred_fallthru
    _
  %v57 = vld [vmem:[%s0] sm:$0xf]
  %v58 = vld [vmem:[%s0 + $0x4] sm:$0xf]
  %v59 = vld [vmem:[%s0 + $0x8] sm:$0xf]
  %v60 = vld [vmem:[%s0 + $0xc] sm:$0xf]
  %v61 = vld [vmem:[%s0 + $0x10] sm:$0xf]
  %v62 = vld [vmem:[%s0 + $0x14] sm:$0xf]
  %v63 = vld [vmem:[%s0 + $0x18] sm:$0xf]
  %v64 = vld [vmem:[%s0 + $0x1c] sm:$0xf]
  %v65 = vld [vmem:[%s0 + $0x20] sm:$0xf]
  %v66 = vld [vmem:[%s0 + $0x24] sm:$0xf]
  %v67 = vld [vmem:[%s0 + $0x28] sm:$0xf]
  %v68 = vld [vmem:[%s0 + $0x2c] sm:$0xf]
  %v69 = vld [vmem:[%s0 + $0x30] sm:$0xf]
  %v70 = vld [vmem:[%s0 + $0x34] sm:$0xf]
  %v71 = vld [vmem:[%s0 + $0x38] sm:$0xf]
  %v72 = vld [vmem:[%s0 + $0x3c] sm:$0xf]
  %v73 = vld [vmem:[%s1] sm:$0xf]
  %v74 = vld [vmem:[%s1 + $0x4] sm:$0xf]
  %v75 = vld [vmem:[%s1 + $0x8] sm:$0xf]
  %v76 = vld [vmem:[%s1 + $0xc] sm:$0xf]
  %v77 = vld [vmem:[%s1 + $0x10] sm:$0xf]
  %v78 = vld [vmem:[%s1 + $0x14] sm:$0xf]
  %v79 = vld [vmem:[%s1 + $0x18] sm:$0xf]
  %v80 = vld [vmem:[%s1 + $0x1c] sm:$0xf]
  %v81 = vld [vmem:[%s1 + $0x20] sm:$0xf]
  %v82 = vld [vmem:[%s1 + $0x24] sm:$0xf]
  %v83 = vld [vmem:[%s1 + $0x28] sm:$0xf]
  %v84 = vld [vmem:[%s1 + $0x2c] sm:$0xf]
  %v85 = vld [vmem:[%s1 + $0x30] sm:$0xf]
  %v86 = vld [vmem:[%s1 + $0x34] sm:$0xf]
  %v87 = vld [vmem:[%s1 + $0x38] sm:$0xf]
  %v88 = vld [vmem:[%s1 + $0x3c] sm:$0xf]
  %v105 = vunpack.c.l.b16 %v73
  %v106 = vunpack.c.l.b16 %v74
  %v107 = vunpack.c.l.b16 %v75
  %v108 = vunpack.c.l.b16 %v76
  %v109 = vunpack.c.l.b16 %v77
  %v110 = vunpack.c.l.b16 %v78
  %v111 = vunpack.c.l.b16 %v79
  %v112 = vunpack.c.l.b16 %v80
  %v113 = vunpack.c.l.b16 %v81
  %v114 = vunpack.c.l.b16 %v82
  %v115 = vunpack.c.l.b16 %v83
  %v116 = vunpack.c.l.b16 %v84
  %v117 = vunpack.c.l.b16 %v85
  %v118 = vunpack.c.l.b16 %v86
  %v119 = vunpack.c.l.b16 %v87
  %v120 = vunpack.c.l.b16 %v88
  %v121 = vpack.c.b16 %v106, %v105
  %v122 = vpack.c.b16 %v108, %v107
  %v123 = vpack.c.b16 %v110, %v109
  %v124 = vpack.c.b16 %v112, %v111
  %v125 = vpack.c.b16 %v114, %v113
  %v126 = vpack.c.b16 %v116, %v115
  %v127 = vpack.c.b16 %v118, %v117
  %v128 = vpack.c.b16 %v120, %v119
  %v153 = vunpack.c.l.b16 %v57
  %v154 = vunpack.c.l.b16 %v58
  %v155 = vunpack.c.l.b16 %v59
  %v156 = vunpack.c.l.b16 %v60
  %v157 = vunpack.c.l.b16 %v61
  %v158 = vunpack.c.l.b16 %v62
  %v159 = vunpack.c.l.b16 %v63
  %v160 = vunpack.c.l.b16 %v64
  %v161 = vunpack.c.l.b16 %v65
  %v162 = vunpack.c.l.b16 %v66
  %v163 = vunpack.c.l.b16 %v67
  %v164 = vunpack.c.l.b16 %v68
  %v165 = vunpack.c.l.b16 %v69
  %v166 = vunpack.c.l.b16 %v70
  %v167 = vunpack.c.l.b16 %v71
  %v168 = vunpack.c.l.b16 %v72
  %v169 = vpack.c.b16 %v154, %v153
  %v170 = vpack.c.b16 %v156, %v155
  %v171 = vpack.c.b16 %v158, %v157
  %v172 = vpack.c.b16 %v160, %v159
  %v173 = vpack.c.b16 %v162, %v161
  %v174 = vpack.c.b16 %v164, %v163
  %v175 = vpack.c.b16 %v166, %v165
  %v176 = vpack.c.b16 %v168, %v167
  %185 = vmatprep.subr.bf16.mxu0 0
  %186 = vmatpush1.bf16.msra.mxu0 %v169
  %187 = vmatprep.subr.bf16.mxu0 0
  %188 = vmatpush1.bf16.msra.mxu0 %v170
  %189 = vmatprep.subr.bf16.mxu0 0
  %190 = vmatpush1.bf16.msra.mxu0 %v171
  %191 = vmatprep.subr.bf16.mxu0 0
  %192 = vmatpush1.bf16.msra.mxu0 %v172
  %193 = vmatprep.subr.bf16.mxu0 0
  %194 = vmatpush1.bf16.msra.mxu0 %v173
  %195 = vmatprep.subr.bf16.mxu0 0
  %196 = vmatpush1.bf16.msra.mxu0 %v174
  %197 = vmatprep.subr.bf16.mxu0 0
  %198 = vmatpush1.bf16.msra.mxu0 %v175
  %199 = vmatprep.subr.bf16.mxu0 0
  %200 = vmatpush1.bf16.msra.mxu0 %v176
  %201 = vmatprep.subr.bf16.mxu0 0
  %202 = vmatpush1.bf16.msra.mxu0 0
  %203 = vmatprep.subr.bf16.mxu0 0
  %204 = vmatpush1.bf16.msra.mxu0 0
  %205 = vmatprep.subr.bf16.mxu0 0
  %206 = vmatpush1.bf16.msra.mxu0 0
  %207 = vmatprep.subr.bf16.mxu0 0
  %208 = vmatpush1.bf16.msra.mxu0 0
  %209 = vmatprep.subr.bf16.mxu0 0
  %210 = vmatpush1.bf16.msra.mxu0 0
  %211 = vmatprep.subr.bf16.mxu0 0
  %212 = vmatpush1.bf16.msra.mxu0 0
  %213 = vmatprep.subr.bf16.mxu0 0
  %214 = vmatpush1.bf16.msra.mxu0 0
  %215 = vmatprep.subr.bf16.mxu0 0
  %216 = vmatpush1.bf16.msra.mxu0 0
  %217 = vmatprep.mubr.bf16.mxu0 0
  %218 = vmatmul.mubr.bf16.gmra.mrb[0].mxu0 %v121
  %v219 = vpop.f32.mrb[0].mxu0
  %v220 = vadd.f32 0.0, %v219
  %v221 = vpop.f32.mrb[0].mxu0
  %v222 = vpop.f32.mrb[0].mxu0
  %v223 = vadd.f32 0.0, %v222
  %v224 = vpop.f32.mrb[0].mxu0
  %225 = vmatprep.mubr.bf16.mxu0 0
  %226 = vmatmul.mubr.bf16.gmra.mrb[0].mxu0 %v122
  %v227 = vpop.f32.mrb[0].mxu0
  %v228 = vadd.f32 0.0, %v227
  %v229 = vpop.f32.mrb[0].mxu0
  %v230 = vpop.f32.mrb[0].mxu0
  %v231 = vadd.f32 0.0, %v230
  %v232 = vpop.f32.mrb[0].mxu0
  %233 = vmatprep.mubr.bf16.mxu0 0
  %234 = vmatmul.mubr.bf16.gmra.mrb[0].mxu0 %v123
  %v235 = vpop.f32.mrb[0].mxu0
  %v236 = vadd.f32 0.0, %v235
  %v237 = vpop.f32.mrb[0].mxu0
  %v238 = vpop.f32.mrb[0].mxu0
  %v239 = vadd.f32 0.0, %v238
  %v240 = vpop.f32.mrb[0].mxu0
  %241 = vmatprep.mubr.bf16.mxu0 0
  %242 = vmatmul.mubr.bf16.gmra.mrb[0].mxu0 %v124
  %v243 = vpop.f32.mrb[0].mxu0
  %v244 = vadd.f32 0.0, %v243
  %v245 = vpop.f32.mrb[0].mxu0
  %v246 = vpop.f32.mrb[0].mxu0
  %v247 = vadd.f32 0.0, %v246
  %v248 = vpop.f32.mrb[0].mxu0
  %249 = vmatprep.mubr.bf16.mxu0 0
  %250 = vmatmul.mubr.bf16.gmra.mrb[0].mxu0 %v125
  %v251 = vpop.f32.mrb[0].mxu0
  %v252 = vadd.f32 0.0, %v251
  %v253 = vpop.f32.mrb[0].mxu0
  %v254 = vpop.f32.mrb[0].mxu0
  %v255 = vadd.f32 0.0, %v254
  %v256 = vpop.f32.mrb[0].mxu0
  %257 = vmatprep.mubr.bf16.mxu0 0
  %258 = vmatmul.mubr.bf16.gmra.mrb[0].mxu0 %v126
  %v259 = vpop.f32.mrb[0].mxu0
  %v260 = vadd.f32 0.0, %v259
  %v261 = vpop.f32.mrb[0].mxu0
  %v262 = vpop.f32.mrb[0].mxu0
  %v263 = vadd.f32 0.0, %v262
  %v264 = vpop.f32.mrb[0].mxu0
  %265 = vmatprep.mubr.bf16.mxu0 0
  %266 = vmatmul.mubr.bf16.gmra.mrb[0].mxu0 %v127
  %v267 = vpop.f32.mrb[0].mxu0
  %v268 = vadd.f32 0.0, %v267
  %v269 = vpop.f32.mrb[0].mxu0
  %v270 = vpop.f32.mrb[0].mxu0
  %v271 = vadd.f32 0.0, %v270
  %v272 = vpop.f32.mrb[0].mxu0
  %273 = vmatprep.mubr.bf16.mxu0 0
  %274 = vmatmul.mubr.bf16.gmra.mrb[0].mxu0 %v128
  %v275 = vpop.f32.mrb[0].mxu0
  %v276 = vadd.f32 0.0, %v275
  %v277 = vpop.f32.mrb[0].mxu0
  %v278 = vpop.f32.mrb[0].mxu0
  %v279 = vadd.f32 0.0, %v278
  %v280 = vpop.f32.mrb[0].mxu0
  %281 = vdwg.mxu0
  %v282 = vpack.c.bf16 %v223, %v220
  %v283 = vpack.c.bf16 %v231, %v228
  %v284 = vpack.c.bf16 %v239, %v236
  %v285 = vpack.c.bf16 %v247, %v244
  %v286 = vpack.c.bf16 %v255, %v252
  %v287 = vpack.c.bf16 %v263, %v260
  %v288 = vpack.c.bf16 %v271, %v268
  %v289 = vpack.c.bf16 %v279, %v276
  %290 = vst [vmem:[#allocation2] sm:$0xff] %v282
  %291 = vst [vmem:[#allocation2 + $0x18] sm:$0xff] %v283
  %292 = vst [vmem:[#allocation2 + $0x30] sm:$0xff] %v284
  %293 = vst [vmem:[#allocation2 + $0x48] sm:$0xff] %v285
  %294 = vst [vmem:[#allocation2 + $0x60] sm:$0xff] %v286
  %295 = vst [vmem:[#allocation2 + $0x78] sm:$0xff] %v287
  %296 = vst [vmem:[#allocation2 + $0x90] sm:$0xff] %v288
  %297 = vst [vmem:[#allocation2 + $0xa8] sm:$0xff] %v289
  %s298 = scalar_lea.vmem %s1, 64
  %v299 = vld [vmem:[%s298] sm:$0xf]
  %v300 = vld [vmem:[%s298 + $0x4] sm:$0xf]
  %v301 = vld [vmem:[%s298 + $0x8] sm:$0xf]
  %v302 = vld [vmem:[%s298 + $0xc] sm:$0xf]
  %v303 = vld [vmem:[%s298 + $0x10] sm:$0xf]
  %v304 = vld [vmem:[%s298 + $0x14] sm:$0xf]
  %v305 = vld [vmem:[%s298 + $0x18] sm:$0xf]
  %v306 = vld [vmem:[%s298 + $0x1c] sm:$0xf]
  %v307 = vld [vmem:[%s298 + $0x20] sm:$0xf]
  %v308 = vld [vmem:[%s298 + $0x24] sm:$0xf]
  %v309 = vld [vmem:[%s298 + $0x28] sm:$0xf]
  %v310 = vld [vmem:[%s298 + $0x2c] sm:$0xf]
  %v311 = vld [vmem:[%s298 + $0x30] sm:$0xf]
  %v312 = vld [vmem:[%s298 + $0x34] sm:$0xf]
  %v313 = vld [vmem:[%s298 + $0x38] sm:$0xf]
  %v314 = vld [vmem:[%s298 + $0x3c] sm:$0xf]
  %v331 = vunpack.c.l.b16 %v299
  %v332 = vunpack.c.l.b16 %v300
  %v333 = vunpack.c.l.b16 %v301
  %v334 = vunpack.c.l.b16 %v302
  %v335 = vunpack.c.l.b16 %v303
  %v336 = vunpack.c.l.b16 %v304
  %v337 = vunpack.c.l.b16 %v305
  %v338 = vunpack.c.l.b16 %v306
  %v339 = vunpack.c.l.b16 %v307
  %v340 = vunpack.c.l.b16 %v308
  %v341 = vunpack.c.l.b16 %v309
  %v342 = vunpack.c.l.b16 %v310
  %v343 = vunpack.c.l.b16 %v311
  %v344 = vunpack.c.l.b16 %v312
  %v345 = vunpack.c.l.b16 %v313
  %v346 = vunpack.c.l.b16 %v314
  %v347 = vpack.c.b16 %v332, %v331
  %v348 = vpack.c.b16 %v334, %v333
  %v349 = vpack.c.b16 %v336, %v335
  %v350 = vpack.c.b16 %v338, %v337
  %v351 = vpack.c.b16 %v340, %v339
  %v352 = vpack.c.b16 %v342, %v341
  %v353 = vpack.c.b16 %v344, %v343
  %v354 = vpack.c.b16 %v346, %v345
  %363 = vmatprep.subr.bf16.mxu0 0
  %364 = vmatpush1.bf16.msra.mxu0 %v169
  %365 = vmatprep.subr.bf16.mxu0 0
  %366 = vmatpush1.bf16.msra.mxu0 %v170
  %367 = vmatprep.subr.bf16.mxu0 0
  %368 = vmatpush1.bf16.msra.mxu0 %v171
  %369 = vmatprep.subr.bf16.mxu0 0
  %370 = vmatpush1.bf16.msra.mxu0 %v172
  %371 = vmatprep.subr.bf16.mxu0 0
  %372 = vmatpush1.bf16.msra.mxu0 %v173
  %373 = vmatprep.subr.bf16.mxu0 0
  %374 = vmatpush1.bf16.msra.mxu0 %v174
  %375 = vmatprep.subr.bf16.mxu0 0
  %376 = vmatpush1.bf16.msra.mxu0 %v175
  %377 = vmatprep.subr.bf16.mxu0 0
  %378 = vmatpush1.bf16.msra.mxu0 %v176
  %379 = vmatprep.subr.bf16.mxu0 0
  %380 = vmatpush1.bf16.msra.mxu0 0
  %381 = vmatprep.subr.bf16.mxu0 0
  %382 = vmatpush1.bf16.msra.mxu0 0
  %383 = vmatprep.subr.bf16.mxu0 0
  %384 = vmatpush1.bf16.msra.mxu0 0
  %385 = vmatprep.subr.bf16.mxu0 0
  %386 = vmatpush1.bf16.msra.mxu0 0
  %387 = vmatprep.subr.bf16.mxu0 0
  %388 = vmatpush1.bf16.msra.mxu0 0
  %389 = vmatprep.subr.bf16.mxu0 0
  %390 = vmatpush1.bf16.msra.mxu0 0
  %391 = vmatprep.subr.bf16.mxu0 0
  %392 = vmatpush1.bf16.msra.mxu0 0
  %393 = vmatprep.subr.bf16.mxu0 0
  %394 = vmatpush1.bf16.msra.mxu0 0
  %395 = vmatprep.mubr.bf16.mxu0 0
  %396 = vmatmul.mubr.bf16.gmra.mrb[0].mxu0 %v347
  %v397 = vpop.f32.mrb[0].mxu0
  %v398 = vadd.f32 0.0, %v397
  %v399 = vpop.f32.mrb[0].mxu0
  %v400 = vpop.f32.mrb[0].mxu0
  %v401 = vadd.f32 0.0, %v400
  %v402 = vpop.f32.mrb[0].mxu0
  %403 = vmatprep.mubr.bf16.mxu0 0
  %404 = vmatmul.mubr.bf16.gmra.mrb[0].mxu0 %v348
  %v405 = vpop.f32.mrb[0].mxu0
  %v406 = vadd.f32 0.0, %v405
  %v407 = vpop.f32.mrb[0].mxu0
  %v408 = vpop.f32.mrb[0].mxu0
  %v409 = vadd.f32 0.0, %v408
  %v410 = vpop.f32.mrb[0].mxu0
  %411 = vmatprep.mubr.bf16.mxu0 0
  %412 = vmatmul.mubr.bf16.gmra.mrb[0].mxu0 %v349
  %v413 = vpop.f32.mrb[0].mxu0
  %v414 = vadd.f32 0.0, %v413
  %v415 = vpop.f32.mrb[0].mxu0
  %v416 = vpop.f32.mrb[0].mxu0
  %v417 = vadd.f32 0.0, %v416
  %v418 = vpop.f32.mrb[0].mxu0
  %419 = vmatprep.mubr.bf16.mxu0 0
  %420 = vmatmul.mubr.bf16.gmra.mrb[0].mxu0 %v350
  %v421 = vpop.f32.mrb[0].mxu0
  %v422 = vadd.f32 0.0, %v421
  %v423 = vpop.f32.mrb[0].mxu0
  %v424 = vpop.f32.mrb[0].mxu0
  %v425 = vadd.f32 0.0, %v424
  %v426 = vpop.f32.mrb[0].mxu0
  %427 = vmatprep.mubr.bf16.mxu0 0
  %428 = vmatmul.mubr.bf16.gmra.mrb[0].mxu0 %v351
  %v429 = vpop.f32.mrb[0].mxu0
  %v430 = vadd.f32 0.0, %v429
  %v431 = vpop.f32.mrb[0].mxu0
  %v432 = vpop.f32.mrb[0].mxu0
  %v433 = vadd.f32 0.0, %v432
  %v434 = vpop.f32.mrb[0].mxu0
  %435 = vmatprep.mubr.bf16.mxu0 0
  %436 = vmatmul.mubr.bf16.gmra.mrb[0].mxu0 %v352
  %v437 = vpop.f32.mrb[0].mxu0
  %v438 = vadd.f32 0.0, %v437
  %v439 = vpop.f32.mrb[0].mxu0
  %v440 = vpop.f32.mrb[0].mxu0
  %v441 = vadd.f32 0.0, %v440
  %v442 = vpop.f32.mrb[0].mxu0
  %443 = vmatprep.mubr.bf16.mxu0 0
  %444 = vmatmul.mubr.bf16.gmra.mrb[0].mxu0 %v353
  %v445 = vpop.f32.mrb[0].mxu0
  %v446 = vadd.f32 0.0, %v445
  %v447 = vpop.f32.mrb[0].mxu0
  %v448 = vpop.f32.mrb[0].mxu0
  %v449 = vadd.f32 0.0, %v448
  %v450 = vpop.f32.mrb[0].mxu0
  %451 = vmatprep.mubr.bf16.mxu0 0
  %452 = vmatmul.mubr.bf16.gmra.mrb[0].mxu0 %v354
  %v453 = vpop.f32.mrb[0].mxu0
  %v454 = vadd.f32 0.0, %v453
  %v455 = vpop.f32.mrb[0].mxu0
  %v456 = vpop.f32.mrb[0].mxu0
  %v457 = vadd.f32 0.0, %v456
  %v458 = vpop.f32.mrb[0].mxu0
  %459 = vdwg.mxu0
  %v460 = vpack.c.bf16 %v401, %v398
  %v461 = vpack.c.bf16 %v409, %v406
  %v462 = vpack.c.bf16 %v417, %v414
  %v463 = vpack.c.bf16 %v425, %v422
  %v464 = vpack.c.bf16 %v433, %v430
  %v465 = vpack.c.bf16 %v441, %v438
  %v466 = vpack.c.bf16 %v449, %v446
  %v467 = vpack.c.bf16 %v457, %v454
  %468 = vst [vmem:[#allocation2 + $0x8] sm:$0xff] %v460
  %469 = vst [vmem:[#allocation2 + $0x20] sm:$0xff] %v461
  %470 = vst [vmem:[#allocation2 + $0x38] sm:$0xff] %v462
  %471 = vst [vmem:[#allocation2 + $0x50] sm:$0xff] %v463
  %472 = vst [vmem:[#allocation2 + $0x68] sm:$0xff] %v464
  %473 = vst [vmem:[#allocation2 + $0x80] sm:$0xff] %v465
  %474 = vst [vmem:[#allocation2 + $0x98] sm:$0xff] %v466
  %475 = vst [vmem:[#allocation2 + $0xb0] sm:$0xff] %v467
  %s476 = scalar_lea.vmem %s1, 128
  %v477 = vld [vmem:[%s476] sm:$0xf]
  %v478 = vld [vmem:[%s476 + $0x4] sm:$0xf]
  %v479 = vld [vmem:[%s476 + $0x8] sm:$0xf]
  %v480 = vld [vmem:[%s476 + $0xc] sm:$0xf]
  %v481 = vld [vmem:[%s476 + $0x10] sm:$0xf]
  %v482 = vld [vmem:[%s476 + $0x14] sm:$0xf]
  %v483 = vld [vmem:[%s476 + $0x18] sm:$0xf]
  %v484 = vld [vmem:[%s476 + $0x1c] sm:$0xf]
  %v485 = vld [vmem:[%s476 + $0x20] sm:$0xf]
  %v486 = vld [vmem:[%s476 + $0x24] sm:$0xf]
  %v487 = vld [vmem:[%s476 + $0x28] sm:$0xf]
  %v488 = vld [vmem:[%s476 + $0x2c] sm:$0xf]
  %v489 = vld [vmem:[%s476 + $0x30] sm:$0xf]
  %v490 = vld [vmem:[%s476 + $0x34] sm:$0xf]
  %v491 = vld [vmem:[%s476 + $0x38] sm:$0xf]
  %v492 = vld [vmem:[%s476 + $0x3c] sm:$0xf]
  %v509 = vunpack.c.l.b16 %v477
  %v510 = vunpack.c.l.b16 %v478
  %v511 = vunpack.c.l.b16 %v479
  %v512 = vunpack.c.l.b16 %v480
  %v513 = vunpack.c.l.b16 %v481
  %v514 = vunpack.c.l.b16 %v482
  %v515 = vunpack.c.l.b16 %v483
  %v516 = vunpack.c.l.b16 %v484
  %v517 = vunpack.c.l.b16 %v485
  %v518 = vunpack.c.l.b16 %v486
  %v519 = vunpack.c.l.b16 %v487
  %v520 = vunpack.c.l.b16 %v488
  %v521 = vunpack.c.l.b16 %v489
  %v522 = vunpack.c.l.b16 %v490
  %v523 = vunpack.c.l.b16 %v491
  %v524 = vunpack.c.l.b16 %v492
  %v525 = vpack.c.b16 %v510, %v509
  %v526 = vpack.c.b16 %v512, %v511
  %v527 = vpack.c.b16 %v514, %v513
  %v528 = vpack.c.b16 %v516, %v515
  %v529 = vpack.c.b16 %v518, %v517
  %v530 = vpack.c.b16 %v520, %v519
  %v531 = vpack.c.b16 %v522, %v521
  %v532 = vpack.c.b16 %v524, %v523
  %541 = vmatprep.subr.bf16.mxu0 0
  %542 = vmatpush1.bf16.msra.mxu0 %v169
  %543 = vmatprep.subr.bf16.mxu0 0
  %544 = vmatpush1.bf16.msra.mxu0 %v170
  %545 = vmatprep.subr.bf16.mxu0 0
  %546 = vmatpush1.bf16.msra.mxu0 %v171
  %547 = vmatprep.subr.bf16.mxu0 0
  %548 = vmatpush1.bf16.msra.mxu0 %v172
  %549 = vmatprep.subr.bf16.mxu0 0
  %550 = vmatpush1.bf16.msra.mxu0 %v173
  %551 = vmatprep.subr.bf16.mxu0 0
  %552 = vmatpush1.bf16.msra.mxu0 %v174
  %553 = vmatprep.subr.bf16.mxu0 0
  %554 = vmatpush1.bf16.msra.mxu0 %v175
  %555 = vmatprep.subr.bf16.mxu0 0
  %556 = vmatpush1.bf16.msra.mxu0 %v176
  %557 = vmatprep.subr.bf16.mxu0 0
  %558 = vmatpush1.bf16.msra.mxu0 0
  %559 = vmatprep.subr.bf16.mxu0 0
  %560 = vmatpush1.bf16.msra.mxu0 0
  %561 = vmatprep.subr.bf16.mxu0 0
  %562 = vmatpush1.bf16.msra.mxu0 0
  %563 = vmatprep.subr.bf16.mxu0 0
  %564 = vmatpush1.bf16.msra.mxu0 0
  %565 = vmatprep.subr.bf16.mxu0 0
  %566 = vmatpush1.bf16.msra.mxu0 0
  %567 = vmatprep.subr.bf16.mxu0 0
  %568 = vmatpush1.bf16.msra.mxu0 0
  %569 = vmatprep.subr.bf16.mxu0 0
  %570 = vmatpush1.bf16.msra.mxu0 0
  %571 = vmatprep.subr.bf16.mxu0 0
  %572 = vmatpush1.bf16.msra.mxu0 0
  %573 = vmatprep.mubr.bf16.mxu0 0
  %574 = vmatmul.mubr.bf16.gmra.mrb[0].mxu0 %v525
  %v575 = vpop.f32.mrb[0].mxu0
  %v576 = vadd.f32 0.0, %v575
  %v577 = vpop.f32.mrb[0].mxu0
  %v578 = vpop.f32.mrb[0].mxu0
  %v579 = vadd.f32 0.0, %v578
  %v580 = vpop.f32.mrb[0].mxu0
  %581 = vmatprep.mubr.bf16.mxu0 0
  %582 = vmatmul.mubr.bf16.gmra.mrb[0].mxu0 %v526
  %v583 = vpop.f32.mrb[0].mxu0
  %v584 = vadd.f32 0.0, %v583
  %v585 = vpop.f32.mrb[0].mxu0
  %v586 = vpop.f32.mrb[0].mxu0
  %v587 = vadd.f32 0.0, %v586
  %v588 = vpop.f32.mrb[0].mxu0
  %589 = vmatprep.mubr.bf16.mxu0 0
  %590 = vmatmul.mubr.bf16.gmra.mrb[0].mxu0 %v527
  %v591 = vpop.f32.mrb[0].mxu0
  %v592 = vadd.f32 0.0, %v591
  %v593 = vpop.f32.mrb[0].mxu0
  %v594 = vpop.f32.mrb[0].mxu0
  %v595 = vadd.f32 0.0, %v594
  %v596 = vpop.f32.mrb[0].mxu0
  %597 = vmatprep.mubr.bf16.mxu0 0
  %598 = vmatmul.mubr.bf16.gmra.mrb[0].mxu0 %v528
  %v599 = vpop.f32.mrb[0].mxu0
  %v600 = vadd.f32 0.0, %v599
  %v601 = vpop.f32.mrb[0].mxu0
  %v602 = vpop.f32.mrb[0].mxu0
  %v603 = vadd.f32 0.0, %v602
  %v604 = vpop.f32.mrb[0].mxu0
  %605 = vmatprep.mubr.bf16.mxu0 0
  %606 = vmatmul.mubr.bf16.gmra.mrb[0].mxu0 %v529
  %v607 = vpop.f32.mrb[0].mxu0
  %v608 = vadd.f32 0.0, %v607
  %v609 = vpop.f32.mrb[0].mxu0
  %v610 = vpop.f32.mrb[0].mxu0
  %v611 = vadd.f32 0.0, %v610
  %v612 = vpop.f32.mrb[0].mxu0
  %613 = vmatprep.mubr.bf16.mxu0 0
  %614 = vmatmul.mubr.bf16.gmra.mrb[0].mxu0 %v530
  %v615 = vpop.f32.mrb[0].mxu0
  %v616 = vadd.f32 0.0, %v615
  %v617 = vpop.f32.mrb[0].mxu0
  %v618 = vpop.f32.mrb[0].mxu0
  %v619 = vadd.f32 0.0, %v618
  %v620 = vpop.f32.mrb[0].mxu0
  %621 = vmatprep.mubr.bf16.mxu0 0
  %622 = vmatmul.mubr.bf16.gmra.mrb[0].mxu0 %v531
  %v623 = vpop.f32.mrb[0].mxu0
  %v624 = vadd.f32 0.0, %v623
  %v625 = vpop.f32.mrb[0].mxu0
  %v626 = vpop.f32.mrb[0].mxu0
  %v627 = vadd.f32 0.0, %v626
  %v628 = vpop.f32.mrb[0].mxu0
  %629 = vmatprep.mubr.bf16.mxu0 0
  %630 = vmatmul.mubr.bf16.gmra.mrb[0].mxu0 %v532
  %v631 = vpop.f32.mrb[0].mxu0
  %v632 = vadd.f32 0.0, %v631
  %v633 = vpop.f32.mrb[0].mxu0
  %v634 = vpop.f32.mrb[0].mxu0
  %v635 = vadd.f32 0.0, %v634
  %v636 = vpop.f32.mrb[0].mxu0
  %637 = vdwg.mxu0
  %v638 = vpack.c.bf16 %v579, %v576
  %v639 = vpack.c.bf16 %v587, %v584
  %v640 = vpack.c.bf16 %v595, %v592
  %v641 = vpack.c.bf16 %v603, %v600
  %v642 = vpack.c.bf16 %v611, %v608
  %v643 = vpack.c.bf16 %v619, %v616
  %v644 = vpack.c.bf16 %v627, %v624
  %v645 = vpack.c.bf16 %v635, %v632
  %646 = vst [vmem:[#allocation2 + $0x10] sm:$0xff] %v638
  %647 = vst [vmem:[#allocation2 + $0x28] sm:$0xff] %v639
  %648 = vst [vmem:[#allocation2 + $0x40] sm:$0xff] %v640
  %649 = vst [vmem:[#allocation2 + $0x58] sm:$0xff] %v641
  %650 = vst [vmem:[#allocation2 + $0x70] sm:$0xff] %v642
  %651 = vst [vmem:[#allocation2 + $0x88] sm:$0xff] %v643
  %652 = vst [vmem:[#allocation2 + $0xa0] sm:$0xff] %v644
  %653 = vst [vmem:[#allocation2 + $0xb8] sm:$0xff] %v645
  %v654 = vld [vmem:[#allocation2] sm:$0xff]
  %v655 = vld [vmem:[#allocation2 + $0x8] sm:$0xff]
  %v656 = vld [vmem:[#allocation2 + $0x10] sm:$0xff]
  %v657 = vld [vmem:[#allocation2 + $0x18] sm:$0xff]
  %v658 = vld [vmem:[#allocation2 + $0x20] sm:$0xff]
  %v659 = vld [vmem:[#allocation2 + $0x28] sm:$0xff]
  %v660 = vld [vmem:[#allocation2 + $0x30] sm:$0xff]
  %v661 = vld [vmem:[#allocation2 + $0x38] sm:$0xff]
  %v662 = vld [vmem:[#allocation2 + $0x40] sm:$0xff]
  %v663 = vld [vmem:[#allocation2 + $0x48] sm:$0xff]
  %v664 = vld [vmem:[#allocation2 + $0x50] sm:$0xff]
  %v665 = vld [vmem:[#allocation2 + $0x58] sm:$0xff]
  %v666 = vld [vmem:[#allocation2 + $0x60] sm:$0xff]
  %v667 = vld [vmem:[#allocation2 + $0x68] sm:$0xff]
  %v668 = vld [vmem:[#allocation2 + $0x70] sm:$0xff]
  %v669 = vld [vmem:[#allocation2 + $0x78] sm:$0xff]
  %v670 = vld [vmem:[#allocation2 + $0x80] sm:$0xff]
  %v671 = vld [vmem:[#allocation2 + $0x88] sm:$0xff]
  %v672 = vld [vmem:[#allocation2 + $0x90] sm:$0xff]
  %v673 = vld [vmem:[#allocation2 + $0x98] sm:$0xff]
  %v674 = vld [vmem:[#allocation2 + $0xa0] sm:$0xff]
  %v675 = vld [vmem:[#allocation2 + $0xa8] sm:$0xff]
  %v676 = vld [vmem:[#allocation2 + $0xb0] sm:$0xff]
  %v677 = vld [vmem:[#allocation2 + $0xb8] sm:$0xff]
  %v678 = vld [vmem:[%s2] sm:$0xff]
  %v679 = vld [vmem:[%s2 + $0x8] sm:$0xff]
  %v680 = vld [vmem:[%s2 + $0x10] sm:$0xff]
  %v681 = vld [vmem:[%s2 + $0x18] sm:$0xff]
  %v682 = vld [vmem:[%s2 + $0x20] sm:$0xff]
  %v683 = vld [vmem:[%s2 + $0x28] sm:$0xff]
  %v684 = vld [vmem:[%s2 + $0x30] sm:$0xff]
  %v685 = vld [vmem:[%s2 + $0x38] sm:$0xff]
  %v686 = vld [vmem:[%s2 + $0x40] sm:$0xff]
  %v687 = vld [vmem:[%s2 + $0x48] sm:$0xff]
  %v688 = vld [vmem:[%s2 + $0x50] sm:$0xff]
  %v689 = vld [vmem:[%s2 + $0x58] sm:$0xff]
  %v690 = vld [vmem:[%s2 + $0x60] sm:$0xff]
  %v691 = vld [vmem:[%s2 + $0x68] sm:$0xff]
  %v692 = vld [vmem:[%s2 + $0x70] sm:$0xff]
  %v693 = vld [vmem:[%s2 + $0x78] sm:$0xff]
  %v694 = vld [vmem:[%s2 + $0x80] sm:$0xff]
  %v695 = vld [vmem:[%s2 + $0x88] sm:$0xff]
  %v696 = vld [vmem:[%s2 + $0x90] sm:$0xff]
  %v697 = vld [vmem:[%s2 + $0x98] sm:$0xff]
  %v698 = vld [vmem:[%s2 + $0xa0] sm:$0xff]
  %v699 = vld [vmem:[%s2 + $0xa8] sm:$0xff]
  %v700 = vld [vmem:[%s2 + $0xb0] sm:$0xff]
  %v701 = vld [vmem:[%s2 + $0xb8] sm:$0xff]
  %v702 = vld [vmem:[%s2 + $0xc0] sm:$0xff]
  %v703 = vld [vmem:[%s2 + $0xc8] sm:$0xff]
  %v704 = vld [vmem:[%s2 + $0xd0] sm:$0xff]
  %v705 = vld [vmem:[%s2 + $0xd8] sm:$0xff]
  %v706 = vld [vmem:[%s2 + $0xe0] sm:$0xff]
  %v707 = vld [vmem:[%s2 + $0xe8] sm:$0xff]
  %v708 = vld [vmem:[%s2 + $0xf0] sm:$0xff]
  %v709 = vld [vmem:[%s2 + $0xf8] sm:$0xff]
  %v710 = vld [vmem:[%s2 + $0x100] sm:$0xff]
  %v711 = vld [vmem:[%s2 + $0x108] sm:$0xff]
  %v712 = vld [vmem:[%s2 + $0x110] sm:$0xff]
  %v713 = vld [vmem:[%s2 + $0x118] sm:$0xff]
  %v714 = vld [vmem:[%s2 + $0x120] sm:$0xff]
  %v715 = vld [vmem:[%s2 + $0x128] sm:$0xff]
  %v716 = vld [vmem:[%s2 + $0x130] sm:$0xff]
  %v717 = vld [vmem:[%s2 + $0x138] sm:$0xff]
  %v718 = vld [vmem:[%s2 + $0x140] sm:$0xff]
  %v719 = vld [vmem:[%s2 + $0x148] sm:$0xff]
  %v720 = vld [vmem:[%s2 + $0x150] sm:$0xff]
  %v721 = vld [vmem:[%s2 + $0x158] sm:$0xff]
  %v722 = vld [vmem:[%s2 + $0x160] sm:$0xff]
  %v723 = vld [vmem:[%s2 + $0x168] sm:$0xff]
  %v724 = vld [vmem:[%s2 + $0x170] sm:$0xff]
  %v725 = vld [vmem:[%s2 + $0x178] sm:$0xff]
  %v726 = vld [vmem:[%s2 + $0x180] sm:$0xff]
  %v727 = vld [vmem:[%s2 + $0x188] sm:$0xff]
  %v728 = vld [vmem:[%s2 + $0x190] sm:$0xff]
  %v729 = vld [vmem:[%s2 + $0x198] sm:$0xff]
  %v730 = vld [vmem:[%s2 + $0x1a0] sm:$0xff]
  %v731 = vld [vmem:[%s2 + $0x1a8] sm:$0xff]
  %v732 = vld [vmem:[%s2 + $0x1b0] sm:$0xff]
  %v733 = vld [vmem:[%s2 + $0x1b8] sm:$0xff]
  %v734 = vld [vmem:[%s2 + $0x1c0] sm:$0xff]
  %v735 = vld [vmem:[%s2 + $0x1c8] sm:$0xff]
  %v736 = vld [vmem:[%s2 + $0x1d0] sm:$0xff]
  %v737 = vld [vmem:[%s2 + $0x1d8] sm:$0xff]
  %v738 = vld [vmem:[%s2 + $0x1e0] sm:$0xff]
  %v739 = vld [vmem:[%s2 + $0x1e8] sm:$0xff]
  %v740 = vld [vmem:[%s2 + $0x1f0] sm:$0xff]
  %v741 = vld [vmem:[%s2 + $0x1f8] sm:$0xff]
  %v742 = vld [vmem:[%s2 + $0x200] sm:$0xff]
  %v743 = vld [vmem:[%s2 + $0x208] sm:$0xff]
  %v744 = vld [vmem:[%s2 + $0x210] sm:$0xff]
  %v745 = vld [vmem:[%s2 + $0x218] sm:$0xff]
  %v746 = vld [vmem:[%s2 + $0x220] sm:$0xff]
  %v747 = vld [vmem:[%s2 + $0x228] sm:$0xff]
  %v748 = vld [vmem:[%s2 + $0x230] sm:$0xff]
  %v749 = vld [vmem:[%s2 + $0x238] sm:$0xff]
  %v750 = vld [vmem:[%s2 + $0x240] sm:$0xff]
  %v751 = vld [vmem:[%s2 + $0x248] sm:$0xff]
  %v752 = vld [vmem:[%s2 + $0x250] sm:$0xff]
  %v753 = vld [vmem:[%s2 + $0x258] sm:$0xff]
  %v754 = vld [vmem:[%s2 + $0x260] sm:$0xff]
  %v755 = vld [vmem:[%s2 + $0x268] sm:$0xff]
  %v756 = vld [vmem:[%s2 + $0x270] sm:$0xff]
  %v757 = vld [vmem:[%s2 + $0x278] sm:$0xff]
  %v758 = vld [vmem:[%s2 + $0x280] sm:$0xff]
  %v759 = vld [vmem:[%s2 + $0x288] sm:$0xff]
  %v760 = vld [vmem:[%s2 + $0x290] sm:$0xff]
  %v761 = vld [vmem:[%s2 + $0x298] sm:$0xff]
  %v762 = vld [vmem:[%s2 + $0x2a0] sm:$0xff]
  %v763 = vld [vmem:[%s2 + $0x2a8] sm:$0xff]
  %v764 = vld [vmem:[%s2 + $0x2b0] sm:$0xff]
  %v765 = vld [vmem:[%s2 + $0x2b8] sm:$0xff]
  %v766 = vld [vmem:[%s2 + $0x2c0] sm:$0xff]
  %v767 = vld [vmem:[%s2 + $0x2c8] sm:$0xff]
  %v768 = vld [vmem:[%s2 + $0x2d0] sm:$0xff]
  %v769 = vld [vmem:[%s2 + $0x2d8] sm:$0xff]
  %v770 = vld [vmem:[%s2 + $0x2e0] sm:$0xff]
  %v771 = vld [vmem:[%s2 + $0x2e8] sm:$0xff]
  %v772 = vld [vmem:[%s2 + $0x2f0] sm:$0xff]
  %v773 = vld [vmem:[%s2 + $0x2f8] sm:$0xff]
  %v870 = vunpack.c.l.b16 %v678
  %v871 = vunpack.c.h.b16 %v678
  %v872 = vunpack.c.l.b16 %v679
  %v873 = vunpack.c.h.b16 %v679
  %v874 = vunpack.c.l.b16 %v680
  %v875 = vunpack.c.h.b16 %v680
  %v876 = vunpack.c.l.b16 %v681
  %v877 = vunpack.c.h.b16 %v681
  %v878 = vunpack.c.l.b16 %v682
  %v879 = vunpack.c.h.b16 %v682
  %v880 = vunpack.c.l.b16 %v683
  %v881 = vunpack.c.h.b16 %v683
  %v882 = vunpack.c.l.b16 %v684
  %v883 = vunpack.c.h.b16 %v684
  %v884 = vunpack.c.l.b16 %v685
  %v885 = vunpack.c.h.b16 %v685
  %v886 = vunpack.c.l.b16 %v686
  %v887 = vunpack.c.h.b16 %v686
  %v888 = vunpack.c.l.b16 %v687
  %v889 = vunpack.c.h.b16 %v687
  %v890 = vunpack.c.l.b16 %v688
  %v891 = vunpack.c.h.b16 %v688
  %v892 = vunpack.c.l.b16 %v689
  %v893 = vunpack.c.h.b16 %v689
  %v894 = vunpack.c.l.b16 %v690
  %v895 = vunpack.c.h.b16 %v690
  %v896 = vunpack.c.l.b16 %v691
  %v897 = vunpack.c.h.b16 %v691
  %v898 = vunpack.c.l.b16 %v692
  %v899 = vunpack.c.h.b16 %v692
  %v900 = vunpack.c.l.b16 %v693
  %v901 = vunpack.c.h.b16 %v693
  %v902 = vunpack.c.l.b16 %v694
  %v903 = vunpack.c.h.b16 %v694
  %v904 = vunpack.c.l.b16 %v695
  %v905 = vunpack.c.h.b16 %v695
  %v906 = vunpack.c.l.b16 %v696
  %v907 = vunpack.c.h.b16 %v696
  %v908 = vunpack.c.l.b16 %v697
  %v909 = vunpack.c.h.b16 %v697
  %v910 = vunpack.c.l.b16 %v698
  %v911 = vunpack.c.h.b16 %v698
  %v912 = vunpack.c.l.b16 %v699
  %v913 = vunpack.c.h.b16 %v699
  %v914 = vunpack.c.l.b16 %v700
  %v915 = vunpack.c.h.b16 %v700
  %v916 = vunpack.c.l.b16 %v701
  %v917 = vunpack.c.h.b16 %v701
  %v918 = vunpack.c.l.b16 %v702
  %v919 = vunpack.c.h.b16 %v702
  %v920 = vunpack.c.l.b16 %v703
  %v921 = vunpack.c.h.b16 %v703
  %v922 = vunpack.c.l.b16 %v704
  %v923 = vunpack.c.h.b16 %v704
  %v924 = vunpack.c.l.b16 %v705
  %v925 = vunpack.c.h.b16 %v705
  %v926 = vunpack.c.l.b16 %v706
  %v927 = vunpack.c.h.b16 %v706
  %v928 = vunpack.c.l.b16 %v707
  %v929 = vunpack.c.h.b16 %v707
  %v930 = vunpack.c.l.b16 %v708
  %v931 = vunpack.c.h.b16 %v708
  %v932 = vunpack.c.l.b16 %v709
  %v933 = vunpack.c.h.b16 %v709
  %v934 = vunpack.c.l.b16 %v710
  %v935 = vunpack.c.h.b16 %v710
  %v936 = vunpack.c.l.b16 %v711
  %v937 = vunpack.c.h.b16 %v711
  %v938 = vunpack.c.l.b16 %v712
  %v939 = vunpack.c.h.b16 %v712
  %v940 = vunpack.c.l.b16 %v713
  %v941 = vunpack.c.h.b16 %v713
  %v942 = vunpack.c.l.b16 %v714
  %v943 = vunpack.c.h.b16 %v714
  %v944 = vunpack.c.l.b16 %v715
  %v945 = vunpack.c.h.b16 %v715
  %v946 = vunpack.c.l.b16 %v716
  %v947 = vunpack.c.h.b16 %v716
  %v948 = vunpack.c.l.b16 %v717
  %v949 = vunpack.c.h.b16 %v717
  %v950 = vunpack.c.l.b16 %v718
  %v951 = vunpack.c.h.b16 %v718
  %v952 = vunpack.c.l.b16 %v719
  %v953 = vunpack.c.h.b16 %v719
  %v954 = vunpack.c.l.b16 %v720
  %v955 = vunpack.c.h.b16 %v720
  %v956 = vunpack.c.l.b16 %v721
  %v957 = vunpack.c.h.b16 %v721
  %v958 = vunpack.c.l.b16 %v722
  %v959 = vunpack.c.h.b16 %v722
  %v960 = vunpack.c.l.b16 %v723
  %v961 = vunpack.c.h.b16 %v723
  %v962 = vunpack.c.l.b16 %v724
  %v963 = vunpack.c.h.b16 %v724
  %v964 = vunpack.c.l.b16 %v725
  %v965 = vunpack.c.h.b16 %v725
  %v966 = vunpack.c.l.b16 %v726
  %v967 = vunpack.c.h.b16 %v726
  %v968 = vunpack.c.l.b16 %v727
  %v969 = vunpack.c.h.b16 %v727
  %v970 = vunpack.c.l.b16 %v728
  %v971 = vunpack.c.h.b16 %v728
  %v972 = vunpack.c.l.b16 %v729
  %v973 = vunpack.c.h.b16 %v729
  %v974 = vunpack.c.l.b16 %v730
  %v975 = vunpack.c.h.b16 %v730
  %v976 = vunpack.c.l.b16 %v731
  %v977 = vunpack.c.h.b16 %v731
  %v978 = vunpack.c.l.b16 %v732
  %v979 = vunpack.c.h.b16 %v732
  %v980 = vunpack.c.l.b16 %v733
  %v981 = vunpack.c.h.b16 %v733
  %v982 = vunpack.c.l.b16 %v734
  %v983 = vunpack.c.h.b16 %v734
  %v984 = vunpack.c.l.b16 %v735
  %v985 = vunpack.c.h.b16 %v735
  %v986 = vunpack.c.l.b16 %v736
  %v987 = vunpack.c.h.b16 %v736
  %v988 = vunpack.c.l.b16 %v737
  %v989 = vunpack.c.h.b16 %v737
  %v990 = vunpack.c.l.b16 %v738
  %v991 = vunpack.c.h.b16 %v738
  %v992 = vunpack.c.l.b16 %v739
  %v993 = vunpack.c.h.b16 %v739
  %v994 = vunpack.c.l.b16 %v740
  %v995 = vunpack.c.h.b16 %v740
  %v996 = vunpack.c.l.b16 %v741
  %v997 = vunpack.c.h.b16 %v741
  %v998 = vunpack.c.l.b16 %v742
  %v999 = vunpack.c.h.b16 %v742
  %v1000 = vunpack.c.l.b16 %v743
  %v1001 = vunpack.c.h.b16 %v743
  %v1002 = vunpack.c.l.b16 %v744
  %v1003 = vunpack.c.h.b16 %v744
  %v1004 = vunpack.c.l.b16 %v745
  %v1005 = vunpack.c.h.b16 %v745
  %v1006 = vunpack.c.l.b16 %v746
  %v1007 = vunpack.c.h.b16 %v746
  %v1008 = vunpack.c.l.b16 %v747
  %v1009 = vunpack.c.h.b16 %v747
  %v1010 = vunpack.c.l.b16 %v748
  %v1011 = vunpack.c.h.b16 %v748
  %v1012 = vunpack.c.l.b16 %v749
  %v1013 = vunpack.c.h.b16 %v749
  %v1014 = vunpack.c.l.b16 %v750
  %v1015 = vunpack.c.h.b16 %v750
  %v1016 = vunpack.c.l.b16 %v751
  %v1017 = vunpack.c.h.b16 %v751
  %v1018 = vunpack.c.l.b16 %v752
  %v1019 = vunpack.c.h.b16 %v752
  %v1020 = vunpack.c.l.b16 %v753
  %v1021 = vunpack.c.h.b16 %v753
  %v1022 = vunpack.c.l.b16 %v754
  %v1023 = vunpack.c.h.b16 %v754
  %v1024 = vunpack.c.l.b16 %v755
  %v1025 = vunpack.c.h.b16 %v755
  %v1026 = vunpack.c.l.b16 %v756
  %v1027 = vunpack.c.h.b16 %v756
  %v1028 = vunpack.c.l.b16 %v757
  %v1029 = vunpack.c.h.b16 %v757
  %v1030 = vunpack.c.l.b16 %v758
  %v1031 = vunpack.c.h.b16 %v758
  %v1032 = vunpack.c.l.b16 %v759
  %v1033 = vunpack.c.h.b16 %v759
  %v1034 = vunpack.c.l.b16 %v760
  %v1035 = vunpack.c.h.b16 %v760
  %v1036 = vunpack.c.l.b16 %v761
  %v1037 = vunpack.c.h.b16 %v761
  %v1038 = vunpack.c.l.b16 %v762
  %v1039 = vunpack.c.h.b16 %v762
  %v1040 = vunpack.c.l.b16 %v763
  %v1041 = vunpack.c.h.b16 %v763
  %v1042 = vunpack.c.l.b16 %v764
  %v1043 = vunpack.c.h.b16 %v764
  %v1044 = vunpack.c.l.b16 %v765
  %v1045 = vunpack.c.h.b16 %v765
  %v1046 = vunpack.c.l.b16 %v766
  %v1047 = vunpack.c.h.b16 %v766
  %v1048 = vunpack.c.l.b16 %v767
  %v1049 = vunpack.c.h.b16 %v767
  %v1050 = vunpack.c.l.b16 %v768
  %v1051 = vunpack.c.h.b16 %v768
  %v1052 = vunpack.c.l.b16 %v769
  %v1053 = vunpack.c.h.b16 %v769
  %v1054 = vunpack.c.l.b16 %v770
  %v1055 = vunpack.c.h.b16 %v770
  %v1056 = vunpack.c.l.b16 %v771
  %v1057 = vunpack.c.h.b16 %v771
  %v1058 = vunpack.c.l.b16 %v772
  %v1059 = vunpack.c.h.b16 %v772
  %v1060 = vunpack.c.l.b16 %v773
  %v1061 = vunpack.c.h.b16 %v773
  %v1062 = vpack.c.b16 %v874, %v870
  %v1063 = vpack.c.b16 %v875, %v871
  %v1064 = vpack.c.b16 %v876, %v872
  %v1065 = vpack.c.b16 %v877, %v873
  %v1066 = vpack.c.b16 %v882, %v878
  %v1067 = vpack.c.b16 %v883, %v879
  %v1068 = vpack.c.b16 %v884, %v880
  %v1069 = vpack.c.b16 %v885, %v881
  %v1070 = vpack.c.b16 %v890, %v886
  %v1071 = vpack.c.b16 %v891, %v887
  %v1072 = vpack.c.b16 %v892, %v888
  %v1073 = vpack.c.b16 %v893, %v889
  %v1074 = vpack.c.b16 %v898, %v894
  %v1075 = vpack.c.b16 %v899, %v895
  %v1076 = vpack.c.b16 %v900, %v896
  %v1077 = vpack.c.b16 %v901, %v897
  %v1078 = vpack.c.b16 %v906, %v902
  %v1079 = vpack.c.b16 %v907, %v903
  %v1080 = vpack.c.b16 %v908, %v904
  %v1081 = vpack.c.b16 %v909, %v905
  %v1082 = vpack.c.b16 %v914, %v910
  %v1083 = vpack.c.b16 %v915, %v911
  %v1084 = vpack.c.b16 %v916, %v912
  %v1085 = vpack.c.b16 %v917, %v913
  %v1086 = vpack.c.b16 %v922, %v918
  %v1087 = vpack.c.b16 %v923, %v919
  %v1088 = vpack.c.b16 %v924, %v920
  %v1089 = vpack.c.b16 %v925, %v921
  %v1090 = vpack.c.b16 %v930, %v926
  %v1091 = vpack.c.b16 %v931, %v927
  %v1092 = vpack.c.b16 %v932, %v928
  %v1093 = vpack.c.b16 %v933, %v929
  %v1094 = vpack.c.b16 %v938, %v934
  %v1095 = vpack.c.b16 %v939, %v935
  %v1096 = vpack.c.b16 %v940, %v936
  %v1097 = vpack.c.b16 %v941, %v937
  %v1098 = vpack.c.b16 %v946, %v942
  %v1099 = vpack.c.b16 %v947, %v943
  %v1100 = vpack.c.b16 %v948, %v944
  %v1101 = vpack.c.b16 %v949, %v945
  %v1102 = vpack.c.b16 %v954, %v950
  %v1103 = vpack.c.b16 %v955, %v951
  %v1104 = vpack.c.b16 %v956, %v952
  %v1105 = vpack.c.b16 %v957, %v953
  %v1106 = vpack.c.b16 %v962, %v958
  %v1107 = vpack.c.b16 %v963, %v959
  %v1108 = vpack.c.b16 %v964, %v960
  %v1109 = vpack.c.b16 %v965, %v961
  %v1110 = vpack.c.b16 %v970, %v966
  %v1111 = vpack.c.b16 %v971, %v967
  %v1112 = vpack.c.b16 %v972, %v968
  %v1113 = vpack.c.b16 %v973, %v969
  %v1114 = vpack.c.b16 %v978, %v974
  %v1115 = vpack.c.b16 %v979, %v975
  %v1116 = vpack.c.b16 %v980, %v976
  %v1117 = vpack.c.b16 %v981, %v977
  %v1118 = vpack.c.b16 %v986, %v982
  %v1119 = vpack.c.b16 %v987, %v983
  %v1120 = vpack.c.b16 %v988, %v984
  %v1121 = vpack.c.b16 %v989, %v985
  %v1122 = vpack.c.b16 %v994, %v990
  %v1123 = vpack.c.b16 %v995, %v991
  %v1124 = vpack.c.b16 %v996, %v992
  %v1125 = vpack.c.b16 %v997, %v993
  %v1126 = vpack.c.b16 %v1002, %v998
  %v1127 = vpack.c.b16 %v1003, %v999
  %v1128 = vpack.c.b16 %v1004, %v1000
  %v1129 = vpack.c.b16 %v1005, %v1001
  %v1130 = vpack.c.b16 %v1010, %v1006
  %v1131 = vpack.c.b16 %v1011, %v1007
  %v1132 = vpack.c.b16 %v1012, %v1008
  %v1133 = vpack.c.b16 %v1013, %v1009
  %v1134 = vpack.c.b16 %v1018, %v1014
  %v1135 = vpack.c.b16 %v1019, %v1015
  %v1136 = vpack.c.b16 %v1020, %v1016
  %v1137 = vpack.c.b16 %v1021, %v1017
  %v1138 = vpack.c.b16 %v1026, %v1022
  %v1139 = vpack.c.b16 %v1027, %v1023
  %v1140 = vpack.c.b16 %v1028, %v1024
  %v1141 = vpack.c.b16 %v1029, %v1025
  %v1142 = vpack.c.b16 %v1034, %v1030
  %v1143 = vpack.c.b16 %v1035, %v1031
  %v1144 = vpack.c.b16 %v1036, %v1032
  %v1145 = vpack.c.b16 %v1037, %v1033
  %v1146 = vpack.c.b16 %v1042, %v1038
  %v1147 = vpack.c.b16 %v1043, %v1039
  %v1148 = vpack.c.b16 %v1044, %v1040
  %v1149 = vpack.c.b16 %v1045, %v1041
  %v1150 = vpack.c.b16 %v1050, %v1046
  %v1151 = vpack.c.b16 %v1051, %v1047
  %v1152 = vpack.c.b16 %v1052, %v1048
  %v1153 = vpack.c.b16 %v1053, %v1049
  %v1154 = vpack.c.b16 %v1058, %v1054
  %v1155 = vpack.c.b16 %v1059, %v1055
  %v1156 = vpack.c.b16 %v1060, %v1056
  %v1157 = vpack.c.b16 %v1061, %v1057
  %1254 = vmatprep.subr.bf16.mxu0 %v1063
  %1255 = vmatpush1.bf16.msra.mxu0 %v1062
  %1256 = vmatprep.subr.bf16.mxu0 %v1067
  %1257 = vmatpush1.bf16.msra.mxu0 %v1066
  %1258 = vmatprep.subr.bf16.mxu0 %v1071
  %1259 = vmatpush1.bf16.msra.mxu0 %v1070
  %1260 = vmatprep.subr.bf16.mxu0 %v1075
  %1261 = vmatpush1.bf16.msra.mxu0 %v1074
  %1262 = vmatprep.subr.bf16.mxu0 %v1079
  %1263 = vmatpush1.bf16.msra.mxu0 %v1078
  %1264 = vmatprep.subr.bf16.mxu0 %v1083
  %1265 = vmatpush1.bf16.msra.mxu0 %v1082
  %1266 = vmatprep.subr.bf16.mxu0 %v1087
  %1267 = vmatpush1.bf16.msra.mxu0 %v1086
  %1268 = vmatprep.subr.bf16.mxu0 %v1091
  %1269 = vmatpush1.bf16.msra.mxu0 %v1090
  %1270 = vmatprep.subr.bf16.mxu0 %v1095
  %1271 = vmatpush1.bf16.msra.mxu0 %v1094
  %1272 = vmatprep.subr.bf16.mxu0 %v1099
  %1273 = vmatpush1.bf16.msra.mxu0 %v1098
  %1274 = vmatprep.subr.bf16.mxu0 %v1103
  %1275 = vmatpush1.bf16.msra.mxu0 %v1102
  %1276 = vmatprep.subr.bf16.mxu0 %v1107
  %1277 = vmatpush1.bf16.msra.mxu0 %v1106
  %1278 = vmatprep.subr.bf16.mxu0 %v1111
  %1279 = vmatpush1.bf16.msra.mxu0 %v1110
  %1280 = vmatprep.subr.bf16.mxu0 %v1115
  %1281 = vmatpush1.bf16.msra.mxu0 %v1114
  %1282 = vmatprep.subr.bf16.mxu0 %v1119
  %1283 = vmatpush1.bf16.msra.mxu0 %v1118
  %1284 = vmatprep.subr.bf16.mxu0 %v1123
  %1285 = vmatpush1.bf16.msra.mxu0 %v1122
  %1286 = vmatprep.mubr.bf16.mxu0 %v655
  %1287 = vmatmul.mubr.bf16.gmra.mrb[0].mxu0 %v654
  %v1288 = vpop.f32.mrb[0].mxu0
  %v1289 = vadd.f32 0.0, %v1288
  %v1290 = vpop.f32.mrb[0].mxu0
  %v1291 = vadd.f32 0.0, %v1290
  %v1292 = vpop.f32.mrb[0].mxu0
  %v1293 = vadd.f32 0.0, %v1292
  %v1294 = vpop.f32.mrb[0].mxu0
  %v1295 = vadd.f32 0.0, %v1294
  %1296 = vmatprep.mubr.bf16.mxu0 %v658
  %1297 = vmatmul.mubr.bf16.gmra.mrb[0].mxu0 %v657
  %v1298 = vpop.f32.mrb[0].mxu0
  %v1299 = vadd.f32 0.0, %v1298
  %v1300 = vpop.f32.mrb[0].mxu0
  %v1301 = vadd.f32 0.0, %v1300
  %v1302 = vpop.f32.mrb[0].mxu0
  %v1303 = vadd.f32 0.0, %v1302
  %v1304 = vpop.f32.mrb[0].mxu0
  %v1305 = vadd.f32 0.0, %v1304
  %1306 = vmatprep.mubr.bf16.mxu0 %v661
  %1307 = vmatmul.mubr.bf16.gmra.mrb[0].mxu0 %v660
  %v1308 = vpop.f32.mrb[0].mxu0
  %v1309 = vadd.f32 0.0, %v1308
  %v1310 = vpop.f32.mrb[0].mxu0
  %v1311 = vadd.f32 0.0, %v1310
  %v1312 = vpop.f32.mrb[0].mxu0
  %v1313 = vadd.f32 0.0, %v1312
  %v1314 = vpop.f32.mrb[0].mxu0
  %v1315 = vadd.f32 0.0, %v1314
  %1316 = vmatprep.mubr.bf16.mxu0 %v664
  %1317 = vmatmul.mubr.bf16.gmra.mrb[0].mxu0 %v663
  %v1318 = vpop.f32.mrb[0].mxu0
  %v1319 = vadd.f32 0.0, %v1318
  %v1320 = vpop.f32.mrb[0].mxu0
  %v1321 = vadd.f32 0.0, %v1320
  %v1322 = vpop.f32.mrb[0].mxu0
  %v1323 = vadd.f32 0.0, %v1322
  %v1324 = vpop.f32.mrb[0].mxu0
  %v1325 = vadd.f32 0.0, %v1324
  %1326 = vmatprep.mubr.bf16.mxu0 %v667
  %1327 = vmatmul.mubr.bf16.gmra.mrb[0].mxu0 %v666
  %v1328 = vpop.f32.mrb[0].mxu0
  %v1329 = vadd.f32 0.0, %v1328
  %v1330 = vpop.f32.mrb[0].mxu0
  %v1331 = vadd.f32 0.0, %v1330
  %v1332 = vpop.f32.mrb[0].mxu0
  %v1333 = vadd.f32 0.0, %v1332
  %v1334 = vpop.f32.mrb[0].mxu0
  %v1335 = vadd.f32 0.0, %v1334
  %1336 = vmatprep.mubr.bf16.mxu0 %v670
  %1337 = vmatmul.mubr.bf16.gmra.mrb[0].mxu0 %v669
  %v1338 = vpop.f32.mrb[0].mxu0
  %v1339 = vadd.f32 0.0, %v1338
  %v1340 = vpop.f32.mrb[0].mxu0
  %v1341 = vadd.f32 0.0, %v1340
  %v1342 = vpop.f32.mrb[0].mxu0
  %v1343 = vadd.f32 0.0, %v1342
  %v1344 = vpop.f32.mrb[0].mxu0
  %v1345 = vadd.f32 0.0, %v1344
  %1346 = vmatprep.mubr.bf16.mxu0 %v673
  %1347 = vmatmul.mubr.bf16.gmra.mrb[0].mxu0 %v672
  %v1348 = vpop.f32.mrb[0].mxu0
  %v1349 = vadd.f32 0.0, %v1348
  %v1350 = vpop.f32.mrb[0].mxu0
  %v1351 = vadd.f32 0.0, %v1350
  %v1352 = vpop.f32.mrb[0].mxu0
  %v1353 = vadd.f32 0.0, %v1352
  %v1354 = vpop.f32.mrb[0].mxu0
  %v1355 = vadd.f32 0.0, %v1354
  %1356 = vmatprep.mubr.bf16.mxu0 %v676
  %1357 = vmatmul.mubr.bf16.gmra.mrb[0].mxu0 %v675
  %v1358 = vpop.f32.mrb[0].mxu0
  %v1359 = vadd.f32 0.0, %v1358
  %v1360 = vpop.f32.mrb[0].mxu0
  %v1361 = vadd.f32 0.0, %v1360
  %v1362 = vpop.f32.mrb[0].mxu0
  %v1363 = vadd.f32 0.0, %v1362
  %v1364 = vpop.f32.mrb[0].mxu0
  %v1365 = vadd.f32 0.0, %v1364
  %1366 = vdwg.mxu0
  %1367 = vmatprep.subr.bf16.mxu0 %v1127
  %1368 = vmatpush1.bf16.msra.mxu0 %v1126
  %1369 = vmatprep.subr.bf16.mxu0 %v1131
  %1370 = vmatpush1.bf16.msra.mxu0 %v1130
  %1371 = vmatprep.subr.bf16.mxu0 %v1135
  %1372 = vmatpush1.bf16.msra.mxu0 %v1134
  %1373 = vmatprep.subr.bf16.mxu0 %v1139
  %1374 = vmatpush1.bf16.msra.mxu0 %v1138
  %1375 = vmatprep.subr.bf16.mxu0 %v1143
  %1376 = vmatpush1.bf16.msra.mxu0 %v1142
  %1377 = vmatprep.subr.bf16.mxu0 %v1147
  %1378 = vmatpush1.bf16.msra.mxu0 %v1146
  %1379 = vmatprep.subr.bf16.mxu0 %v1151
  %1380 = vmatpush1.bf16.msra.mxu0 %v1150
  %1381 = vmatprep.subr.bf16.mxu0 %v1155
  %1382 = vmatpush1.bf16.msra.mxu0 %v1154
  %1383 = vmatprep.subr.bf16.mxu0 0
  %1384 = vmatpush1.bf16.msra.mxu0 0
  %1385 = vmatprep.subr.bf16.mxu0 0
  %1386 = vmatpush1.bf16.msra.mxu0 0
  %1387 = vmatprep.subr.bf16.mxu0 0
  %1388 = vmatpush1.bf16.msra.mxu0 0
  %1389 = vmatprep.subr.bf16.mxu0 0
  %1390 = vmatpush1.bf16.msra.mxu0 0
  %1391 = vmatprep.subr.bf16.mxu0 0
  %1392 = vmatpush1.bf16.msra.mxu0 0
  %1393 = vmatprep.subr.bf16.mxu0 0
  %1394 = vmatpush1.bf16.msra.mxu0 0
  %1395 = vmatprep.subr.bf16.mxu0 0
  %1396 = vmatpush1.bf16.msra.mxu0 0
  %1397 = vmatprep.subr.bf16.mxu0 0
  %1398 = vmatpush1.bf16.msra.mxu0 0
  %1399 = vmatprep.mubr.bf16.mxu0 0
  %1400 = vmatmul.mubr.bf16.gmra.mrb[0].mxu0 %v656
  %v1401 = vpop.f32.mrb[0].mxu0
  %v1402 = vadd.f32 %v1289, %v1401
  %v1403 = vpop.f32.mrb[0].mxu0
  %v1404 = vadd.f32 %v1291, %v1403
  %v1405 = vpop.f32.mrb[0].mxu0
  %v1406 = vadd.f32 %v1293, %v1405
  %v1407 = vpop.f32.mrb[0].mxu0
  %v1408 = vadd.f32 %v1295, %v1407
  %1409 = vmatprep.mubr.bf16.mxu0 0
  %1410 = vmatmul.mubr.bf16.gmra.mrb[0].mxu0 %v659
  %v1411 = vpop.f32.mrb[0].mxu0
  %v1412 = vadd.f32 %v1299, %v1411
  %v1413 = vpop.f32.mrb[0].mxu0
  %v1414 = vadd.f32 %v1301, %v1413
  %v1415 = vpop.f32.mrb[0].mxu0
  %v1416 = vadd.f32 %v1303, %v1415
  %v1417 = vpop.f32.mrb[0].mxu0
  %v1418 = vadd.f32 %v1305, %v1417
  %1419 = vmatprep.mubr.bf16.mxu0 0
  %1420 = vmatmul.mubr.bf16.gmra.mrb[0].mxu0 %v662
  %v1421 = vpop.f32.mrb[0].mxu0
  %v1422 = vadd.f32 %v1309, %v1421
  %v1423 = vpop.f32.mrb[0].mxu0
  %v1424 = vadd.f32 %v1311, %v1423
  %v1425 = vpop.f32.mrb[0].mxu0
  %v1426 = vadd.f32 %v1313, %v1425
  %v1427 = vpop.f32.mrb[0].mxu0
  %v1428 = vadd.f32 %v1315, %v1427
  %1429 = vmatprep.mubr.bf16.mxu0 0
  %1430 = vmatmul.mubr.bf16.gmra.mrb[0].mxu0 %v665
  %v1431 = vpop.f32.mrb[0].mxu0
  %v1432 = vadd.f32 %v1319, %v1431
  %v1433 = vpop.f32.mrb[0].mxu0
  %v1434 = vadd.f32 %v1321, %v1433
  %v1435 = vpop.f32.mrb[0].mxu0
  %v1436 = vadd.f32 %v1323, %v1435
  %v1437 = vpop.f32.mrb[0].mxu0
  %v1438 = vadd.f32 %v1325, %v1437
  %1439 = vmatprep.mubr.bf16.mxu0 0
  %1440 = vmatmul.mubr.bf16.gmra.mrb[0].mxu0 %v668
  %v1441 = vpop.f32.mrb[0].mxu0
  %v1442 = vadd.f32 %v1329, %v1441
  %v1443 = vpop.f32.mrb[0].mxu0
  %v1444 = vadd.f32 %v1331, %v1443
  %v1445 = vpop.f32.mrb[0].mxu0
  %v1446 = vadd.f32 %v1333, %v1445
  %v1447 = vpop.f32.mrb[0].mxu0
  %v1448 = vadd.f32 %v1335, %v1447
  %1449 = vmatprep.mubr.bf16.mxu0 0
  %1450 = vmatmul.mubr.bf16.gmra.mrb[0].mxu0 %v671
  %v1451 = vpop.f32.mrb[0].mxu0
  %v1452 = vadd.f32 %v1339, %v1451
  %v1453 = vpop.f32.mrb[0].mxu0
  %v1454 = vadd.f32 %v1341, %v1453
  %v1455 = vpop.f32.mrb[0].mxu0
  %v1456 = vadd.f32 %v1343, %v1455
  %v1457 = vpop.f32.mrb[0].mxu0
  %v1458 = vadd.f32 %v1345, %v1457
  %1459 = vmatprep.mubr.bf16.mxu0 0
  %1460 = vmatmul.mubr.bf16.gmra.mrb[0].mxu0 %v674
  %v1461 = vpop.f32.mrb[0].mxu0
  %v1462 = vadd.f32 %v1349, %v1461
  %v1463 = vpop.f32.mrb[0].mxu0
  %v1464 = vadd.f32 %v1351, %v1463
  %v1465 = vpop.f32.mrb[0].mxu0
  %v1466 = vadd.f32 %v1353, %v1465
  %v1467 = vpop.f32.mrb[0].mxu0
  %v1468 = vadd.f32 %v1355, %v1467
  %1469 = vmatprep.mubr.bf16.mxu0 0
  %1470 = vmatmul.mubr.bf16.gmra.mrb[0].mxu0 %v677
  %v1471 = vpop.f32.mrb[0].mxu0
  %v1472 = vadd.f32 %v1359, %v1471
  %v1473 = vpop.f32.mrb[0].mxu0
  %v1474 = vadd.f32 %v1361, %v1473
  %v1475 = vpop.f32.mrb[0].mxu0
  %v1476 = vadd.f32 %v1363, %v1475
  %v1477 = vpop.f32.mrb[0].mxu0
  %v1478 = vadd.f32 %v1365, %v1477
  %1479 = vdwg.mxu0
  %1480 = vmatprep.subr.bf16.mxu0 %v1065
  %1481 = vmatpush1.bf16.msra.mxu0 %v1064
  %1482 = vmatprep.subr.bf16.mxu0 %v1069
  %1483 = vmatpush1.bf16.msra.mxu0 %v1068
  %1484 = vmatprep.subr.bf16.mxu0 %v1073
  %1485 = vmatpush1.bf16.msra.mxu0 %v1072
  %1486 = vmatprep.subr.bf16.mxu0 %v1077
  %1487 = vmatpush1.bf16.msra.mxu0 %v1076
  %1488 = vmatprep.subr.bf16.mxu0 %v1081
  %1489 = vmatpush1.bf16.msra.mxu0 %v1080
  %1490 = vmatprep.subr.bf16.mxu0 %v1085
  %1491 = vmatpush1.bf16.msra.mxu0 %v1084
  %1492 = vmatprep.subr.bf16.mxu0 %v1089
  %1493 = vmatpush1.bf16.msra.mxu0 %v1088
  %1494 = vmatprep.subr.bf16.mxu0 %v1093
  %1495 = vmatpush1.bf16.msra.mxu0 %v1092
  %1496 = vmatprep.subr.bf16.mxu0 %v1097
  %1497 = vmatpush1.bf16.msra.mxu0 %v1096
  %1498 = vmatprep.subr.bf16.mxu0 %v1101
  %1499 = vmatpush1.bf16.msra.mxu0 %v1100
  %1500 = vmatprep.subr.bf16.mxu0 %v1105
  %1501 = vmatpush1.bf16.msra.mxu0 %v1104
  %1502 = vmatprep.subr.bf16.mxu0 %v1109
  %1503 = vmatpush1.bf16.msra.mxu0 %v1108
  %1504 = vmatprep.subr.bf16.mxu0 %v1113
  %1505 = vmatpush1.bf16.msra.mxu0 %v1112
  %1506 = vmatprep.subr.bf16.mxu0 %v1117
  %1507 = vmatpush1.bf16.msra.mxu0 %v1116
  %1508 = vmatprep.subr.bf16.mxu0 %v1121
  %1509 = vmatpush1.bf16.msra.mxu0 %v1120
  %1510 = vmatprep.subr.bf16.mxu0 %v1125
  %1511 = vmatpush1.bf16.msra.mxu0 %v1124
  %1512 = vmatprep.mubr.bf16.mxu0 %v655
  %1513 = vmatmul.mubr.bf16.gmra.mrb[0].mxu0 %v654
  %v1514 = vpop.f32.mrb[0].mxu0
  %v1515 = vadd.f32 0.0, %v1514
  %v1516 = vpop.f32.mrb[0].mxu0
  %v1517 = vadd.f32 0.0, %v1516
  %v1518 = vpop.f32.mrb[0].mxu0
  %v1519 = vadd.f32 0.0, %v1518
  %v1520 = vpop.f32.mrb[0].mxu0
  %v1521 = vadd.f32 0.0, %v1520
  %1522 = vmatprep.mubr.bf16.mxu0 %v658
  %1523 = vmatmul.mubr.bf16.gmra.mrb[0].mxu0 %v657
  %v1524 = vpop.f32.mrb[0].mxu0
  %v1525 = vadd.f32 0.0, %v1524
  %v1526 = vpop.f32.mrb[0].mxu0
  %v1527 = vadd.f32 0.0, %v1526
  %v1528 = vpop.f32.mrb[0].mxu0
  %v1529 = vadd.f32 0.0, %v1528
  %v1530 = vpop.f32.mrb[0].mxu0
  %v1531 = vadd.f32 0.0, %v1530
  %1532 = vmatprep.mubr.bf16.mxu0 %v661
  %1533 = vmatmul.mubr.bf16.gmra.mrb[0].mxu0 %v660
  %v1534 = vpop.f32.mrb[0].mxu0
  %v1535 = vadd.f32 0.0, %v1534
  %v1536 = vpop.f32.mrb[0].mxu0
  %v1537 = vadd.f32 0.0, %v1536
  %v1538 = vpop.f32.mrb[0].mxu0
  %v1539 = vadd.f32 0.0, %v1538
  %v1540 = vpop.f32.mrb[0].mxu0
  %v1541 = vadd.f32 0.0, %v1540
  %1542 = vmatprep.mubr.bf16.mxu0 %v664
  %1543 = vmatmul.mubr.bf16.gmra.mrb[0].mxu0 %v663
  %v1544 = vpop.f32.mrb[0].mxu0
  %v1545 = vadd.f32 0.0, %v1544
  %v1546 = vpop.f32.mrb[0].mxu0
  %v1547 = vadd.f32 0.0, %v1546
  %v1548 = vpop.f32.mrb[0].mxu0
  %v1549 = vadd.f32 0.0, %v1548
  %v1550 = vpop.f32.mrb[0].mxu0
  %v1551 = vadd.f32 0.0, %v1550
  %1552 = vmatprep.mubr.bf16.mxu0 %v667
  %1553 = vmatmul.mubr.bf16.gmra.mrb[0].mxu0 %v666
  %v1554 = vpop.f32.mrb[0].mxu0
  %v1555 = vadd.f32 0.0, %v1554
  %v1556 = vpop.f32.mrb[0].mxu0
  %v1557 = vadd.f32 0.0, %v1556
  %v1558 = vpop.f32.mrb[0].mxu0
  %v1559 = vadd.f32 0.0, %v1558
  %v1560 = vpop.f32.mrb[0].mxu0
  %v1561 = vadd.f32 0.0, %v1560
  %1562 = vmatprep.mubr.bf16.mxu0 %v670
  %1563 = vmatmul.mubr.bf16.gmra.mrb[0].mxu0 %v669
  %v1564 = vpop.f32.mrb[0].mxu0
  %v1565 = vadd.f32 0.0, %v1564
  %v1566 = vpop.f32.mrb[0].mxu0
  %v1567 = vadd.f32 0.0, %v1566
  %v1568 = vpop.f32.mrb[0].mxu0
  %v1569 = vadd.f32 0.0, %v1568
  %v1570 = vpop.f32.mrb[0].mxu0
  %v1571 = vadd.f32 0.0, %v1570
  %1572 = vmatprep.mubr.bf16.mxu0 %v673
  %1573 = vmatmul.mubr.bf16.gmra.mrb[0].mxu0 %v672
  %v1574 = vpop.f32.mrb[0].mxu0
  %v1575 = vadd.f32 0.0, %v1574
  %v1576 = vpop.f32.mrb[0].mxu0
  %v1577 = vadd.f32 0.0, %v1576
  %v1578 = vpop.f32.mrb[0].mxu0
  %v1579 = vadd.f32 0.0, %v1578
  %v1580 = vpop.f32.mrb[0].mxu0
  %v1581 = vadd.f32 0.0, %v1580
  %1582 = vmatprep.mubr.bf16.mxu0 %v676
  %1583 = vmatmul.mubr.bf16.gmra.mrb[0].mxu0 %v675
  %v1584 = vpop.f32.mrb[0].mxu0
  %v1585 = vadd.f32 0.0, %v1584
  %v1586 = vpop.f32.mrb[0].mxu0
  %v1587 = vadd.f32 0.0, %v1586
  %v1588 = vpop.f32.mrb[0].mxu0
  %v1589 = vadd.f32 0.0, %v1588
  %v1590 = vpop.f32.mrb[0].mxu0
  %v1591 = vadd.f32 0.0, %v1590
  %1592 = vdwg.mxu0
  %1593 = vmatprep.subr.bf16.mxu0 %v1129
  %1594 = vmatpush1.bf16.msra.mxu0 %v1128
  %1595 = vmatprep.subr.bf16.mxu0 %v1133
  %1596 = vmatpush1.bf16.msra.mxu0 %v1132
  %1597 = vmatprep.subr.bf16.mxu0 %v1137
  %1598 = vmatpush1.bf16.msra.mxu0 %v1136
  %1599 = vmatprep.subr.bf16.mxu0 %v1141
  %1600 = vmatpush1.bf16.msra.mxu0 %v1140
  %1601 = vmatprep.subr.bf16.mxu0 %v1145
  %1602 = vmatpush1.bf16.msra.mxu0 %v1144
  %1603 = vmatprep.subr.bf16.mxu0 %v1149
  %1604 = vmatpush1.bf16.msra.mxu0 %v1148
  %1605 = vmatprep.subr.bf16.mxu0 %v1153
  %1606 = vmatpush1.bf16.msra.mxu0 %v1152
  %1607 = vmatprep.subr.bf16.mxu0 %v1157
  %1608 = vmatpush1.bf16.msra.mxu0 %v1156
  %1609 = vmatprep.subr.bf16.mxu0 0
  %1610 = vmatpush1.bf16.msra.mxu0 0
  %1611 = vmatprep.subr.bf16.mxu0 0
  %1612 = vmatpush1.bf16.msra.mxu0 0
  %1613 = vmatprep.subr.bf16.mxu0 0
  %1614 = vmatpush1.bf16.msra.mxu0 0
  %1615 = vmatprep.subr.bf16.mxu0 0
  %1616 = vmatpush1.bf16.msra.mxu0 0
  %1617 = vmatprep.subr.bf16.mxu0 0
  %1618 = vmatpush1.bf16.msra.mxu0 0
  %1619 = vmatprep.subr.bf16.mxu0 0
  %1620 = vmatpush1.bf16.msra.mxu0 0
  %1621 = vmatprep.subr.bf16.mxu0 0
  %1622 = vmatpush1.bf16.msra.mxu0 0
  %1623 = vmatprep.subr.bf16.mxu0 0
  %1624 = vmatpush1.bf16.msra.mxu0 0
  %1625 = vmatprep.mubr.bf16.mxu0 0
  %1626 = vmatmul.mubr.bf16.gmra.mrb[0].mxu0 %v656
  %v1627 = vpop.f32.mrb[0].mxu0
  %v1628 = vadd.f32 %v1515, %v1627
  %v1629 = vpop.f32.mrb[0].mxu0
  %v1630 = vadd.f32 %v1517, %v1629
  %v1631 = vpop.f32.mrb[0].mxu0
  %v1632 = vadd.f32 %v1519, %v1631
  %v1633 = vpop.f32.mrb[0].mxu0
  %v1634 = vadd.f32 %v1521, %v1633
  %1635 = vmatprep.mubr.bf16.mxu0 0
  %1636 = vmatmul.mubr.bf16.gmra.mrb[0].mxu0 %v659
  %v1637 = vpop.f32.mrb[0].mxu0
  %v1638 = vadd.f32 %v1525, %v1637
  %v1639 = vpop.f32.mrb[0].mxu0
  %v1640 = vadd.f32 %v1527, %v1639
  %v1641 = vpop.f32.mrb[0].mxu0
  %v1642 = vadd.f32 %v1529, %v1641
  %v1643 = vpop.f32.mrb[0].mxu0
  %v1644 = vadd.f32 %v1531, %v1643
  %1645 = vmatprep.mubr.bf16.mxu0 0
  %1646 = vmatmul.mubr.bf16.gmra.mrb[0].mxu0 %v662
  %v1647 = vpop.f32.mrb[0].mxu0
  %v1648 = vadd.f32 %v1535, %v1647
  %v1649 = vpop.f32.mrb[0].mxu0
  %v1650 = vadd.f32 %v1537, %v1649
  %v1651 = vpop.f32.mrb[0].mxu0
  %v1652 = vadd.f32 %v1539, %v1651
  %v1653 = vpop.f32.mrb[0].mxu0
  %v1654 = vadd.f32 %v1541, %v1653
  %1655 = vmatprep.mubr.bf16.mxu0 0
  %1656 = vmatmul.mubr.bf16.gmra.mrb[0].mxu0 %v665
  %v1657 = vpop.f32.mrb[0].mxu0
  %v1658 = vadd.f32 %v1545, %v1657
  %v1659 = vpop.f32.mrb[0].mxu0
  %v1660 = vadd.f32 %v1547, %v1659
  %v1661 = vpop.f32.mrb[0].mxu0
  %v1662 = vadd.f32 %v1549, %v1661
  %v1663 = vpop.f32.mrb[0].mxu0
  %v1664 = vadd.f32 %v1551, %v1663
  %1665 = vmatprep.mubr.bf16.mxu0 0
  %1666 = vmatmul.mubr.bf16.gmra.mrb[0].mxu0 %v668
  %v1667 = vpop.f32.mrb[0].mxu0
  %v1668 = vadd.f32 %v1555, %v1667
  %v1669 = vpop.f32.mrb[0].mxu0
  %v1670 = vadd.f32 %v1557, %v1669
  %v1671 = vpop.f32.mrb[0].mxu0
  %v1672 = vadd.f32 %v1559, %v1671
  %v1673 = vpop.f32.mrb[0].mxu0
  %v1674 = vadd.f32 %v1561, %v1673
  %1675 = vmatprep.mubr.bf16.mxu0 0
  %1676 = vmatmul.mubr.bf16.gmra.mrb[0].mxu0 %v671
  %v1677 = vpop.f32.mrb[0].mxu0
  %v1678 = vadd.f32 %v1565, %v1677
  %v1679 = vpop.f32.mrb[0].mxu0
  %v1680 = vadd.f32 %v1567, %v1679
  %v1681 = vpop.f32.mrb[0].mxu0
  %v1682 = vadd.f32 %v1569, %v1681
  %v1683 = vpop.f32.mrb[0].mxu0
  %v1684 = vadd.f32 %v1571, %v1683
  %1685 = vmatprep.mubr.bf16.mxu0 0
  %1686 = vmatmul.mubr.bf16.gmra.mrb[0].mxu0 %v674
  %v1687 = vpop.f32.mrb[0].mxu0
  %v1688 = vadd.f32 %v1575, %v1687
  %v1689 = vpop.f32.mrb[0].mxu0
  %v1690 = vadd.f32 %v1577, %v1689
  %v1691 = vpop.f32.mrb[0].mxu0
  %v1692 = vadd.f32 %v1579, %v1691
  %v1693 = vpop.f32.mrb[0].mxu0
  %v1694 = vadd.f32 %v1581, %v1693
  %1695 = vmatprep.mubr.bf16.mxu0 0
  %1696 = vmatmul.mubr.bf16.gmra.mrb[0].mxu0 %v677
  %v1697 = vpop.f32.mrb[0].mxu0
  %v1698 = vadd.f32 %v1585, %v1697
  %v1699 = vpop.f32.mrb[0].mxu0
  %v1700 = vadd.f32 %v1587, %v1699
  %v1701 = vpop.f32.mrb[0].mxu0
  %v1702 = vadd.f32 %v1589, %v1701
  %v1703 = vpop.f32.mrb[0].mxu0
  %v1704 = vadd.f32 %v1591, %v1703
  %1705 = vdwg.mxu0
  %v1706 = vadd.f32 %v1402, %v1406
  %v1707 = vadd.f32 %v1706, %v1412
  %v1708 = vadd.f32 %v1707, %v1416
  %v1709 = vadd.f32 %v1708, %v1422
  %v1710 = vadd.f32 %v1709, %v1426
  %v1711 = vadd.f32 %v1710, %v1432
  %v1712 = vadd.f32 %v1711, %v1436
  %v1713 = vadd.f32 %v1712, %v1442
  %v1714 = vadd.f32 %v1713, %v1446
  %v1715 = vadd.f32 %v1714, %v1452
  %v1716 = vadd.f32 %v1715, %v1456
  %v1717 = vadd.f32 %v1716, %v1462
  %v1718 = vadd.f32 %v1717, %v1466
  %v1719 = vadd.f32 %v1718, %v1472
  %v1720 = vadd.f32 %v1719, %v1476
  %v1721 = vrot.slane %v1720, 4
  %v1722 = vadd.f32 %v1720, %v1721
  %v1723 = vrot.slane %v1722, 2
  %v1724 = vadd.f32 %v1722, %v1723
  %v1725 = vrot.slane %v1724, 1
  %v1726 = vadd.f32 %v1724, %v1725
  %v1727 = vadd.f32 %v1404, %v1408
  %v1728 = vadd.f32 %v1727, %v1414
  %v1729 = vadd.f32 %v1728, %v1418
  %v1730 = vadd.f32 %v1729, %v1424
  %v1731 = vadd.f32 %v1730, %v1428
  %v1732 = vadd.f32 %v1731, %v1434
  %v1733 = vadd.f32 %v1732, %v1438
  %v1734 = vadd.f32 %v1733, %v1444
  %v1735 = vadd.f32 %v1734, %v1448
  %v1736 = vadd.f32 %v1735, %v1454
  %v1737 = vadd.f32 %v1736, %v1458
  %v1738 = vadd.f32 %v1737, %v1464
  %v1739 = vadd.f32 %v1738, %v1468
  %v1740 = vadd.f32 %v1739, %v1474
  %v1741 = vadd.f32 %v1740, %v1478
  %v1742 = vrot.slane %v1741, 4
  %v1743 = vadd.f32 %v1741, %v1742
  %v1744 = vrot.slane %v1743, 2
  %v1745 = vadd.f32 %v1743, %v1744
  %v1746 = vrot.slane %v1745, 1
  %v1747 = vadd.f32 %v1745, %v1746
  %v1748 = vadd.f32 %v1628, %v1632
  %v1749 = vadd.f32 %v1748, %v1638
  %v1750 = vadd.f32 %v1749, %v1642
  %v1751 = vadd.f32 %v1750, %v1648
  %v1752 = vadd.f32 %v1751, %v1652
  %v1753 = vadd.f32 %v1752, %v1658
  %v1754 = vadd.f32 %v1753, %v1662
  %v1755 = vadd.f32 %v1754, %v1668
  %v1756 = vadd.f32 %v1755, %v1672
  %v1757 = vadd.f32 %v1756, %v1678
  %v1758 = vadd.f32 %v1757, %v1682
  %v1759 = vadd.f32 %v1758, %v1688
  %v1760 = vadd.f32 %v1759, %v1692
  %v1761 = vadd.f32 %v1760, %v1698
  %v1762 = vadd.f32 %v1761, %v1702
  %v1763 = vrot.slane %v1762, 4
  %v1764 = vadd.f32 %v1762, %v1763
  %v1765 = vrot.slane %v1764, 2
  %v1766 = vadd.f32 %v1764, %v1765
  %v1767 = vrot.slane %v1766, 1
  %v1768 = vadd.f32 %v1766, %v1767
  %v1769 = vadd.f32 %v1630, %v1634
  %v1770 = vadd.f32 %v1769, %v1640
  %v1771 = vadd.f32 %v1770, %v1644
  %v1772 = vadd.f32 %v1771, %v1650
  %v1773 = vadd.f32 %v1772, %v1654
  %v1774 = vadd.f32 %v1773, %v1660
  %v1775 = vadd.f32 %v1774, %v1664
  %v1776 = vadd.f32 %v1775, %v1670
  %v1777 = vadd.f32 %v1776, %v1674
  %v1778 = vadd.f32 %v1777, %v1680
  %v1779 = vadd.f32 %v1778, %v1684
  %v1780 = vadd.f32 %v1779, %v1690
  %v1781 = vadd.f32 %v1780, %v1694
  %v1782 = vadd.f32 %v1781, %v1700
  %v1783 = vadd.f32 %v1782, %v1704
  %v1784 = vrot.slane %v1783, 4
  %v1785 = vadd.f32 %v1783, %v1784
  %v1786 = vrot.slane %v1785, 2
  %v1787 = vadd.f32 %v1785, %v1786
  %v1788 = vrot.slane %v1787, 1
  %v1789 = vadd.f32 %v1787, %v1788
  %v1790 = vmul.f32 %v1726, 0.033333335
  %v1791 = vmul.f32 %v1747, 0.033333335
  %v1792 = vmul.f32 %v1768, 0.033333335
  %v1793 = vmul.f32 %v1789, 0.033333335
  %v1794 = vsub.f32 %v1402, %v1790
  %v1795 = vsub.f32 %v1404, %v1791
  %v1796 = vsub.f32 %v1628, %v1792
  %v1797 = vsub.f32 %v1630, %v1793
  %v1798 = vsub.f32 %v1406, %v1790
  %v1799 = vsub.f32 %v1408, %v1791
  %v1800 = vsub.f32 %v1632, %v1792
  %v1801 = vsub.f32 %v1634, %v1793
  %v1802 = vsub.f32 %v1412, %v1790
  %v1803 = vsub.f32 %v1414, %v1791
  %v1804 = vsub.f32 %v1638, %v1792
  %v1805 = vsub.f32 %v1640, %v1793
  %v1806 = vsub.f32 %v1416, %v1790
  %v1807 = vsub.f32 %v1418, %v1791
  %v1808 = vsub.f32 %v1642, %v1792
  %v1809 = vsub.f32 %v1644, %v1793
  %v1810 = vsub.f32 %v1422, %v1790
  %v1811 = vsub.f32 %v1424, %v1791
  %v1812 = vsub.f32 %v1648, %v1792
  %v1813 = vsub.f32 %v1650, %v1793
  %v1814 = vsub.f32 %v1426, %v1790
  %v1815 = vsub.f32 %v1428, %v1791
  %v1816 = vsub.f32 %v1652, %v1792
  %v1817 = vsub.f32 %v1654, %v1793
  %v1818 = vsub.f32 %v1432, %v1790
  %v1819 = vsub.f32 %v1434, %v1791
  %v1820 = vsub.f32 %v1658, %v1792
  %v1821 = vsub.f32 %v1660, %v1793
  %v1822 = vsub.f32 %v1436, %v1790
  %v1823 = vsub.f32 %v1438, %v1791
  %v1824 = vsub.f32 %v1662, %v1792
  %v1825 = vsub.f32 %v1664, %v1793
  %v1826 = vsub.f32 %v1442, %v1790
  %v1827 = vsub.f32 %v1444, %v1791
  %v1828 = vsub.f32 %v1668, %v1792
  %v1829 = vsub.f32 %v1670, %v1793
  %v1830 = vsub.f32 %v1446, %v1790
  %v1831 = vsub.f32 %v1448, %v1791
  %v1832 = vsub.f32 %v1672, %v1792
  %v1833 = vsub.f32 %v1674, %v1793
  %v1834 = vsub.f32 %v1452, %v1790
  %v1835 = vsub.f32 %v1454, %v1791
  %v1836 = vsub.f32 %v1678, %v1792
  %v1837 = vsub.f32 %v1680, %v1793
  %v1838 = vsub.f32 %v1456, %v1790
  %v1839 = vsub.f32 %v1458, %v1791
  %v1840 = vsub.f32 %v1682, %v1792
  %v1841 = vsub.f32 %v1684, %v1793
  %v1842 = vsub.f32 %v1462, %v1790
  %v1843 = vsub.f32 %v1464, %v1791
  %v1844 = vsub.f32 %v1688, %v1792
  %v1845 = vsub.f32 %v1690, %v1793
  %v1846 = vsub.f32 %v1466, %v1790
  %v1847 = vsub.f32 %v1468, %v1791
  %v1848 = vsub.f32 %v1692, %v1792
  %v1849 = vsub.f32 %v1694, %v1793
  %v1850 = vsub.f32 %v1472, %v1790
  %v1851 = vsub.f32 %v1474, %v1791
  %v1852 = vsub.f32 %v1698, %v1792
  %v1853 = vsub.f32 %v1700, %v1793
  %v1854 = vsub.f32 %v1476, %v1790
  %v1855 = vsub.f32 %v1478, %v1791
  %v1856 = vsub.f32 %v1702, %v1792
  %v1857 = vsub.f32 %v1704, %v1793
  %v1858 = vmul.f32 %v1794, %v1794
  %v1859 = vmul.f32 %v1795, %v1795
  %v1860 = vmul.f32 %v1796, %v1796
  %v1861 = vmul.f32 %v1797, %v1797
  %v1862 = vmul.f32 %v1798, %v1798
  %v1863 = vmul.f32 %v1799, %v1799
  %v1864 = vmul.f32 %v1800, %v1800
  %v1865 = vmul.f32 %v1801, %v1801
  %v1866 = vmul.f32 %v1802, %v1802
  %v1867 = vmul.f32 %v1803, %v1803
  %v1868 = vmul.f32 %v1804, %v1804
  %v1869 = vmul.f32 %v1805, %v1805
  %v1870 = vmul.f32 %v1806, %v1806
  %v1871 = vmul.f32 %v1807, %v1807
  %v1872 = vmul.f32 %v1808, %v1808
  %v1873 = vmul.f32 %v1809, %v1809
  %v1874 = vmul.f32 %v1810, %v1810
  %v1875 = vmul.f32 %v1811, %v1811
  %v1876 = vmul.f32 %v1812, %v1812
  %v1877 = vmul.f32 %v1813, %v1813
  %v1878 = vmul.f32 %v1814, %v1814
  %v1879 = vmul.f32 %v1815, %v1815
  %v1880 = vmul.f32 %v1816, %v1816
  %v1881 = vmul.f32 %v1817, %v1817
  %v1882 = vmul.f32 %v1818, %v1818
  %v1883 = vmul.f32 %v1819, %v1819
  %v1884 = vmul.f32 %v1820, %v1820
  %v1885 = vmul.f32 %v1821, %v1821
  %v1886 = vmul.f32 %v1822, %v1822
  %v1887 = vmul.f32 %v1823, %v1823
  %v1888 = vmul.f32 %v1824, %v1824
  %v1889 = vmul.f32 %v1825, %v1825
  %v1890 = vmul.f32 %v1826, %v1826
  %v1891 = vmul.f32 %v1827, %v1827
  %v1892 = vmul.f32 %v1828, %v1828
  %v1893 = vmul.f32 %v1829, %v1829
  %v1894 = vmul.f32 %v1830, %v1830
  %v1895 = vmul.f32 %v1831, %v1831
  %v1896 = vmul.f32 %v1832, %v1832
  %v1897 = vmul.f32 %v1833, %v1833
  %v1898 = vmul.f32 %v1834, %v1834
  %v1899 = vmul.f32 %v1835, %v1835
  %v1900 = vmul.f32 %v1836, %v1836
  %v1901 = vmul.f32 %v1837, %v1837
  %v1902 = vmul.f32 %v1838, %v1838
  %v1903 = vmul.f32 %v1839, %v1839
  %v1904 = vmul.f32 %v1840, %v1840
  %v1905 = vmul.f32 %v1841, %v1841
  %v1906 = vmul.f32 %v1842, %v1842
  %v1907 = vmul.f32 %v1843, %v1843
  %v1908 = vmul.f32 %v1844, %v1844
  %v1909 = vmul.f32 %v1845, %v1845
  %v1910 = vmul.f32 %v1846, %v1846
  %v1911 = vmul.f32 %v1847, %v1847
  %v1912 = vmul.f32 %v1848, %v1848
  %v1913 = vmul.f32 %v1849, %v1849
  %v1914 = vmul.f32 %v1850, %v1850
  %v1915 = vmul.f32 %v1851, %v1851
  %v1916 = vmul.f32 %v1852, %v1852
  %v1917 = vmul.f32 %v1853, %v1853
  %v1918 = vmul.f32 %v1854, %v1854
  %v1919 = vmul.f32 %v1855, %v1855
  %v1920 = vmul.f32 %v1856, %v1856
  %v1921 = vmul.f32 %v1857, %v1857
  %v1922 = vadd.f32 %v1858, %v1862
  %v1923 = vadd.f32 %v1922, %v1866
  %v1924 = vadd.f32 %v1923, %v1870
  %v1925 = vadd.f32 %v1924, %v1874
  %v1926 = vadd.f32 %v1925, %v1878
  %v1927 = vadd.f32 %v1926, %v1882
  %v1928 = vadd.f32 %v1927, %v1886
  %v1929 = vadd.f32 %v1928, %v1890
  %v1930 = vadd.f32 %v1929, %v1894
  %v1931 = vadd.f32 %v1930, %v1898
  %v1932 = vadd.f32 %v1931, %v1902
  %v1933 = vadd.f32 %v1932, %v1906
  %v1934 = vadd.f32 %v1933, %v1910
  %v1935 = vadd.f32 %v1934, %v1914
  %v1936 = vadd.f32 %v1935, %v1918
  %v1937 = vrot.slane %v1936, 4
  %v1938 = vadd.f32 %v1936, %v1937
  %v1939 = vrot.slane %v1938, 2
  %v1940 = vadd.f32 %v1938, %v1939
  %v1941 = vrot.slane %v1940, 1
  %v1942 = vadd.f32 %v1940, %v1941
  %v1943 = vadd.f32 %v1859, %v1863
  %v1944 = vadd.f32 %v1943, %v1867
  %v1945 = vadd.f32 %v1944, %v1871
  %v1946 = vadd.f32 %v1945, %v1875
  %v1947 = vadd.f32 %v1946, %v1879
  %v1948 = vadd.f32 %v1947, %v1883
  %v1949 = vadd.f32 %v1948, %v1887
  %v1950 = vadd.f32 %v1949, %v1891
  %v1951 = vadd.f32 %v1950, %v1895
  %v1952 = vadd.f32 %v1951, %v1899
  %v1953 = vadd.f32 %v1952, %v1903
  %v1954 = vadd.f32 %v1953, %v1907
  %v1955 = vadd.f32 %v1954, %v1911
  %v1956 = vadd.f32 %v1955, %v1915
  %v1957 = vadd.f32 %v1956, %v1919
  %v1958 = vrot.slane %v1957, 4
  %v1959 = vadd.f32 %v1957, %v1958
  %v1960 = vrot.slane %v1959, 2
  %v1961 = vadd.f32 %v1959, %v1960
  %v1962 = vrot.slane %v1961, 1
  %v1963 = vadd.f32 %v1961, %v1962
  %v1964 = vadd.f32 %v1860, %v1864
  %v1965 = vadd.f32 %v1964, %v1868
  %v1966 = vadd.f32 %v1965, %v1872
  %v1967 = vadd.f32 %v1966, %v1876
  %v1968 = vadd.f32 %v1967, %v1880
  %v1969 = vadd.f32 %v1968, %v1884
  %v1970 = vadd.f32 %v1969, %v1888
  %v1971 = vadd.f32 %v1970, %v1892
  %v1972 = vadd.f32 %v1971, %v1896
  %v1973 = vadd.f32 %v1972, %v1900
  %v1974 = vadd.f32 %v1973, %v1904
  %v1975 = vadd.f32 %v1974, %v1908
  %v1976 = vadd.f32 %v1975, %v1912
  %v1977 = vadd.f32 %v1976, %v1916
  %v1978 = vadd.f32 %v1977, %v1920
  %v1979 = vrot.slane %v1978, 4
  %v1980 = vadd.f32 %v1978, %v1979
  %v1981 = vrot.slane %v1980, 2
  %v1982 = vadd.f32 %v1980, %v1981
  %v1983 = vrot.slane %v1982, 1
  %v1984 = vadd.f32 %v1982, %v1983
  %v1985 = vadd.f32 %v1861, %v1865
  %v1986 = vadd.f32 %v1985, %v1869
  %v1987 = vadd.f32 %v1986, %v1873
  %v1988 = vadd.f32 %v1987, %v1877
  %v1989 = vadd.f32 %v1988, %v1881
  %v1990 = vadd.f32 %v1989, %v1885
  %v1991 = vadd.f32 %v1990, %v1889
  %v1992 = vadd.f32 %v1991, %v1893
  %v1993 = vadd.f32 %v1992, %v1897
  %v1994 = vadd.f32 %v1993, %v1901
  %v1995 = vadd.f32 %v1994, %v1905
  %v1996 = vadd.f32 %v1995, %v1909
  %v1997 = vadd.f32 %v1996, %v1913
  %v1998 = vadd.f32 %v1997, %v1917
  %v1999 = vadd.f32 %v1998, %v1921
  %v2000 = vrot.slane %v1999, 4
  %v2001 = vadd.f32 %v1999, %v2000
  %v2002 = vrot.slane %v2001, 2
  %v2003 = vadd.f32 %v2001, %v2002
  %v2004 = vrot.slane %v2003, 1
  %v2005 = vadd.f32 %v2003, %v2004
  %v2006 = vmul.f32 %v1790, %v1790
  %v2007 = vmul.f32 %v1791, %v1791
  %v2008 = vmul.f32 %v1792, %v1792
  %v2009 = vmul.f32 %v1793, %v1793
  %v2010 = vmul.f32 %v2006, 98.0
  %v2011 = vmul.f32 %v2007, 98.0
  %v2012 = vmul.f32 %v2008, 98.0
  %v2013 = vmul.f32 %v2009, 98.0
  %v2014 = vsub.f32 %v1942, %v2010
  %v2015 = vsub.f32 %v1963, %v2011
  %v2016 = vsub.f32 %v1984, %v2012
  %v2017 = vsub.f32 %v2005, %v2013
  %v2018 = vmul.f32 %v2014, 0.033333335
  %v2019 = vmul.f32 %v2015, 0.033333335
  %v2020 = vmul.f32 %v2016, 0.033333335
  %v2021 = vmul.f32 %v2017, 0.033333335
  %v2022 = vmax.f32 %v2018, 0.0
  %v2023 = vmax.f32 %v2019, 0.0
  %v2024 = vmax.f32 %v2020, 0.0
  %v2025 = vmax.f32 %v2021, 0.0
  %v2026 = vld [vmem:[%s3] sm:$0xf]
  %v2027 = vadd.f32 %v2022, 1e-05
  %v2028 = vadd.f32 %v2023, 1e-05
  %v2029 = vadd.f32 %v2024, 1e-05
  %v2030 = vadd.f32 %v2025, 1e-05
  %v2031 = vrsqrt.pop %v2027
  %v2032 = vrsqrt.pop %v2028
  %v2033 = vrsqrt.pop %v2029
  %v2034 = vrsqrt.pop %v2030
  %v2039 = vcombine.low %v2031, %v2032
  %v2040 = vcombine.low %v2033, %v2034
  %v2042 = vunpack.c.l.s4 1966171168
  %v2043 = vunpack.c.0.s8 %v2042
  %v2044 = vlaneseq
  %v2045 = vshrl.u32 %v2044, 7
  %v2046 = vsub.s32 %v2043, %v2045
  %v2047 = vrot.slane %v2039, %v2046
  %v2049 = vunpack.c.l.s4 1966171168
  %v2050 = vunpack.c.0.s8 %v2049
  %v2051 = vlaneseq
  %v2052 = vshrl.u32 %v2051, 7
  %v2053 = vsub.s32 %v2050, %v2052
  %v2054 = vrot.slane %v2040, %v2053
  %v2055 = vcombine.low %v2047, %v2054
  %v2057 = vunpack.c.l.s4 1966171168
  %v2058 = vunpack.c.0.s8 %v2057
  %v2059 = vlaneseq
  %v2060 = vshrl.u32 %v2059, 7
  %v2061 = vsub.s32 %v2058, %v2060
  %v2062 = vrot.slane %v2055, %v2061
  %v2064 = vmul.f32 %v2026, %v2062
  %v2066 = vlaneseq
  %v2067 = vshrl.u32 %v2066, 7
  %v2068 = vsub.s32 0, %v2067
  %v2069 = vrot.slane %v2064, %v2068
  %v2070 = vlaneseq
  %v2071 = vshrl.u32 %v2070, 7
  %v2072 = vsub.s32 1, %v2071
  %v2073 = vrot.slane %v2064, %v2072
  %v2074 = vlaneseq
  %v2075 = vshrl.u32 %v2074, 7
  %v2076 = vsub.s32 2, %v2075
  %v2077 = vrot.slane %v2064, %v2076
  %v2078 = vlaneseq
  %v2079 = vshrl.u32 %v2078, 7
  %v2080 = vsub.s32 3, %v2079
  %v2081 = vrot.slane %v2064, %v2080
  %v2086 = vmul.f32 %v1794, %v2069
  %v2087 = vmul.f32 %v1795, %v2073
  %v2088 = vmul.f32 %v1796, %v2077
  %v2089 = vmul.f32 %v1797, %v2081
  %v2090 = vmul.f32 %v1798, %v2069
  %v2091 = vmul.f32 %v1799, %v2073
  %v2092 = vmul.f32 %v1800, %v2077
  %v2093 = vmul.f32 %v1801, %v2081
  %v2094 = vmul.f32 %v1802, %v2069
  %v2095 = vmul.f32 %v1803, %v2073
  %v2096 = vmul.f32 %v1804, %v2077
  %v2097 = vmul.f32 %v1805, %v2081
  %v2098 = vmul.f32 %v1806, %v2069
  %v2099 = vmul.f32 %v1807, %v2073
  %v2100 = vmul.f32 %v1808, %v2077
  %v2101 = vmul.f32 %v1809, %v2081
  %v2102 = vmul.f32 %v1810, %v2069
  %v2103 = vmul.f32 %v1811, %v2073
  %v2104 = vmul.f32 %v1812, %v2077
  %v2105 = vmul.f32 %v1813, %v2081
  %v2106 = vmul.f32 %v1814, %v2069
  %v2107 = vmul.f32 %v1815, %v2073
  %v2108 = vmul.f32 %v1816, %v2077
  %v2109 = vmul.f32 %v1817, %v2081
  %v2110 = vmul.f32 %v1818, %v2069
  %v2111 = vmul.f32 %v1819, %v2073
  %v2112 = vmul.f32 %v1820, %v2077
  %v2113 = vmul.f32 %v1821, %v2081
  %v2114 = vmul.f32 %v1822, %v2069
  %v2115 = vmul.f32 %v1823, %v2073
  %v2116 = vmul.f32 %v1824, %v2077
  %v2117 = vmul.f32 %v1825, %v2081
  %v2118 = vmul.f32 %v1826, %v2069
  %v2119 = vmul.f32 %v1827, %v2073
  %v2120 = vmul.f32 %v1828, %v2077
  %v2121 = vmul.f32 %v1829, %v2081
  %v2122 = vmul.f32 %v1830, %v2069
  %v2123 = vmul.f32 %v1831, %v2073
  %v2124 = vmul.f32 %v1832, %v2077
  %v2125 = vmul.f32 %v1833, %v2081
  %v2126 = vmul.f32 %v1834, %v2069
  %v2127 = vmul.f32 %v1835, %v2073
  %v2128 = vmul.f32 %v1836, %v2077
  %v2129 = vmul.f32 %v1837, %v2081
  %v2130 = vmul.f32 %v1838, %v2069
  %v2131 = vmul.f32 %v1839, %v2073
  %v2132 = vmul.f32 %v1840, %v2077
  %v2133 = vmul.f32 %v1841, %v2081
  %v2134 = vmul.f32 %v1842, %v2069
  %v2135 = vmul.f32 %v1843, %v2073
  %v2136 = vmul.f32 %v1844, %v2077
  %v2137 = vmul.f32 %v1845, %v2081
  %v2138 = vmul.f32 %v1846, %v2069
  %v2139 = vmul.f32 %v1847, %v2073
  %v2140 = vmul.f32 %v1848, %v2077
  %v2141 = vmul.f32 %v1849, %v2081
  %v2142 = vmul.f32 %v1850, %v2069
  %v2143 = vmul.f32 %v1851, %v2073
  %v2144 = vmul.f32 %v1852, %v2077
  %v2145 = vmul.f32 %v1853, %v2081
  %v2146 = vmul.f32 %v1854, %v2069
  %v2147 = vmul.f32 %v1855, %v2073
  %v2148 = vmul.f32 %v1856, %v2077
  %v2149 = vmul.f32 %v1857, %v2081
  %v2150 = vld [vmem:[%s4] sm:$0xf]
  %v2152 = vlaneseq
  %v2153 = vshrl.u32 %v2152, 7
  %v2154 = vsub.s32 0, %v2153
  %v2155 = vrot.slane %v2150, %v2154
  %v2156 = vlaneseq
  %v2157 = vshrl.u32 %v2156, 7
  %v2158 = vsub.s32 1, %v2157
  %v2159 = vrot.slane %v2150, %v2158
  %v2160 = vlaneseq
  %v2161 = vshrl.u32 %v2160, 7
  %v2162 = vsub.s32 2, %v2161
  %v2163 = vrot.slane %v2150, %v2162
  %v2164 = vlaneseq
  %v2165 = vshrl.u32 %v2164, 7
  %v2166 = vsub.s32 3, %v2165
  %v2167 = vrot.slane %v2150, %v2166
  %v2172 = vadd.f32 %v2086, %v2155
  %v2173 = vadd.f32 %v2087, %v2159
  %v2174 = vadd.f32 %v2088, %v2163
  %v2175 = vadd.f32 %v2089, %v2167
  %v2176 = vadd.f32 %v2090, %v2155
  %v2177 = vadd.f32 %v2091, %v2159
  %v2178 = vadd.f32 %v2092, %v2163
  %v2179 = vadd.f32 %v2093, %v2167
  %v2180 = vadd.f32 %v2094, %v2155
  %v2181 = vadd.f32 %v2095, %v2159
  %v2182 = vadd.f32 %v2096, %v2163
  %v2183 = vadd.f32 %v2097, %v2167
  %v2184 = vadd.f32 %v2098, %v2155
  %v2185 = vadd.f32 %v2099, %v2159
  %v2186 = vadd.f32 %v2100, %v2163
  %v2187 = vadd.f32 %v2101, %v2167
  %v2188 = vadd.f32 %v2102, %v2155
  %v2189 = vadd.f32 %v2103, %v2159
  %v2190 = vadd.f32 %v2104, %v2163
  %v2191 = vadd.f32 %v2105, %v2167
  %v2192 = vadd.f32 %v2106, %v2155
  %v2193 = vadd.f32 %v2107, %v2159
  %v2194 = vadd.f32 %v2108, %v2163
  %v2195 = vadd.f32 %v2109, %v2167
  %v2196 = vadd.f32 %v2110, %v2155
  %v2197 = vadd.f32 %v2111, %v2159
  %v2198 = vadd.f32 %v2112, %v2163
  %v2199 = vadd.f32 %v2113, %v2167
  %v2200 = vadd.f32 %v2114, %v2155
  %v2201 = vadd.f32 %v2115, %v2159
  %v2202 = vadd.f32 %v2116, %v2163
  %v2203 = vadd.f32 %v2117, %v2167
  %v2204 = vadd.f32 %v2118, %v2155
  %v2205 = vadd.f32 %v2119, %v2159
  %v2206 = vadd.f32 %v2120, %v2163
  %v2207 = vadd.f32 %v2121, %v2167
  %v2208 = vadd.f32 %v2122, %v2155
  %v2209 = vadd.f32 %v2123, %v2159
  %v2210 = vadd.f32 %v2124, %v2163
  %v2211 = vadd.f32 %v2125, %v2167
  %v2212 = vadd.f32 %v2126, %v2155
  %v2213 = vadd.f32 %v2127, %v2159
  %v2214 = vadd.f32 %v2128, %v2163
  %v2215 = vadd.f32 %v2129, %v2167
  %v2216 = vadd.f32 %v2130, %v2155
  %v2217 = vadd.f32 %v2131, %v2159
  %v2218 = vadd.f32 %v2132, %v2163
  %v2219 = vadd.f32 %v2133, %v2167
  %v2220 = vadd.f32 %v2134, %v2155
  %v2221 = vadd.f32 %v2135, %v2159
  %v2222 = vadd.f32 %v2136, %v2163
  %v2223 = vadd.f32 %v2137, %v2167
  %v2224 = vadd.f32 %v2138, %v2155
  %v2225 = vadd.f32 %v2139, %v2159
  %v2226 = vadd.f32 %v2140, %v2163
  %v2227 = vadd.f32 %v2141, %v2167
  %v2228 = vadd.f32 %v2142, %v2155
  %v2229 = vadd.f32 %v2143, %v2159
  %v2230 = vadd.f32 %v2144, %v2163
  %v2231 = vadd.f32 %v2145, %v2167
  %v2232 = vadd.f32 %v2146, %v2155
  %v2233 = vadd.f32 %v2147, %v2159
  %v2234 = vadd.f32 %v2148, %v2163
  %v2235 = vadd.f32 %v2149, %v2167
  %v2236 = vmax.f32 %v2172, 0.0
  %v2237 = vmax.f32 %v2173, 0.0
  %v2238 = vmax.f32 %v2174, 0.0
  %v2239 = vmax.f32 %v2175, 0.0
  %v2240 = vmax.f32 %v2176, 0.0
  %v2241 = vmax.f32 %v2177, 0.0
  %v2242 = vmax.f32 %v2178, 0.0
  %v2243 = vmax.f32 %v2179, 0.0
  %v2244 = vmax.f32 %v2180, 0.0
  %v2245 = vmax.f32 %v2181, 0.0
  %v2246 = vmax.f32 %v2182, 0.0
  %v2247 = vmax.f32 %v2183, 0.0
  %v2248 = vmax.f32 %v2184, 0.0
  %v2249 = vmax.f32 %v2185, 0.0
  %v2250 = vmax.f32 %v2186, 0.0
  %v2251 = vmax.f32 %v2187, 0.0
  %v2252 = vmax.f32 %v2188, 0.0
  %v2253 = vmax.f32 %v2189, 0.0
  %v2254 = vmax.f32 %v2190, 0.0
  %v2255 = vmax.f32 %v2191, 0.0
  %v2256 = vmax.f32 %v2192, 0.0
  %v2257 = vmax.f32 %v2193, 0.0
  %v2258 = vmax.f32 %v2194, 0.0
  %v2259 = vmax.f32 %v2195, 0.0
  %v2260 = vmax.f32 %v2196, 0.0
  %v2261 = vmax.f32 %v2197, 0.0
  %v2262 = vmax.f32 %v2198, 0.0
  %v2263 = vmax.f32 %v2199, 0.0
  %v2264 = vmax.f32 %v2200, 0.0
  %v2265 = vmax.f32 %v2201, 0.0
  %v2266 = vmax.f32 %v2202, 0.0
  %v2267 = vmax.f32 %v2203, 0.0
  %v2268 = vmax.f32 %v2204, 0.0
  %v2269 = vmax.f32 %v2205, 0.0
  %v2270 = vmax.f32 %v2206, 0.0
  %v2271 = vmax.f32 %v2207, 0.0
  %v2272 = vmax.f32 %v2208, 0.0
  %v2273 = vmax.f32 %v2209, 0.0
  %v2274 = vmax.f32 %v2210, 0.0
  %v2275 = vmax.f32 %v2211, 0.0
  %v2276 = vmax.f32 %v2212, 0.0
  %v2277 = vmax.f32 %v2213, 0.0
  %v2278 = vmax.f32 %v2214, 0.0
  %v2279 = vmax.f32 %v2215, 0.0
  %v2280 = vmax.f32 %v2216, 0.0
  %v2281 = vmax.f32 %v2217, 0.0
  %v2282 = vmax.f32 %v2218, 0.0
  %v2283 = vmax.f32 %v2219, 0.0
  %v2284 = vmax.f32 %v2220, 0.0
  %v2285 = vmax.f32 %v2221, 0.0
  %v2286 = vmax.f32 %v2222, 0.0
  %v2287 = vmax.f32 %v2223, 0.0
  %v2288 = vmax.f32 %v2224, 0.0
  %v2289 = vmax.f32 %v2225, 0.0
  %v2290 = vmax.f32 %v2226, 0.0
  %v2291 = vmax.f32 %v2227, 0.0
  %v2292 = vmax.f32 %v2228, 0.0
  %v2293 = vmax.f32 %v2229, 0.0
  %v2294 = vmax.f32 %v2230, 0.0
  %v2295 = vmax.f32 %v2231, 0.0
  %v2296 = vmax.f32 %v2232, 0.0
  %v2297 = vmax.f32 %v2233, 0.0
  %v2298 = vmax.f32 %v2234, 0.0
  %v2299 = vmax.f32 %v2235, 0.0
  %v2300 = vpack.c.bf16 %v2240, %v2236
  %v2301 = vpack.c.bf16 %v2241, %v2237
  %v2302 = vpack.c.bf16 %v2242, %v2238
  %v2303 = vpack.c.bf16 %v2243, %v2239
  %v2304 = vpack.c.bf16 %v2248, %v2244
  %v2305 = vpack.c.bf16 %v2249, %v2245
  %v2306 = vpack.c.bf16 %v2250, %v2246
  %v2307 = vpack.c.bf16 %v2251, %v2247
  %v2308 = vpack.c.bf16 %v2256, %v2252
  %v2309 = vpack.c.bf16 %v2257, %v2253
  %v2310 = vpack.c.bf16 %v2258, %v2254
  %v2311 = vpack.c.bf16 %v2259, %v2255
  %v2312 = vpack.c.bf16 %v2264, %v2260
  %v2313 = vpack.c.bf16 %v2265, %v2261
  %v2314 = vpack.c.bf16 %v2266, %v2262
  %v2315 = vpack.c.bf16 %v2267, %v2263
  %v2316 = vpack.c.bf16 %v2272, %v2268
  %v2317 = vpack.c.bf16 %v2273, %v2269
  %v2318 = vpack.c.bf16 %v2274, %v2270
  %v2319 = vpack.c.bf16 %v2275, %v2271
  %v2320 = vpack.c.bf16 %v2280, %v2276
  %v2321 = vpack.c.bf16 %v2281, %v2277
  %v2322 = vpack.c.bf16 %v2282, %v2278
  %v2323 = vpack.c.bf16 %v2283, %v2279
  %v2324 = vpack.c.bf16 %v2288, %v2284
  %v2325 = vpack.c.bf16 %v2289, %v2285
  %v2326 = vpack.c.bf16 %v2290, %v2286
  %v2327 = vpack.c.bf16 %v2291, %v2287
  %v2328 = vpack.c.bf16 %v2296, %v2292
  %v2329 = vpack.c.bf16 %v2297, %v2293
  %v2330 = vpack.c.bf16 %v2298, %v2294
  %v2331 = vpack.c.bf16 %v2299, %v2295
  %v2332 = vld [vmem:[%s6] sm:$0xff]
  %v2333 = vld [vmem:[%s6 + $0x8] sm:$0xf]
  %v2334 = vld [vmem:[%s6 + $0xc] sm:$0xff]
  %v2335 = vld [vmem:[%s6 + $0x14] sm:$0xf]
  %v2336 = vld [vmem:[%s6 + $0x18] sm:$0xff]
  %v2337 = vld [vmem:[%s6 + $0x20] sm:$0xf]
  %v2338 = vld [vmem:[%s6 + $0x24] sm:$0xff]
  %v2339 = vld [vmem:[%s6 + $0x2c] sm:$0xf]
  %v2340 = vld [vmem:[%s6 + $0x30] sm:$0xff]
  %v2341 = vld [vmem:[%s6 + $0x38] sm:$0xf]
  %v2342 = vld [vmem:[%s6 + $0x3c] sm:$0xff]
  %v2343 = vld [vmem:[%s6 + $0x44] sm:$0xf]
  %v2344 = vld [vmem:[%s6 + $0x48] sm:$0xff]
  %v2345 = vld [vmem:[%s6 + $0x50] sm:$0xf]
  %v2346 = vld [vmem:[%s6 + $0x54] sm:$0xff]
  %v2347 = vld [vmem:[%s6 + $0x5c] sm:$0xf]
  %v2348 = vld [vmem:[%s6 + $0x60] sm:$0xff]
  %v2349 = vld [vmem:[%s6 + $0x68] sm:$0xf]
  %v2350 = vld [vmem:[%s6 + $0x6c] sm:$0xff]
  %v2351 = vld [vmem:[%s6 + $0x74] sm:$0xf]
  %v2352 = vld [vmem:[%s6 + $0x78] sm:$0xff]
  %v2353 = vld [vmem:[%s6 + $0x80] sm:$0xf]
  %v2354 = vld [vmem:[%s6 + $0x84] sm:$0xff]
  %v2355 = vld [vmem:[%s6 + $0x8c] sm:$0xf]
  %v2356 = vld [vmem:[%s6 + $0x90] sm:$0xff]
  %v2357 = vld [vmem:[%s6 + $0x98] sm:$0xf]
  %v2358 = vld [vmem:[%s6 + $0x9c] sm:$0xff]
  %v2359 = vld [vmem:[%s6 + $0xa4] sm:$0xf]
  %v2360 = vld [vmem:[%s6 + $0xa8] sm:$0xff]
  %v2361 = vld [vmem:[%s6 + $0xb0] sm:$0xf]
  %v2362 = vld [vmem:[%s6 + $0xb4] sm:$0xff]
  %v2363 = vld [vmem:[%s6 + $0xbc] sm:$0xf]
  %v2364 = vld [vmem:[%s6 + $0xc0] sm:$0xff]
  %v2365 = vld [vmem:[%s6 + $0xc8] sm:$0xf]
  %v2366 = vld [vmem:[%s6 + $0xcc] sm:$0xff]
  %v2367 = vld [vmem:[%s6 + $0xd4] sm:$0xf]
  %v2368 = vld [vmem:[%s6 + $0xd8] sm:$0xff]
  %v2369 = vld [vmem:[%s6 + $0xe0] sm:$0xf]
  %v2370 = vld [vmem:[%s6 + $0xe4] sm:$0xff]
  %v2371 = vld [vmem:[%s6 + $0xec] sm:$0xf]
  %v2372 = vld [vmem:[%s6 + $0xf0] sm:$0xff]
  %v2373 = vld [vmem:[%s6 + $0xf8] sm:$0xf]
  %v2374 = vld [vmem:[%s6 + $0xfc] sm:$0xff]
  %v2375 = vld [vmem:[%s6 + $0x104] sm:$0xf]
  %v2376 = vld [vmem:[%s6 + $0x108] sm:$0xff]
  %v2377 = vld [vmem:[%s6 + $0x110] sm:$0xf]
  %v2378 = vld [vmem:[%s6 + $0x114] sm:$0xff]
  %v2379 = vld [vmem:[%s6 + $0x11c] sm:$0xf]
  %v2380 = vld [vmem:[%s6 + $0x120] sm:$0xff]
  %v2381 = vld [vmem:[%s6 + $0x128] sm:$0xf]
  %v2382 = vld [vmem:[%s6 + $0x12c] sm:$0xff]
  %v2383 = vld [vmem:[%s6 + $0x134] sm:$0xf]
  %v2384 = vld [vmem:[%s6 + $0x138] sm:$0xff]
  %v2385 = vld [vmem:[%s6 + $0x140] sm:$0xf]
  %v2386 = vld [vmem:[%s6 + $0x144] sm:$0xff]
  %v2387 = vld [vmem:[%s6 + $0x14c] sm:$0xf]
  %v2388 = vld [vmem:[%s6 + $0x150] sm:$0xff]
  %v2389 = vld [vmem:[%s6 + $0x158] sm:$0xf]
  %v2390 = vld [vmem:[%s6 + $0x15c] sm:$0xff]
  %v2391 = vld [vmem:[%s6 + $0x164] sm:$0xf]
  %v2392 = vld [vmem:[%s6 + $0x168] sm:$0xff]
  %v2393 = vld [vmem:[%s6 + $0x170] sm:$0xf]
  %v2394 = vld [vmem:[%s6 + $0x174] sm:$0xff]
  %v2395 = vld [vmem:[%s6 + $0x17c] sm:$0xf]
  %v2396 = vld [vmem:[%s6 + $0x180] sm:$0xff]
  %v2397 = vld [vmem:[%s6 + $0x188] sm:$0xf]
  %v2398 = vld [vmem:[%s6 + $0x18c] sm:$0xff]
  %v2399 = vld [vmem:[%s6 + $0x194] sm:$0xf]
  %v2400 = vld [vmem:[%s6 + $0x198] sm:$0xff]
  %v2401 = vld [vmem:[%s6 + $0x1a0] sm:$0xf]
  %v2402 = vld [vmem:[%s6 + $0x1a4] sm:$0xff]
  %v2403 = vld [vmem:[%s6 + $0x1ac] sm:$0xf]
  %v2404 = vld [vmem:[%s6 + $0x1b0] sm:$0xff]
  %v2405 = vld [vmem:[%s6 + $0x1b8] sm:$0xf]
  %v2406 = vld [vmem:[%s6 + $0x1bc] sm:$0xff]
  %v2407 = vld [vmem:[%s6 + $0x1c4] sm:$0xf]
  %v2408 = vld [vmem:[%s6 + $0x1c8] sm:$0xff]
  %v2409 = vld [vmem:[%s6 + $0x1d0] sm:$0xf]
  %v2410 = vld [vmem:[%s6 + $0x1d4] sm:$0xff]
  %v2411 = vld [vmem:[%s6 + $0x1dc] sm:$0xf]
  %v2412 = vld [vmem:[%s6 + $0x1e0] sm:$0xff]
  %v2413 = vld [vmem:[%s6 + $0x1e8] sm:$0xf]
  %v2414 = vld [vmem:[%s6 + $0x1ec] sm:$0xff]
  %v2415 = vld [vmem:[%s6 + $0x1f4] sm:$0xf]
  %v2416 = vld [vmem:[%s6 + $0x1f8] sm:$0xff]
  %v2417 = vld [vmem:[%s6 + $0x200] sm:$0xf]
  %v2418 = vld [vmem:[%s6 + $0x204] sm:$0xff]
  %v2419 = vld [vmem:[%s6 + $0x20c] sm:$0xf]
  %v2420 = vld [vmem:[%s6 + $0x210] sm:$0xff]
  %v2421 = vld [vmem:[%s6 + $0x218] sm:$0xf]
  %v2422 = vld [vmem:[%s6 + $0x21c] sm:$0xff]
  %v2423 = vld [vmem:[%s6 + $0x224] sm:$0xf]
  %v2424 = vld [vmem:[%s6 + $0x228] sm:$0xff]
  %v2425 = vld [vmem:[%s6 + $0x230] sm:$0xf]
  %v2426 = vld [vmem:[%s6 + $0x234] sm:$0xff]
  %v2427 = vld [vmem:[%s6 + $0x23c] sm:$0xf]
  %v2428 = vld [vmem:[%s6 + $0x240] sm:$0xff]
  %v2429 = vld [vmem:[%s6 + $0x248] sm:$0xf]
  %v2430 = vld [vmem:[%s6 + $0x24c] sm:$0xff]
  %v2431 = vld [vmem:[%s6 + $0x254] sm:$0xf]
  %v2432 = vld [vmem:[%s6 + $0x258] sm:$0xff]
  %v2433 = vld [vmem:[%s6 + $0x260] sm:$0xf]
  %v2434 = vld [vmem:[%s6 + $0x264] sm:$0xff]
  %v2435 = vld [vmem:[%s6 + $0x26c] sm:$0xf]
  %v2436 = vld [vmem:[%s6 + $0x270] sm:$0xff]
  %v2437 = vld [vmem:[%s6 + $0x278] sm:$0xf]
  %v2438 = vld [vmem:[%s6 + $0x27c] sm:$0xff]
  %v2439 = vld [vmem:[%s6 + $0x284] sm:$0xf]
  %v2440 = vld [vmem:[%s6 + $0x288] sm:$0xff]
  %v2441 = vld [vmem:[%s6 + $0x290] sm:$0xf]
  %v2442 = vld [vmem:[%s6 + $0x294] sm:$0xff]
  %v2443 = vld [vmem:[%s6 + $0x29c] sm:$0xf]
  %v2444 = vld [vmem:[%s6 + $0x2a0] sm:$0xff]
  %v2445 = vld [vmem:[%s6 + $0x2a8] sm:$0xf]
  %v2446 = vld [vmem:[%s6 + $0x2ac] sm:$0xff]
  %v2447 = vld [vmem:[%s6 + $0x2b4] sm:$0xf]
  %v2448 = vld [vmem:[%s6 + $0x2b8] sm:$0xff]
  %v2449 = vld [vmem:[%s6 + $0x2c0] sm:$0xf]
  %v2450 = vld [vmem:[%s6 + $0x2c4] sm:$0xff]
  %v2451 = vld [vmem:[%s6 + $0x2cc] sm:$0xf]
  %v2452 = vld [vmem:[%s6 + $0x2d0] sm:$0xff]
  %v2453 = vld [vmem:[%s6 + $0x2d8] sm:$0xf]
  %v2454 = vld [vmem:[%s6 + $0x2dc] sm:$0xff]
  %v2455 = vld [vmem:[%s6 + $0x2e4] sm:$0xf]
  %v2456 = vld [vmem:[%s6 + $0x2e8] sm:$0xff]
  %v2457 = vld [vmem:[%s6 + $0x2f0] sm:$0xf]
  %v2458 = vld [vmem:[%s6 + $0x2f4] sm:$0xff]
  %v2459 = vld [vmem:[%s6 + $0x2fc] sm:$0xf]
  %v2588 = vunpack.c.l.b16 %v2332
  %v2589 = vunpack.c.h.b16 %v2332
  %v2590 = vunpack.c.l.b16 %v2333
  %v2591 = vunpack.c.l.b16 %v2334
  %v2592 = vunpack.c.h.b16 %v2334
  %v2593 = vunpack.c.l.b16 %v2335
  %v2594 = vunpack.c.l.b16 %v2336
  %v2595 = vunpack.c.h.b16 %v2336
  %v2596 = vunpack.c.l.b16 %v2337
  %v2597 = vunpack.c.l.b16 %v2338
  %v2598 = vunpack.c.h.b16 %v2338
  %v2599 = vunpack.c.l.b16 %v2339
  %v2600 = vunpack.c.l.b16 %v2340
  %v2601 = vunpack.c.h.b16 %v2340
  %v2602 = vunpack.c.l.b16 %v2341
  %v2603 = vunpack.c.l.b16 %v2342
  %v2604 = vunpack.c.h.b16 %v2342
  %v2605 = vunpack.c.l.b16 %v2343
  %v2606 = vunpack.c.l.b16 %v2344
  %v2607 = vunpack.c.h.b16 %v2344
  %v2608 = vunpack.c.l.b16 %v2345
  %v2609 = vunpack.c.l.b16 %v2346
  %v2610 = vunpack.c.h.b16 %v2346
  %v2611 = vunpack.c.l.b16 %v2347
  %v2612 = vunpack.c.l.b16 %v2348
  %v2613 = vunpack.c.h.b16 %v2348
  %v2614 = vunpack.c.l.b16 %v2349
  %v2615 = vunpack.c.l.b16 %v2350
  %v2616 = vunpack.c.h.b16 %v2350
  %v2617 = vunpack.c.l.b16 %v2351
  %v2618 = vunpack.c.l.b16 %v2352
  %v2619 = vunpack.c.h.b16 %v2352
  %v2620 = vunpack.c.l.b16 %v2353
  %v2621 = vunpack.c.l.b16 %v2354
  %v2622 = vunpack.c.h.b16 %v2354
  %v2623 = vunpack.c.l.b16 %v2355
  %v2624 = vunpack.c.l.b16 %v2356
  %v2625 = vunpack.c.h.b16 %v2356
  %v2626 = vunpack.c.l.b16 %v2357
  %v2627 = vunpack.c.l.b16 %v2358
  %v2628 = vunpack.c.h.b16 %v2358
  %v2629 = vunpack.c.l.b16 %v2359
  %v2630 = vunpack.c.l.b16 %v2360
  %v2631 = vunpack.c.h.b16 %v2360
  %v2632 = vunpack.c.l.b16 %v2361
  %v2633 = vunpack.c.l.b16 %v2362
  %v2634 = vunpack.c.h.b16 %v2362
  %v2635 = vunpack.c.l.b16 %v2363
  %v2636 = vunpack.c.l.b16 %v2364
  %v2637 = vunpack.c.h.b16 %v2364
  %v2638 = vunpack.c.l.b16 %v2365
  %v2639 = vunpack.c.l.b16 %v2366
  %v2640 = vunpack.c.h.b16 %v2366
  %v2641 = vunpack.c.l.b16 %v2367
  %v2642 = vunpack.c.l.b16 %v2368
  %v2643 = vunpack.c.h.b16 %v2368
  %v2644 = vunpack.c.l.b16 %v2369
  %v2645 = vunpack.c.l.b16 %v2370
  %v2646 = vunpack.c.h.b16 %v2370
  %v2647 = vunpack.c.l.b16 %v2371
  %v2648 = vunpack.c.l.b16 %v2372
  %v2649 = vunpack.c.h.b16 %v2372
  %v2650 = vunpack.c.l.b16 %v2373
  %v2651 = vunpack.c.l.b16 %v2374
  %v2652 = vunpack.c.h.b16 %v2374
  %v2653 = vunpack.c.l.b16 %v2375
  %v2654 = vunpack.c.l.b16 %v2376
  %v2655 = vunpack.c.h.b16 %v2376
  %v2656 = vunpack.c.l.b16 %v2377
  %v2657 = vunpack.c.l.b16 %v2378
  %v2658 = vunpack.c.h.b16 %v2378
  %v2659 = vunpack.c.l.b16 %v2379
  %v2660 = vunpack.c.l.b16 %v2380
  %v2661 = vunpack.c.h.b16 %v2380
  %v2662 = vunpack.c.l.b16 %v2381
  %v2663 = vunpack.c.l.b16 %v2382
  %v2664 = vunpack.c.h.b16 %v2382
  %v2665 = vunpack.c.l.b16 %v2383
  %v2666 = vunpack.c.l.b16 %v2384
  %v2667 = vunpack.c.h.b16 %v2384
  %v2668 = vunpack.c.l.b16 %v2385
  %v2669 = vunpack.c.l.b16 %v2386
  %v2670 = vunpack.c.h.b16 %v2386
  %v2671 = vunpack.c.l.b16 %v2387
  %v2672 = vunpack.c.l.b16 %v2388
  %v2673 = vunpack.c.h.b16 %v2388
  %v2674 = vunpack.c.l.b16 %v2389
  %v2675 = vunpack.c.l.b16 %v2390
  %v2676 = vunpack.c.h.b16 %v2390
  %v2677 = vunpack.c.l.b16 %v2391
  %v2678 = vunpack.c.l.b16 %v2392
  %v2679 = vunpack.c.h.b16 %v2392
  %v2680 = vunpack.c.l.b16 %v2393
  %v2681 = vunpack.c.l.b16 %v2394
  %v2682 = vunpack.c.h.b16 %v2394
  %v2683 = vunpack.c.l.b16 %v2395
  %v2684 = vunpack.c.l.b16 %v2396
  %v2685 = vunpack.c.h.b16 %v2396
  %v2686 = vunpack.c.l.b16 %v2397
  %v2687 = vunpack.c.l.b16 %v2398
  %v2688 = vunpack.c.h.b16 %v2398
  %v2689 = vunpack.c.l.b16 %v2399
  %v2690 = vunpack.c.l.b16 %v2400
  %v2691 = vunpack.c.h.b16 %v2400
  %v2692 = vunpack.c.l.b16 %v2401
  %v2693 = vunpack.c.l.b16 %v2402
  %v2694 = vunpack.c.h.b16 %v2402
  %v2695 = vunpack.c.l.b16 %v2403
  %v2696 = vunpack.c.l.b16 %v2404
  %v2697 = vunpack.c.h.b16 %v2404
  %v2698 = vunpack.c.l.b16 %v2405
  %v2699 = vunpack.c.l.b16 %v2406
  %v2700 = vunpack.c.h.b16 %v2406
  %v2701 = vunpack.c.l.b16 %v2407
  %v2702 = vunpack.c.l.b16 %v2408
  %v2703 = vunpack.c.h.b16 %v2408
  %v2704 = vunpack.c.l.b16 %v2409
  %v2705 = vunpack.c.l.b16 %v2410
  %v2706 = vunpack.c.h.b16 %v2410
  %v2707 = vunpack.c.l.b16 %v2411
  %v2708 = vunpack.c.l.b16 %v2412
  %v2709 = vunpack.c.h.b16 %v2412
  %v2710 = vunpack.c.l.b16 %v2413
  %v2711 = vunpack.c.l.b16 %v2414
  %v2712 = vunpack.c.h.b16 %v2414
  %v2713 = vunpack.c.l.b16 %v2415
  %v2714 = vunpack.c.l.b16 %v2416
  %v2715 = vunpack.c.h.b16 %v2416
  %v2716 = vunpack.c.l.b16 %v2417
  %v2717 = vunpack.c.l.b16 %v2418
  %v2718 = vunpack.c.h.b16 %v2418
  %v2719 = vunpack.c.l.b16 %v2419
  %v2720 = vunpack.c.l.b16 %v2420
  %v2721 = vunpack.c.h.b16 %v2420
  %v2722 = vunpack.c.l.b16 %v2421
  %v2723 = vunpack.c.l.b16 %v2422
  %v2724 = vunpack.c.h.b16 %v2422
  %v2725 = vunpack.c.l.b16 %v2423
  %v2726 = vunpack.c.l.b16 %v2424
  %v2727 = vunpack.c.h.b16 %v2424
  %v2728 = vunpack.c.l.b16 %v2425
  %v2729 = vunpack.c.l.b16 %v2426
  %v2730 = vunpack.c.h.b16 %v2426
  %v2731 = vunpack.c.l.b16 %v2427
  %v2732 = vunpack.c.l.b16 %v2428
  %v2733 = vunpack.c.h.b16 %v2428
  %v2734 = vunpack.c.l.b16 %v2429
  %v2735 = vunpack.c.l.b16 %v2430
  %v2736 = vunpack.c.h.b16 %v2430
  %v2737 = vunpack.c.l.b16 %v2431
  %v2738 = vunpack.c.l.b16 %v2432
  %v2739 = vunpack.c.h.b16 %v2432
  %v2740 = vunpack.c.l.b16 %v2433
  %v2741 = vunpack.c.l.b16 %v2434
  %v2742 = vunpack.c.h.b16 %v2434
  %v2743 = vunpack.c.l.b16 %v2435
  %v2744 = vunpack.c.l.b16 %v2436
  %v2745 = vunpack.c.h.b16 %v2436
  %v2746 = vunpack.c.l.b16 %v2437
  %v2747 = vunpack.c.l.b16 %v2438
  %v2748 = vunpack.c.h.b16 %v2438
  %v2749 = vunpack.c.l.b16 %v2439
  %v2750 = vunpack.c.l.b16 %v2440
  %v2751 = vunpack.c.h.b16 %v2440
  %v2752 = vunpack.c.l.b16 %v2441
  %v2753 = vunpack.c.l.b16 %v2442
  %v2754 = vunpack.c.h.b16 %v2442
  %v2755 = vunpack.c.l.b16 %v2443
  %v2756 = vunpack.c.l.b16 %v2444
  %v2757 = vunpack.c.h.b16 %v2444
  %v2758 = vunpack.c.l.b16 %v2445
  %v2759 = vunpack.c.l.b16 %v2446
  %v2760 = vunpack.c.h.b16 %v2446
  %v2761 = vunpack.c.l.b16 %v2447
  %v2762 = vunpack.c.l.b16 %v2448
  %v2763 = vunpack.c.h.b16 %v2448
  %v2764 = vunpack.c.l.b16 %v2449
  %v2765 = vunpack.c.l.b16 %v2450
  %v2766 = vunpack.c.h.b16 %v2450
  %v2767 = vunpack.c.l.b16 %v2451
  %v2768 = vunpack.c.l.b16 %v2452
  %v2769 = vunpack.c.h.b16 %v2452
  %v2770 = vunpack.c.l.b16 %v2453
  %v2771 = vunpack.c.l.b16 %v2454
  %v2772 = vunpack.c.h.b16 %v2454
  %v2773 = vunpack.c.l.b16 %v2455
  %v2774 = vunpack.c.l.b16 %v2456
  %v2775 = vunpack.c.h.b16 %v2456
  %v2776 = vunpack.c.l.b16 %v2457
  %v2777 = vunpack.c.l.b16 %v2458
  %v2778 = vunpack.c.h.b16 %v2458
  %v2779 = vunpack.c.l.b16 %v2459
  %v2780 = vpack.c.b16 %v2591, %v2588
  %v2781 = vpack.c.b16 %v2592, %v2589
  %v2782 = vpack.c.b16 %v2593, %v2590
  %v2783 = vpack.c.b16 %v2597, %v2594
  %v2784 = vpack.c.b16 %v2598, %v2595
  %v2785 = vpack.c.b16 %v2599, %v2596
  %v2786 = vpack.c.b16 %v2603, %v2600
  %v2787 = vpack.c.b16 %v2604, %v2601
  %v2788 = vpack.c.b16 %v2605, %v2602
  %v2789 = vpack.c.b16 %v2609, %v2606
  %v2790 = vpack.c.b16 %v2610, %v2607
  %v2791 = vpack.c.b16 %v2611, %v2608
  %v2792 = vpack.c.b16 %v2615, %v2612
  %v2793 = vpack.c.b16 %v2616, %v2613
  %v2794 = vpack.c.b16 %v2617, %v2614
  %v2795 = vpack.c.b16 %v2621, %v2618
  %v2796 = vpack.c.b16 %v2622, %v2619
  %v2797 = vpack.c.b16 %v2623, %v2620
  %v2798 = vpack.c.b16 %v2627, %v2624
  %v2799 = vpack.c.b16 %v2628, %v2625
  %v2800 = vpack.c.b16 %v2629, %v2626
  %v2801 = vpack.c.b16 %v2633, %v2630
  %v2802 = vpack.c.b16 %v2634, %v2631
  %v2803 = vpack.c.b16 %v2635, %v2632
  %v2804 = vpack.c.b16 %v2639, %v2636
  %v2805 = vpack.c.b16 %v2640, %v2637
  %v2806 = vpack.c.b16 %v2641, %v2638
  %v2807 = vpack.c.b16 %v2645, %v2642
  %v2808 = vpack.c.b16 %v2646, %v2643
  %v2809 = vpack.c.b16 %v2647, %v2644
  %v2810 = vpack.c.b16 %v2651, %v2648
  %v2811 = vpack.c.b16 %v2652, %v2649
  %v2812 = vpack.c.b16 %v2653, %v2650
  %v2813 = vpack.c.b16 %v2657, %v2654
  %v2814 = vpack.c.b16 %v2658, %v2655
  %v2815 = vpack.c.b16 %v2659, %v2656
  %v2816 = vpack.c.b16 %v2663, %v2660
  %v2817 = vpack.c.b16 %v2664, %v2661
  %v2818 = vpack.c.b16 %v2665, %v2662
  %v2819 = vpack.c.b16 %v2669, %v2666
  %v2820 = vpack.c.b16 %v2670, %v2667
  %v2821 = vpack.c.b16 %v2671, %v2668
  %v2822 = vpack.c.b16 %v2675, %v2672
  %v2823 = vpack.c.b16 %v2676, %v2673
  %v2824 = vpack.c.b16 %v2677, %v2674
  %v2825 = vpack.c.b16 %v2681, %v2678
  %v2826 = vpack.c.b16 %v2682, %v2679
  %v2827 = vpack.c.b16 %v2683, %v2680
  %v2828 = vpack.c.b16 %v2687, %v2684
  %v2829 = vpack.c.b16 %v2688, %v2685
  %v2830 = vpack.c.b16 %v2689, %v2686
  %v2831 = vpack.c.b16 %v2693, %v2690
  %v2832 = vpack.c.b16 %v2694, %v2691
  %v2833 = vpack.c.b16 %v2695, %v2692
  %v2834 = vpack.c.b16 %v2699, %v2696
  %v2835 = vpack.c.b16 %v2700, %v2697
  %v2836 = vpack.c.b16 %v2701, %v2698
  %v2837 = vpack.c.b16 %v2705, %v2702
  %v2838 = vpack.c.b16 %v2706, %v2703
  %v2839 = vpack.c.b16 %v2707, %v2704
  %v2840 = vpack.c.b16 %v2711, %v2708
  %v2841 = vpack.c.b16 %v2712, %v2709
  %v2842 = vpack.c.b16 %v2713, %v2710
  %v2843 = vpack.c.b16 %v2717, %v2714
  %v2844 = vpack.c.b16 %v2718, %v2715
  %v2845 = vpack.c.b16 %v2719, %v2716
  %v2846 = vpack.c.b16 %v2723, %v2720
  %v2847 = vpack.c.b16 %v2724, %v2721
  %v2848 = vpack.c.b16 %v2725, %v2722
  %v2849 = vpack.c.b16 %v2729, %v2726
  %v2850 = vpack.c.b16 %v2730, %v2727
  %v2851 = vpack.c.b16 %v2731, %v2728
  %v2852 = vpack.c.b16 %v2735, %v2732
  %v2853 = vpack.c.b16 %v2736, %v2733
  %v2854 = vpack.c.b16 %v2737, %v2734
  %v2855 = vpack.c.b16 %v2741, %v2738
  %v2856 = vpack.c.b16 %v2742, %v2739
  %v2857 = vpack.c.b16 %v2743, %v2740
  %v2858 = vpack.c.b16 %v2747, %v2744
  %v2859 = vpack.c.b16 %v2748, %v2745
  %v2860 = vpack.c.b16 %v2749, %v2746
  %v2861 = vpack.c.b16 %v2753, %v2750
  %v2862 = vpack.c.b16 %v2754, %v2751
  %v2863 = vpack.c.b16 %v2755, %v2752
  %v2864 = vpack.c.b16 %v2759, %v2756
  %v2865 = vpack.c.b16 %v2760, %v2757
  %v2866 = vpack.c.b16 %v2761, %v2758
  %v2867 = vpack.c.b16 %v2765, %v2762
  %v2868 = vpack.c.b16 %v2766, %v2763
  %v2869 = vpack.c.b16 %v2767, %v2764
  %v2870 = vpack.c.b16 %v2771, %v2768
  %v2871 = vpack.c.b16 %v2772, %v2769
  %v2872 = vpack.c.b16 %v2773, %v2770
  %v2873 = vpack.c.b16 %v2777, %v2774
  %v2874 = vpack.c.b16 %v2778, %v2775
  %v2875 = vpack.c.b16 %v2779, %v2776
  %2972 = vmatprep.subr.bf16.mxu0 %v2781
  %2973 = vmatpush1.bf16.msra.mxu0 %v2780
  %2974 = vmatprep.subr.bf16.mxu0 %v2784
  %2975 = vmatpush1.bf16.msra.mxu0 %v2783
  %2976 = vmatprep.subr.bf16.mxu0 %v2787
  %2977 = vmatpush1.bf16.msra.mxu0 %v2786
  %2978 = vmatprep.subr.bf16.mxu0 %v2790
  %2979 = vmatpush1.bf16.msra.mxu0 %v2789
  %2980 = vmatprep.subr.bf16.mxu0 %v2793
  %2981 = vmatpush1.bf16.msra.mxu0 %v2792
  %2982 = vmatprep.subr.bf16.mxu0 %v2796
  %2983 = vmatpush1.bf16.msra.mxu0 %v2795
  %2984 = vmatprep.subr.bf16.mxu0 %v2799
  %2985 = vmatpush1.bf16.msra.mxu0 %v2798
  %2986 = vmatprep.subr.bf16.mxu0 %v2802
  %2987 = vmatpush1.bf16.msra.mxu0 %v2801
  %2988 = vmatprep.subr.bf16.mxu0 %v2805
  %2989 = vmatpush1.bf16.msra.mxu0 %v2804
  %2990 = vmatprep.subr.bf16.mxu0 %v2808
  %2991 = vmatpush1.bf16.msra.mxu0 %v2807
  %2992 = vmatprep.subr.bf16.mxu0 %v2811
  %2993 = vmatpush1.bf16.msra.mxu0 %v2810
  %2994 = vmatprep.subr.bf16.mxu0 %v2814
  %2995 = vmatpush1.bf16.msra.mxu0 %v2813
  %2996 = vmatprep.subr.bf16.mxu0 %v2817
  %2997 = vmatpush1.bf16.msra.mxu0 %v2816
  %2998 = vmatprep.subr.bf16.mxu0 %v2820
  %2999 = vmatpush1.bf16.msra.mxu0 %v2819
  %3000 = vmatprep.subr.bf16.mxu0 %v2823
  %3001 = vmatpush1.bf16.msra.mxu0 %v2822
  %3002 = vmatprep.subr.bf16.mxu0 %v2826
  %3003 = vmatpush1.bf16.msra.mxu0 %v2825
  %3004 = vmatprep.mubr.bf16.mxu0 %v2301
  %3005 = vmatmul.mubr.bf16.gmra.mrb[0].mxu0 %v2300
  %v3006 = vpop.f32.mrb[0].mxu0
  %v3007 = vadd.f32 0.0, %v3006
  %v3008 = vpop.f32.mrb[0].mxu0
  %v3009 = vadd.f32 0.0, %v3008
  %v3010 = vpop.f32.mrb[0].mxu0
  %v3011 = vadd.f32 0.0, %v3010
  %v3012 = vpop.f32.mrb[0].mxu0
  %v3013 = vadd.f32 0.0, %v3012
  %3014 = vmatprep.mubr.bf16.mxu0 %v2305
  %3015 = vmatmul.mubr.bf16.gmra.mrb[0].mxu0 %v2304
  %v3016 = vpop.f32.mrb[0].mxu0
  %v3017 = vadd.f32 0.0, %v3016
  %v3018 = vpop.f32.mrb[0].mxu0
  %v3019 = vadd.f32 0.0, %v3018
  %v3020 = vpop.f32.mrb[0].mxu0
  %v3021 = vadd.f32 0.0, %v3020
  %v3022 = vpop.f32.mrb[0].mxu0
  %v3023 = vadd.f32 0.0, %v3022
  %3024 = vmatprep.mubr.bf16.mxu0 %v2309
  %3025 = vmatmul.mubr.bf16.gmra.mrb[0].mxu0 %v2308
  %v3026 = vpop.f32.mrb[0].mxu0
  %v3027 = vadd.f32 0.0, %v3026
  %v3028 = vpop.f32.mrb[0].mxu0
  %v3029 = vadd.f32 0.0, %v3028
  %v3030 = vpop.f32.mrb[0].mxu0
  %v3031 = vadd.f32 0.0, %v3030
  %v3032 = vpop.f32.mrb[0].mxu0
  %v3033 = vadd.f32 0.0, %v3032
  %3034 = vmatprep.mubr.bf16.mxu0 %v2313
  %3035 = vmatmul.mubr.bf16.gmra.mrb[0].mxu0 %v2312
  %v3036 = vpop.f32.mrb[0].mxu0
  %v3037 = vadd.f32 0.0, %v3036
  %v3038 = vpop.f32.mrb[0].mxu0
  %v3039 = vadd.f32 0.0, %v3038
  %v3040 = vpop.f32.mrb[0].mxu0
  %v3041 = vadd.f32 0.0, %v3040
  %v3042 = vpop.f32.mrb[0].mxu0
  %v3043 = vadd.f32 0.0, %v3042
  %3044 = vmatprep.mubr.bf16.mxu0 %v2317
  %3045 = vmatmul.mubr.bf16.gmra.mrb[0].mxu0 %v2316
  %v3046 = vpop.f32.mrb[0].mxu0
  %v3047 = vadd.f32 0.0, %v3046
  %v3048 = vpop.f32.mrb[0].mxu0
  %v3049 = vadd.f32 0.0, %v3048
  %v3050 = vpop.f32.mrb[0].mxu0
  %v3051 = vadd.f32 0.0, %v3050
  %v3052 = vpop.f32.mrb[0].mxu0
  %v3053 = vadd.f32 0.0, %v3052
  %3054 = vmatprep.mubr.bf16.mxu0 %v2321
  %3055 = vmatmul.mubr.bf16.gmra.mrb[0].mxu0 %v2320
  %v3056 = vpop.f32.mrb[0].mxu0
  %v3057 = vadd.f32 0.0, %v3056
  %v3058 = vpop.f32.mrb[0].mxu0
  %v3059 = vadd.f32 0.0, %v3058
  %v3060 = vpop.f32.mrb[0].mxu0
  %v3061 = vadd.f32 0.0, %v3060
  %v3062 = vpop.f32.mrb[0].mxu0
  %v3063 = vadd.f32 0.0, %v3062
  %3064 = vmatprep.mubr.bf16.mxu0 %v2325
  %3065 = vmatmul.mubr.bf16.gmra.mrb[0].mxu0 %v2324
  %v3066 = vpop.f32.mrb[0].mxu0
  %v3067 = vadd.f32 0.0, %v3066
  %v3068 = vpop.f32.mrb[0].mxu0
  %v3069 = vadd.f32 0.0, %v3068
  %v3070 = vpop.f32.mrb[0].mxu0
  %v3071 = vadd.f32 0.0, %v3070
  %v3072 = vpop.f32.mrb[0].mxu0
  %v3073 = vadd.f32 0.0, %v3072
  %3074 = vmatprep.mubr.bf16.mxu0 %v2329
  %3075 = vmatmul.mubr.bf16.gmra.mrb[0].mxu0 %v2328
  %v3076 = vpop.f32.mrb[0].mxu0
  %v3077 = vadd.f32 0.0, %v3076
  %v3078 = vpop.f32.mrb[0].mxu0
  %v3079 = vadd.f32 0.0, %v3078
  %v3080 = vpop.f32.mrb[0].mxu0
  %v3081 = vadd.f32 0.0, %v3080
  %v3082 = vpop.f32.mrb[0].mxu0
  %v3083 = vadd.f32 0.0, %v3082
  %3084 = vdwg.mxu0
  %3085 = vmatprep.subr.bf16.mxu0 %v2829
  %3086 = vmatpush1.bf16.msra.mxu0 %v2828
  %3087 = vmatprep.subr.bf16.mxu0 %v2832
  %3088 = vmatpush1.bf16.msra.mxu0 %v2831
  %3089 = vmatprep.subr.bf16.mxu0 %v2835
  %3090 = vmatpush1.bf16.msra.mxu0 %v2834
  %3091 = vmatprep.subr.bf16.mxu0 %v2838
  %3092 = vmatpush1.bf16.msra.mxu0 %v2837
  %3093 = vmatprep.subr.bf16.mxu0 %v2841
  %3094 = vmatpush1.bf16.msra.mxu0 %v2840
  %3095 = vmatprep.subr.bf16.mxu0 %v2844
  %3096 = vmatpush1.bf16.msra.mxu0 %v2843
  %3097 = vmatprep.subr.bf16.mxu0 %v2847
  %3098 = vmatpush1.bf16.msra.mxu0 %v2846
  %3099 = vmatprep.subr.bf16.mxu0 %v2850
  %3100 = vmatpush1.bf16.msra.mxu0 %v2849
  %3101 = vmatprep.subr.bf16.mxu0 %v2853
  %3102 = vmatpush1.bf16.msra.mxu0 %v2852
  %3103 = vmatprep.subr.bf16.mxu0 %v2856
  %3104 = vmatpush1.bf16.msra.mxu0 %v2855
  %3105 = vmatprep.subr.bf16.mxu0 %v2859
  %3106 = vmatpush1.bf16.msra.mxu0 %v2858
  %3107 = vmatprep.subr.bf16.mxu0 %v2862
  %3108 = vmatpush1.bf16.msra.mxu0 %v2861
  %3109 = vmatprep.subr.bf16.mxu0 %v2865
  %3110 = vmatpush1.bf16.msra.mxu0 %v2864
  %3111 = vmatprep.subr.bf16.mxu0 %v2868
  %3112 = vmatpush1.bf16.msra.mxu0 %v2867
  %3113 = vmatprep.subr.bf16.mxu0 %v2871
  %3114 = vmatpush1.bf16.msra.mxu0 %v2870
  %3115 = vmatprep.subr.bf16.mxu0 %v2874
  %3116 = vmatpush1.bf16.msra.mxu0 %v2873
  %3117 = vmatprep.mubr.bf16.mxu0 %v2303
  %3118 = vmatmul.mubr.bf16.gmra.mrb[0].mxu0 %v2302
  %v3119 = vpop.f32.mrb[0].mxu0
  %v3120 = vadd.f32 %v3007, %v3119
  %v3121 = vpop.f32.mrb[0].mxu0
  %v3122 = vadd.f32 %v3009, %v3121
  %v3123 = vpop.f32.mrb[0].mxu0
  %v3124 = vadd.f32 %v3011, %v3123
  %v3125 = vpop.f32.mrb[0].mxu0
  %v3126 = vadd.f32 %v3013, %v3125
  %3127 = vmatprep.mubr.bf16.mxu0 %v2307
  %3128 = vmatmul.mubr.bf16.gmra.mrb[0].mxu0 %v2306
  %v3129 = vpop.f32.mrb[0].mxu0
  %v3130 = vadd.f32 %v3017, %v3129
  %v3131 = vpop.f32.mrb[0].mxu0
  %v3132 = vadd.f32 %v3019, %v3131
  %v3133 = vpop.f32.mrb[0].mxu0
  %v3134 = vadd.f32 %v3021, %v3133
  %v3135 = vpop.f32.mrb[0].mxu0
  %v3136 = vadd.f32 %v3023, %v3135
  %3137 = vmatprep.mubr.bf16.mxu0 %v2311
  %3138 = vmatmul.mubr.bf16.gmra.mrb[0].mxu0 %v2310
  %v3139 = vpop.f32.mrb[0].mxu0
  %v3140 = vadd.f32 %v3027, %v3139
  %v3141 = vpop.f32.mrb[0].mxu0
  %v3142 = vadd.f32 %v3029, %v3141
  %v3143 = vpop.f32.mrb[0].mxu0
  %v3144 = vadd.f32 %v3031, %v3143
  %v3145 = vpop.f32.mrb[0].mxu0
  %v3146 = vadd.f32 %v3033, %v3145
  %3147 = vmatprep.mubr.bf16.mxu0 %v2315
  %3148 = vmatmul.mubr.bf16.gmra.mrb[0].mxu0 %v2314
  %v3149 = vpop.f32.mrb[0].mxu0
  %v3150 = vadd.f32 %v3037, %v3149
  %v3151 = vpop.f32.mrb[0].mxu0
  %v3152 = vadd.f32 %v3039, %v3151
  %v3153 = vpop.f32.mrb[0].mxu0
  %v3154 = vadd.f32 %v3041, %v3153
  %v3155 = vpop.f32.mrb[0].mxu0
  %v3156 = vadd.f32 %v3043, %v3155
  %3157 = vmatprep.mubr.bf16.mxu0 %v2319
  %3158 = vmatmul.mubr.bf16.gmra.mrb[0].mxu0 %v2318
  %v3159 = vpop.f32.mrb[0].mxu0
  %v3160 = vadd.f32 %v3047, %v3159
  %v3161 = vpop.f32.mrb[0].mxu0
  %v3162 = vadd.f32 %v3049, %v3161
  %v3163 = vpop.f32.mrb[0].mxu0
  %v3164 = vadd.f32 %v3051, %v3163
  %v3165 = vpop.f32.mrb[0].mxu0
  %v3166 = vadd.f32 %v3053, %v3165
  %3167 = vmatprep.mubr.bf16.mxu0 %v2323
  %3168 = vmatmul.mubr.bf16.gmra.mrb[0].mxu0 %v2322
  %v3169 = vpop.f32.mrb[0].mxu0
  %v3170 = vadd.f32 %v3057, %v3169
  %v3171 = vpop.f32.mrb[0].mxu0
  %v3172 = vadd.f32 %v3059, %v3171
  %v3173 = vpop.f32.mrb[0].mxu0
  %v3174 = vadd.f32 %v3061, %v3173
  %v3175 = vpop.f32.mrb[0].mxu0
  %v3176 = vadd.f32 %v3063, %v3175
  %3177 = vmatprep.mubr.bf16.mxu0 %v2327
  %3178 = vmatmul.mubr.bf16.gmra.mrb[0].mxu0 %v2326
  %v3179 = vpop.f32.mrb[0].mxu0
  %v3180 = vadd.f32 %v3067, %v3179
  %v3181 = vpop.f32.mrb[0].mxu0
  %v3182 = vadd.f32 %v3069, %v3181
  %v3183 = vpop.f32.mrb[0].mxu0
  %v3184 = vadd.f32 %v3071, %v3183
  %v3185 = vpop.f32.mrb[0].mxu0
  %v3186 = vadd.f32 %v3073, %v3185
  %3187 = vmatprep.mubr.bf16.mxu0 %v2331
  %3188 = vmatmul.mubr.bf16.gmra.mrb[0].mxu0 %v2330
  %v3189 = vpop.f32.mrb[0].mxu0
  %v3190 = vadd.f32 %v3077, %v3189
  %v3191 = vpop.f32.mrb[0].mxu0
  %v3192 = vadd.f32 %v3079, %v3191
  %v3193 = vpop.f32.mrb[0].mxu0
  %v3194 = vadd.f32 %v3081, %v3193
  %v3195 = vpop.f32.mrb[0].mxu0
  %v3196 = vadd.f32 %v3083, %v3195
  %3197 = vdwg.mxu0
  %3198 = vmatprep.subr.bf16.mxu0 0
  %3199 = vmatpush1.bf16.msra.mxu0 %v2782
  %3200 = vmatprep.subr.bf16.mxu0 0
  %3201 = vmatpush1.bf16.msra.mxu0 %v2785
  %3202 = vmatprep.subr.bf16.mxu0 0
  %3203 = vmatpush1.bf16.msra.mxu0 %v2788
  %3204 = vmatprep.subr.bf16.mxu0 0
  %3205 = vmatpush1.bf16.msra.mxu0 %v2791
  %3206 = vmatprep.subr.bf16.mxu0 0
  %3207 = vmatpush1.bf16.msra.mxu0 %v2794
  %3208 = vmatprep.subr.bf16.mxu0 0
  %3209 = vmatpush1.bf16.msra.mxu0 %v2797
  %3210 = vmatprep.subr.bf16.mxu0 0
  %3211 = vmatpush1.bf16.msra.mxu0 %v2800
  %3212 = vmatprep.subr.bf16.mxu0 0
  %3213 = vmatpush1.bf16.msra.mxu0 %v2803
  %3214 = vmatprep.subr.bf16.mxu0 0
  %3215 = vmatpush1.bf16.msra.mxu0 %v2806
  %3216 = vmatprep.subr.bf16.mxu0 0
  %3217 = vmatpush1.bf16.msra.mxu0 %v2809
  %3218 = vmatprep.subr.bf16.mxu0 0
  %3219 = vmatpush1.bf16.msra.mxu0 %v2812
  %3220 = vmatprep.subr.bf16.mxu0 0
  %3221 = vmatpush1.bf16.msra.mxu0 %v2815
  %3222 = vmatprep.subr.bf16.mxu0 0
  %3223 = vmatpush1.bf16.msra.mxu0 %v2818
  %3224 = vmatprep.subr.bf16.mxu0 0
  %3225 = vmatpush1.bf16.msra.mxu0 %v2821
  %3226 = vmatprep.subr.bf16.mxu0 0
  %3227 = vmatpush1.bf16.msra.mxu0 %v2824
  %3228 = vmatprep.subr.bf16.mxu0 0
  %3229 = vmatpush1.bf16.msra.mxu0 %v2827
  %3230 = vmatprep.mubr.bf16.mxu0 %v2301
  %3231 = vmatmul.mubr.bf16.gmra.mrb[0].mxu0 %v2300
  %v3232 = vpop.f32.mrb[0].mxu0
  %v3233 = vadd.f32 0.0, %v3232
  %v3234 = vpop.f32.mrb[0].mxu0
  %v3235 = vpop.f32.mrb[0].mxu0
  %v3236 = vadd.f32 0.0, %v3235
  %v3237 = vpop.f32.mrb[0].mxu0
  %3238 = vmatprep.mubr.bf16.mxu0 %v2305
  %3239 = vmatmul.mubr.bf16.gmra.mrb[0].mxu0 %v2304
  %v3240 = vpop.f32.mrb[0].mxu0
  %v3241 = vadd.f32 0.0, %v3240
  %v3242 = vpop.f32.mrb[0].mxu0
  %v3243 = vpop.f32.mrb[0].mxu0
  %v3244 = vadd.f32 0.0, %v3243
  %v3245 = vpop.f32.mrb[0].mxu0
  %3246 = vmatprep.mubr.bf16.mxu0 %v2309
  %3247 = vmatmul.mubr.bf16.gmra.mrb[0].mxu0 %v2308
  %v3248 = vpop.f32.mrb[0].mxu0
  %v3249 = vadd.f32 0.0, %v3248
  %v3250 = vpop.f32.mrb[0].mxu0
  %v3251 = vpop.f32.mrb[0].mxu0
  %v3252 = vadd.f32 0.0, %v3251
  %v3253 = vpop.f32.mrb[0].mxu0
  %3254 = vmatprep.mubr.bf16.mxu0 %v2313
  %3255 = vmatmul.mubr.bf16.gmra.mrb[0].mxu0 %v2312
  %v3256 = vpop.f32.mrb[0].mxu0
  %v3257 = vadd.f32 0.0, %v3256
  %v3258 = vpop.f32.mrb[0].mxu0
  %v3259 = vpop.f32.mrb[0].mxu0
  %v3260 = vadd.f32 0.0, %v3259
  %v3261 = vpop.f32.mrb[0].mxu0
  %3262 = vmatprep.mubr.bf16.mxu0 %v2317
  %3263 = vmatmul.mubr.bf16.gmra.mrb[0].mxu0 %v2316
  %v3264 = vpop.f32.mrb[0].mxu0
  %v3265 = vadd.f32 0.0, %v3264
  %v3266 = vpop.f32.mrb[0].mxu0
  %v3267 = vpop.f32.mrb[0].mxu0
  %v3268 = vadd.f32 0.0, %v3267
  %v3269 = vpop.f32.mrb[0].mxu0
  %3270 = vmatprep.mubr.bf16.mxu0 %v2321
  %3271 = vmatmul.mubr.bf16.gmra.mrb[0].mxu0 %v2320
  %v3272 = vpop.f32.mrb[0].mxu0
  %v3273 = vadd.f32 0.0, %v3272
  %v3274 = vpop.f32.mrb[0].mxu0
  %v3275 = vpop.f32.mrb[0].mxu0
  %v3276 = vadd.f32 0.0, %v3275
  %v3277 = vpop.f32.mrb[0].mxu0
  %3278 = vmatprep.mubr.bf16.mxu0 %v2325
  %3279 = vmatmul.mubr.bf16.gmra.mrb[0].mxu0 %v2324
  %v3280 = vpop.f32.mrb[0].mxu0
  %v3281 = vadd.f32 0.0, %v3280
  %v3282 = vpop.f32.mrb[0].mxu0
  %v3283 = vpop.f32.mrb[0].mxu0
  %v3284 = vadd.f32 0.0, %v3283
  %v3285 = vpop.f32.mrb[0].mxu0
  %3286 = vmatprep.mubr.bf16.mxu0 %v2329
  %3287 = vmatmul.mubr.bf16.gmra.mrb[0].mxu0 %v2328
  %v3288 = vpop.f32.mrb[0].mxu0
  %v3289 = vadd.f32 0.0, %v3288
  %v3290 = vpop.f32.mrb[0].mxu0
  %v3291 = vpop.f32.mrb[0].mxu0
  %v3292 = vadd.f32 0.0, %v3291
  %v3293 = vpop.f32.mrb[0].mxu0
  %3294 = vdwg.mxu0
  %3295 = vmatprep.subr.bf16.mxu0 0
  %3296 = vmatpush1.bf16.msra.mxu0 %v2830
  %3297 = vmatprep.subr.bf16.mxu0 0
  %3298 = vmatpush1.bf16.msra.mxu0 %v2833
  %3299 = vmatprep.subr.bf16.mxu0 0
  %3300 = vmatpush1.bf16.msra.mxu0 %v2836
  %3301 = vmatprep.subr.bf16.mxu0 0
  %3302 = vmatpush1.bf16.msra.mxu0 %v2839
  %3303 = vmatprep.subr.bf16.mxu0 0
  %3304 = vmatpush1.bf16.msra.mxu0 %v2842
  %3305 = vmatprep.subr.bf16.mxu0 0
  %3306 = vmatpush1.bf16.msra.mxu0 %v2845
  %3307 = vmatprep.subr.bf16.mxu0 0
  %3308 = vmatpush1.bf16.msra.mxu0 %v2848
  %3309 = vmatprep.subr.bf16.mxu0 0
  %3310 = vmatpush1.bf16.msra.mxu0 %v2851
  %3311 = vmatprep.subr.bf16.mxu0 0
  %3312 = vmatpush1.bf16.msra.mxu0 %v2854
  %3313 = vmatprep.subr.bf16.mxu0 0
  %3314 = vmatpush1.bf16.msra.mxu0 %v2857
  %3315 = vmatprep.subr.bf16.mxu0 0
  %3316 = vmatpush1.bf16.msra.mxu0 %v2860
  %3317 = vmatprep.subr.bf16.mxu0 0
  %3318 = vmatpush1.bf16.msra.mxu0 %v2863
  %3319 = vmatprep.subr.bf16.mxu0 0
  %3320 = vmatpush1.bf16.msra.mxu0 %v2866
  %3321 = vmatprep.subr.bf16.mxu0 0
  %3322 = vmatpush1.bf16.msra.mxu0 %v2869
  %3323 = vmatprep.subr.bf16.mxu0 0
  %3324 = vmatpush1.bf16.msra.mxu0 %v2872
  %3325 = vmatprep.subr.bf16.mxu0 0
  %3326 = vmatpush1.bf16.msra.mxu0 %v2875
  %3327 = vmatprep.mubr.bf16.mxu0 %v2303
  %3328 = vmatmul.mubr.bf16.gmra.mrb[0].mxu0 %v2302
  %v3329 = vpop.f32.mrb[0].mxu0
  %v3330 = vadd.f32 %v3233, %v3329
  %v3331 = vpop.f32.mrb[0].mxu0
  %v3332 = vpop.f32.mrb[0].mxu0
  %v3333 = vadd.f32 %v3236, %v3332
  %v3334 = vpop.f32.mrb[0].mxu0
  %3335 = vmatprep.mubr.bf16.mxu0 %v2307
  %3336 = vmatmul.mubr.bf16.gmra.mrb[0].mxu0 %v2306
  %v3337 = vpop.f32.mrb[0].mxu0
  %v3338 = vadd.f32 %v3241, %v3337
  %v3339 = vpop.f32.mrb[0].mxu0
  %v3340 = vpop.f32.mrb[0].mxu0
  %v3341 = vadd.f32 %v3244, %v3340
  %v3342 = vpop.f32.mrb[0].mxu0
  %3343 = vmatprep.mubr.bf16.mxu0 %v2311
  %3344 = vmatmul.mubr.bf16.gmra.mrb[0].mxu0 %v2310
  %v3345 = vpop.f32.mrb[0].mxu0
  %v3346 = vadd.f32 %v3249, %v3345
  %v3347 = vpop.f32.mrb[0].mxu0
  %v3348 = vpop.f32.mrb[0].mxu0
  %v3349 = vadd.f32 %v3252, %v3348
  %v3350 = vpop.f32.mrb[0].mxu0
  %3351 = vmatprep.mubr.bf16.mxu0 %v2315
  %3352 = vmatmul.mubr.bf16.gmra.mrb[0].mxu0 %v2314
  %v3353 = vpop.f32.mrb[0].mxu0
  %v3354 = vadd.f32 %v3257, %v3353
  %v3355 = vpop.f32.mrb[0].mxu0
  %v3356 = vpop.f32.mrb[0].mxu0
  %v3357 = vadd.f32 %v3260, %v3356
  %v3358 = vpop.f32.mrb[0].mxu0
  %3359 = vmatprep.mubr.bf16.mxu0 %v2319
  %3360 = vmatmul.mubr.bf16.gmra.mrb[0].mxu0 %v2318
  %v3361 = vpop.f32.mrb[0].mxu0
  %v3362 = vadd.f32 %v3265, %v3361
  %v3363 = vpop.f32.mrb[0].mxu0
  %v3364 = vpop.f32.mrb[0].mxu0
  %v3365 = vadd.f32 %v3268, %v3364
  %v3366 = vpop.f32.mrb[0].mxu0
  %3367 = vmatprep.mubr.bf16.mxu0 %v2323
  %3368 = vmatmul.mubr.bf16.gmra.mrb[0].mxu0 %v2322
  %v3369 = vpop.f32.mrb[0].mxu0
  %v3370 = vadd.f32 %v3273, %v3369
  %v3371 = vpop.f32.mrb[0].mxu0
  %v3372 = vpop.f32.mrb[0].mxu0
  %v3373 = vadd.f32 %v3276, %v3372
  %v3374 = vpop.f32.mrb[0].mxu0
  %3375 = vmatprep.mubr.bf16.mxu0 %v2327
  %3376 = vmatmul.mubr.bf16.gmra.mrb[0].mxu0 %v2326
  %v3377 = vpop.f32.mrb[0].mxu0
  %v3378 = vadd.f32 %v3281, %v3377
  %v3379 = vpop.f32.mrb[0].mxu0
  %v3380 = vpop.f32.mrb[0].mxu0
  %v3381 = vadd.f32 %v3284, %v3380
  %v3382 = vpop.f32.mrb[0].mxu0
  %3383 = vmatprep.mubr.bf16.mxu0 %v2331
  %3384 = vmatmul.mubr.bf16.gmra.mrb[0].mxu0 %v2330
  %v3385 = vpop.f32.mrb[0].mxu0
  %v3386 = vadd.f32 %v3289, %v3385
  %v3387 = vpop.f32.mrb[0].mxu0
  %v3388 = vpop.f32.mrb[0].mxu0
  %v3389 = vadd.f32 %v3292, %v3388
  %v3390 = vpop.f32.mrb[0].mxu0
  %3391 = vdwg.mxu0
  %v3392 = vpack.c.bf16 %v3124, %v3120
  %v3393 = vpack.c.bf16 %v3134, %v3130
  %v3394 = vpack.c.bf16 %v3144, %v3140
  %v3395 = vpack.c.bf16 %v3154, %v3150
  %v3396 = vpack.c.bf16 %v3164, %v3160
  %v3397 = vpack.c.bf16 %v3174, %v3170
  %v3398 = vpack.c.bf16 %v3184, %v3180
  %v3399 = vpack.c.bf16 %v3194, %v3190
  %3400 = vst [vmem:[#allocation3] sm:$0xff] %v3392
  %3401 = vst [vmem:[#allocation3 + $0x8] sm:$0xff] %v3393
  %3402 = vst [vmem:[#allocation3 + $0x10] sm:$0xff] %v3394
  %3403 = vst [vmem:[#allocation3 + $0x18] sm:$0xff] %v3395
  %3404 = vst [vmem:[#allocation3 + $0x20] sm:$0xff] %v3396
  %3405 = vst [vmem:[#allocation3 + $0x28] sm:$0xff] %v3397
  %3406 = vst [vmem:[#allocation3 + $0x30] sm:$0xff] %v3398
  %3407 = vst [vmem:[#allocation3 + $0x38] sm:$0xff] %v3399
  %v3408 = vpack.c.bf16 %v3126, %v3122
  %v3409 = vpack.c.bf16 %v3136, %v3132
  %v3410 = vpack.c.bf16 %v3146, %v3142
  %v3411 = vpack.c.bf16 %v3156, %v3152
  %v3412 = vpack.c.bf16 %v3166, %v3162
  %v3413 = vpack.c.bf16 %v3176, %v3172
  %v3414 = vpack.c.bf16 %v3186, %v3182
  %v3415 = vpack.c.bf16 %v3196, %v3192
  %3416 = vst [vmem:[#allocation3 + $0x40] sm:$0xff] %v3408
  %3417 = vst [vmem:[#allocation3 + $0x48] sm:$0xff] %v3409
  %3418 = vst [vmem:[#allocation3 + $0x50] sm:$0xff] %v3410
  %3419 = vst [vmem:[#allocation3 + $0x58] sm:$0xff] %v3411
  %3420 = vst [vmem:[#allocation3 + $0x60] sm:$0xff] %v3412
  %3421 = vst [vmem:[#allocation3 + $0x68] sm:$0xff] %v3413
  %3422 = vst [vmem:[#allocation3 + $0x70] sm:$0xff] %v3414
  %3423 = vst [vmem:[#allocation3 + $0x78] sm:$0xff] %v3415
  %v3424 = vpack.c.bf16 %v3333, %v3330
  %v3425 = vpack.c.bf16 %v3341, %v3338
  %v3426 = vpack.c.bf16 %v3349, %v3346
  %v3427 = vpack.c.bf16 %v3357, %v3354
  %v3428 = vpack.c.bf16 %v3365, %v3362
  %v3429 = vpack.c.bf16 %v3373, %v3370
  %v3430 = vpack.c.bf16 %v3381, %v3378
  %v3431 = vpack.c.bf16 %v3389, %v3386
  %3432 = vst [vmem:[#allocation3 + $0x80] sm:$0xff] %v3424
  %3433 = vst [vmem:[#allocation3 + $0x88] sm:$0xff] %v3425
  %3434 = vst [vmem:[#allocation3 + $0x90] sm:$0xff] %v3426
  %3435 = vst [vmem:[#allocation3 + $0x98] sm:$0xff] %v3427
  %3436 = vst [vmem:[#allocation3 + $0xa0] sm:$0xff] %v3428
  %3437 = vst [vmem:[#allocation3 + $0xa8] sm:$0xff] %v3429
  %3438 = vst [vmem:[#allocation3 + $0xb0] sm:$0xff] %v3430
  %3439 = vst [vmem:[#allocation3 + $0xb8] sm:$0xff] %v3431
  %v3440 = vld [vmem:[%s5] sm:$0xff]
  %v3441 = vld [vmem:[%s5 + $0x8] sm:$0xf]
  %v3442 = vld [vmem:[%s5 + $0xc] sm:$0xff]
  %v3443 = vld [vmem:[%s5 + $0x14] sm:$0xf]
  %v3444 = vld [vmem:[%s5 + $0x18] sm:$0xff]
  %v3445 = vld [vmem:[%s5 + $0x20] sm:$0xf]
  %v3446 = vld [vmem:[%s5 + $0x24] sm:$0xff]
  %v3447 = vld [vmem:[%s5 + $0x2c] sm:$0xf]
  %v3448 = vld [vmem:[%s5 + $0x30] sm:$0xff]
  %v3449 = vld [vmem:[%s5 + $0x38] sm:$0xf]
  %v3450 = vld [vmem:[%s5 + $0x3c] sm:$0xff]
  %v3451 = vld [vmem:[%s5 + $0x44] sm:$0xf]
  %v3452 = vld [vmem:[%s5 + $0x48] sm:$0xff]
  %v3453 = vld [vmem:[%s5 + $0x50] sm:$0xf]
  %v3454 = vld [vmem:[%s5 + $0x54] sm:$0xff]
  %v3455 = vld [vmem:[%s5 + $0x5c] sm:$0xf]
  %v3456 = vld [vmem:[%s5 + $0x60] sm:$0xff]
  %v3457 = vld [vmem:[%s5 + $0x68] sm:$0xf]
  %v3458 = vld [vmem:[%s5 + $0x6c] sm:$0xff]
  %v3459 = vld [vmem:[%s5 + $0x74] sm:$0xf]
  %v3460 = vld [vmem:[%s5 + $0x78] sm:$0xff]
  %v3461 = vld [vmem:[%s5 + $0x80] sm:$0xf]
  %v3462 = vld [vmem:[%s5 + $0x84] sm:$0xff]
  %v3463 = vld [vmem:[%s5 + $0x8c] sm:$0xf]
  %v3464 = vld [vmem:[%s5 + $0x90] sm:$0xff]
  %v3465 = vld [vmem:[%s5 + $0x98] sm:$0xf]
  %v3466 = vld [vmem:[%s5 + $0x9c] sm:$0xff]
  %v3467 = vld [vmem:[%s5 + $0xa4] sm:$0xf]
  %v3468 = vld [vmem:[%s5 + $0xa8] sm:$0xff]
  %v3469 = vld [vmem:[%s5 + $0xb0] sm:$0xf]
  %v3470 = vld [vmem:[%s5 + $0xb4] sm:$0xff]
  %v3471 = vld [vmem:[%s5 + $0xbc] sm:$0xf]
  %v3472 = vld [vmem:[#allocation3] sm:$0xff]
  %v3473 = vld [vmem:[#allocation3 + $0x8] sm:$0xff]
  %v3474 = vld [vmem:[#allocation3 + $0x10] sm:$0xff]
  %v3475 = vld [vmem:[#allocation3 + $0x18] sm:$0xff]
  %v3476 = vld [vmem:[#allocation3 + $0x20] sm:$0xff]
  %v3477 = vld [vmem:[#allocation3 + $0x28] sm:$0xff]
  %v3478 = vld [vmem:[#allocation3 + $0x30] sm:$0xff]
  %v3479 = vld [vmem:[#allocation3 + $0x38] sm:$0xff]
  %v3480 = vld [vmem:[#allocation3 + $0x40] sm:$0xff]
  %v3481 = vld [vmem:[#allocation3 + $0x48] sm:$0xff]
  %v3482 = vld [vmem:[#allocation3 + $0x50] sm:$0xff]
  %v3483 = vld [vmem:[#allocation3 + $0x58] sm:$0xff]
  %v3484 = vld [vmem:[#allocation3 + $0x60] sm:$0xff]
  %v3485 = vld [vmem:[#allocation3 + $0x68] sm:$0xff]
  %v3486 = vld [vmem:[#allocation3 + $0x70] sm:$0xff]
  %v3487 = vld [vmem:[#allocation3 + $0x78] sm:$0xff]
  %v3488 = vld [vmem:[#allocation3 + $0x80] sm:$0xff]
  %v3489 = vld [vmem:[#allocation3 + $0x88] sm:$0xff]
  %v3490 = vld [vmem:[#allocation3 + $0x90] sm:$0xff]
  %v3491 = vld [vmem:[#allocation3 + $0x98] sm:$0xff]
  %v3492 = vld [vmem:[#allocation3 + $0xa0] sm:$0xff]
  %v3493 = vld [vmem:[#allocation3 + $0xa8] sm:$0xff]
  %v3494 = vld [vmem:[#allocation3 + $0xb0] sm:$0xff]
  %v3495 = vld [vmem:[#allocation3 + $0xb8] sm:$0xff]
  %v3528 = vunpack.c.l.b16 %v3440
  %v3529 = vunpack.c.h.b16 %v3440
  %v3530 = vunpack.c.l.b16 %v3441
  %v3531 = vunpack.c.l.b16 %v3442
  %v3532 = vunpack.c.h.b16 %v3442
  %v3533 = vunpack.c.l.b16 %v3443
  %v3534 = vunpack.c.l.b16 %v3444
  %v3535 = vunpack.c.h.b16 %v3444
  %v3536 = vunpack.c.l.b16 %v3445
  %v3537 = vunpack.c.l.b16 %v3446
  %v3538 = vunpack.c.h.b16 %v3446
  %v3539 = vunpack.c.l.b16 %v3447
  %v3540 = vunpack.c.l.b16 %v3448
  %v3541 = vunpack.c.h.b16 %v3448
  %v3542 = vunpack.c.l.b16 %v3449
  %v3543 = vunpack.c.l.b16 %v3450
  %v3544 = vunpack.c.h.b16 %v3450
  %v3545 = vunpack.c.l.b16 %v3451
  %v3546 = vunpack.c.l.b16 %v3452
  %v3547 = vunpack.c.h.b16 %v3452
  %v3548 = vunpack.c.l.b16 %v3453
  %v3549 = vunpack.c.l.b16 %v3454
  %v3550 = vunpack.c.h.b16 %v3454
  %v3551 = vunpack.c.l.b16 %v3455
  %v3552 = vunpack.c.l.b16 %v3456
  %v3553 = vunpack.c.h.b16 %v3456
  %v3554 = vunpack.c.l.b16 %v3457
  %v3555 = vunpack.c.l.b16 %v3458
  %v3556 = vunpack.c.h.b16 %v3458
  %v3557 = vunpack.c.l.b16 %v3459
  %v3558 = vunpack.c.l.b16 %v3460
  %v3559 = vunpack.c.h.b16 %v3460
  %v3560 = vunpack.c.l.b16 %v3461
  %v3561 = vunpack.c.l.b16 %v3462
  %v3562 = vunpack.c.h.b16 %v3462
  %v3563 = vunpack.c.l.b16 %v3463
  %v3564 = vunpack.c.l.b16 %v3464
  %v3565 = vunpack.c.h.b16 %v3464
  %v3566 = vunpack.c.l.b16 %v3465
  %v3567 = vunpack.c.l.b16 %v3466
  %v3568 = vunpack.c.h.b16 %v3466
  %v3569 = vunpack.c.l.b16 %v3467
  %v3570 = vunpack.c.l.b16 %v3468
  %v3571 = vunpack.c.h.b16 %v3468
  %v3572 = vunpack.c.l.b16 %v3469
  %v3573 = vunpack.c.l.b16 %v3470
  %v3574 = vunpack.c.h.b16 %v3470
  %v3575 = vunpack.c.l.b16 %v3471
  %v3576 = vpack.c.b16 %v3531, %v3528
  %v3577 = vpack.c.b16 %v3532, %v3529
  %v3578 = vpack.c.b16 %v3533, %v3530
  %v3579 = vpack.c.b16 %v3537, %v3534
  %v3580 = vpack.c.b16 %v3538, %v3535
  %v3581 = vpack.c.b16 %v3539, %v3536
  %v3582 = vpack.c.b16 %v3543, %v3540
  %v3583 = vpack.c.b16 %v3544, %v3541
  %v3584 = vpack.c.b16 %v3545, %v3542
  %v3585 = vpack.c.b16 %v3549, %v3546
  %v3586 = vpack.c.b16 %v3550, %v3547
  %v3587 = vpack.c.b16 %v3551, %v3548
  %v3588 = vpack.c.b16 %v3555, %v3552
  %v3589 = vpack.c.b16 %v3556, %v3553
  %v3590 = vpack.c.b16 %v3557, %v3554
  %v3591 = vpack.c.b16 %v3561, %v3558
  %v3592 = vpack.c.b16 %v3562, %v3559
  %v3593 = vpack.c.b16 %v3563, %v3560
  %v3594 = vpack.c.b16 %v3567, %v3564
  %v3595 = vpack.c.b16 %v3568, %v3565
  %v3596 = vpack.c.b16 %v3569, %v3566
  %v3597 = vpack.c.b16 %v3573, %v3570
  %v3598 = vpack.c.b16 %v3574, %v3571
  %v3599 = vpack.c.b16 %v3575, %v3572
  %3624 = vmatprep.subr.bf16.mxu0 0
  %3625 = vmatpush1.bf16.msra.mxu0 %v3472
  %3626 = vmatprep.subr.bf16.mxu0 0
  %3627 = vmatpush1.bf16.msra.mxu0 %v3473
  %3628 = vmatprep.subr.bf16.mxu0 0
  %3629 = vmatpush1.bf16.msra.mxu0 %v3474
  %3630 = vmatprep.subr.bf16.mxu0 0
  %3631 = vmatpush1.bf16.msra.mxu0 %v3475
  %3632 = vmatprep.subr.bf16.mxu0 0
  %3633 = vmatpush1.bf16.msra.mxu0 %v3476
  %3634 = vmatprep.subr.bf16.mxu0 0
  %3635 = vmatpush1.bf16.msra.mxu0 %v3477
  %3636 = vmatprep.subr.bf16.mxu0 0
  %3637 = vmatpush1.bf16.msra.mxu0 %v3478
  %3638 = vmatprep.subr.bf16.mxu0 0
  %3639 = vmatpush1.bf16.msra.mxu0 %v3479
  %3640 = vmatprep.subr.bf16.mxu0 0
  %3641 = vmatpush1.bf16.msra.mxu0 %v3480
  %3642 = vmatprep.subr.bf16.mxu0 0
  %3643 = vmatpush1.bf16.msra.mxu0 %v3481
  %3644 = vmatprep.subr.bf16.mxu0 0
  %3645 = vmatpush1.bf16.msra.mxu0 %v3482
  %3646 = vmatprep.subr.bf16.mxu0 0
  %3647 = vmatpush1.bf16.msra.mxu0 %v3483
  %3648 = vmatprep.subr.bf16.mxu0 0
  %3649 = vmatpush1.bf16.msra.mxu0 %v3484
  %3650 = vmatprep.subr.bf16.mxu0 0
  %3651 = vmatpush1.bf16.msra.mxu0 %v3485
  %3652 = vmatprep.subr.bf16.mxu0 0
  %3653 = vmatpush1.bf16.msra.mxu0 %v3486
  %3654 = vmatprep.subr.bf16.mxu0 0
  %3655 = vmatpush1.bf16.msra.mxu0 %v3487
  %3656 = vmatprep.mubr.bf16.mxu0 %v3577
  %3657 = vmatmul.mubr.bf16.gmra.mrb[0].mxu0 %v3576
  %v3658 = vpop.f32.mrb[0].mxu0
  %v3659 = vadd.f32 0.0, %v3658
  %v3660 = vpop.f32.mrb[0].mxu0
  %v3661 = vpop.f32.mrb[0].mxu0
  %v3662 = vadd.f32 0.0, %v3661
  %v3663 = vpop.f32.mrb[0].mxu0
  %3664 = vmatprep.mubr.bf16.mxu0 %v3580
  %3665 = vmatmul.mubr.bf16.gmra.mrb[0].mxu0 %v3579
  %v3666 = vpop.f32.mrb[0].mxu0
  %v3667 = vadd.f32 0.0, %v3666
  %v3668 = vpop.f32.mrb[0].mxu0
  %v3669 = vpop.f32.mrb[0].mxu0
  %v3670 = vadd.f32 0.0, %v3669
  %v3671 = vpop.f32.mrb[0].mxu0
  %3672 = vmatprep.mubr.bf16.mxu0 %v3583
  %3673 = vmatmul.mubr.bf16.gmra.mrb[0].mxu0 %v3582
  %v3674 = vpop.f32.mrb[0].mxu0
  %v3675 = vadd.f32 0.0, %v3674
  %v3676 = vpop.f32.mrb[0].mxu0
  %v3677 = vpop.f32.mrb[0].mxu0
  %v3678 = vadd.f32 0.0, %v3677
  %v3679 = vpop.f32.mrb[0].mxu0
  %3680 = vmatprep.mubr.bf16.mxu0 %v3586
  %3681 = vmatmul.mubr.bf16.gmra.mrb[0].mxu0 %v3585
  %v3682 = vpop.f32.mrb[0].mxu0
  %v3683 = vadd.f32 0.0, %v3682
  %v3684 = vpop.f32.mrb[0].mxu0
  %v3685 = vpop.f32.mrb[0].mxu0
  %v3686 = vadd.f32 0.0, %v3685
  %v3687 = vpop.f32.mrb[0].mxu0
  %3688 = vmatprep.mubr.bf16.mxu0 %v3589
  %3689 = vmatmul.mubr.bf16.gmra.mrb[0].mxu0 %v3588
  %v3690 = vpop.f32.mrb[0].mxu0
  %v3691 = vadd.f32 0.0, %v3690
  %v3692 = vpop.f32.mrb[0].mxu0
  %v3693 = vpop.f32.mrb[0].mxu0
  %v3694 = vadd.f32 0.0, %v3693
  %v3695 = vpop.f32.mrb[0].mxu0
  %3696 = vmatprep.mubr.bf16.mxu0 %v3592
  %3697 = vmatmul.mubr.bf16.gmra.mrb[0].mxu0 %v3591
  %v3698 = vpop.f32.mrb[0].mxu0
  %v3699 = vadd.f32 0.0, %v3698
  %v3700 = vpop.f32.mrb[0].mxu0
  %v3701 = vpop.f32.mrb[0].mxu0
  %v3702 = vadd.f32 0.0, %v3701
  %v3703 = vpop.f32.mrb[0].mxu0
  %3704 = vmatprep.mubr.bf16.mxu0 %v3595
  %3705 = vmatmul.mubr.bf16.gmra.mrb[0].mxu0 %v3594
  %v3706 = vpop.f32.mrb[0].mxu0
  %v3707 = vadd.f32 0.0, %v3706
  %v3708 = vpop.f32.mrb[0].mxu0
  %v3709 = vpop.f32.mrb[0].mxu0
  %v3710 = vadd.f32 0.0, %v3709
  %v3711 = vpop.f32.mrb[0].mxu0
  %3712 = vmatprep.mubr.bf16.mxu0 %v3598
  %3713 = vmatmul.mubr.bf16.gmra.mrb[0].mxu0 %v3597
  %v3714 = vpop.f32.mrb[0].mxu0
  %v3715 = vadd.f32 0.0, %v3714
  %v3716 = vpop.f32.mrb[0].mxu0
  %v3717 = vpop.f32.mrb[0].mxu0
  %v3718 = vadd.f32 0.0, %v3717
  %v3719 = vpop.f32.mrb[0].mxu0
  %3720 = vdwg.mxu0
  %3721 = vmatprep.subr.bf16.mxu0 0
  %3722 = vmatpush1.bf16.msra.mxu0 %v3488
  %3723 = vmatprep.subr.bf16.mxu0 0
  %3724 = vmatpush1.bf16.msra.mxu0 %v3489
  %3725 = vmatprep.subr.bf16.mxu0 0
  %3726 = vmatpush1.bf16.msra.mxu0 %v3490
  %3727 = vmatprep.subr.bf16.mxu0 0
  %3728 = vmatpush1.bf16.msra.mxu0 %v3491
  %3729 = vmatprep.subr.bf16.mxu0 0
  %3730 = vmatpush1.bf16.msra.mxu0 %v3492
  %3731 = vmatprep.subr.bf16.mxu0 0
  %3732 = vmatpush1.bf16.msra.mxu0 %v3493
  %3733 = vmatprep.subr.bf16.mxu0 0
  %3734 = vmatpush1.bf16.msra.mxu0 %v3494
  %3735 = vmatprep.subr.bf16.mxu0 0
  %3736 = vmatpush1.bf16.msra.mxu0 %v3495
  %3737 = vmatprep.subr.bf16.mxu0 0
  %3738 = vmatpush1.bf16.msra.mxu0 0
  %3739 = vmatprep.subr.bf16.mxu0 0
  %3740 = vmatpush1.bf16.msra.mxu0 0
  %3741 = vmatprep.subr.bf16.mxu0 0
  %3742 = vmatpush1.bf16.msra.mxu0 0
  %3743 = vmatprep.subr.bf16.mxu0 0
  %3744 = vmatpush1.bf16.msra.mxu0 0
  %3745 = vmatprep.subr.bf16.mxu0 0
  %3746 = vmatpush1.bf16.msra.mxu0 0
  %3747 = vmatprep.subr.bf16.mxu0 0
  %3748 = vmatpush1.bf16.msra.mxu0 0
  %3749 = vmatprep.subr.bf16.mxu0 0
  %3750 = vmatpush1.bf16.msra.mxu0 0
  %3751 = vmatprep.subr.bf16.mxu0 0
  %3752 = vmatpush1.bf16.msra.mxu0 0
  %3753 = vmatprep.mubr.bf16.mxu0 0
  %3754 = vmatmul.mubr.bf16.gmra.mrb[0].mxu0 %v3578
  %v3755 = vpop.f32.mrb[0].mxu0
  %v3756 = vadd.f32 %v3659, %v3755
  %v3757 = vpop.f32.mrb[0].mxu0
  %v3758 = vpop.f32.mrb[0].mxu0
  %v3759 = vadd.f32 %v3662, %v3758
  %v3760 = vpop.f32.mrb[0].mxu0
  %3761 = vmatprep.mubr.bf16.mxu0 0
  %3762 = vmatmul.mubr.bf16.gmra.mrb[0].mxu0 %v3581
  %v3763 = vpop.f32.mrb[0].mxu0
  %v3764 = vadd.f32 %v3667, %v3763
  %v3765 = vpop.f32.mrb[0].mxu0
  %v3766 = vpop.f32.mrb[0].mxu0
  %v3767 = vadd.f32 %v3670, %v3766
  %v3768 = vpop.f32.mrb[0].mxu0
  %3769 = vmatprep.mubr.bf16.mxu0 0
  %3770 = vmatmul.mubr.bf16.gmra.mrb[0].mxu0 %v3584
  %v3771 = vpop.f32.mrb[0].mxu0
  %v3772 = vadd.f32 %v3675, %v3771
  %v3773 = vpop.f32.mrb[0].mxu0
  %v3774 = vpop.f32.mrb[0].mxu0
  %v3775 = vadd.f32 %v3678, %v3774
  %v3776 = vpop.f32.mrb[0].mxu0
  %3777 = vmatprep.mubr.bf16.mxu0 0
  %3778 = vmatmul.mubr.bf16.gmra.mrb[0].mxu0 %v3587
  %v3779 = vpop.f32.mrb[0].mxu0
  %v3780 = vadd.f32 %v3683, %v3779
  %v3781 = vpop.f32.mrb[0].mxu0
  %v3782 = vpop.f32.mrb[0].mxu0
  %v3783 = vadd.f32 %v3686, %v3782
  %v3784 = vpop.f32.mrb[0].mxu0
  %3785 = vmatprep.mubr.bf16.mxu0 0
  %3786 = vmatmul.mubr.bf16.gmra.mrb[0].mxu0 %v3590
  %v3787 = vpop.f32.mrb[0].mxu0
  %v3788 = vadd.f32 %v3691, %v3787
  %v3789 = vpop.f32.mrb[0].mxu0
  %v3790 = vpop.f32.mrb[0].mxu0
  %v3791 = vadd.f32 %v3694, %v3790
  %v3792 = vpop.f32.mrb[0].mxu0
  %3793 = vmatprep.mubr.bf16.mxu0 0
  %3794 = vmatmul.mubr.bf16.gmra.mrb[0].mxu0 %v3593
  %v3795 = vpop.f32.mrb[0].mxu0
  %v3796 = vadd.f32 %v3699, %v3795
  %v3797 = vpop.f32.mrb[0].mxu0
  %v3798 = vpop.f32.mrb[0].mxu0
  %v3799 = vadd.f32 %v3702, %v3798
  %v3800 = vpop.f32.mrb[0].mxu0
  %3801 = vmatprep.mubr.bf16.mxu0 0
  %3802 = vmatmul.mubr.bf16.gmra.mrb[0].mxu0 %v3596
  %v3803 = vpop.f32.mrb[0].mxu0
  %v3804 = vadd.f32 %v3707, %v3803
  %v3805 = vpop.f32.mrb[0].mxu0
  %v3806 = vpop.f32.mrb[0].mxu0
  %v3807 = vadd.f32 %v3710, %v3806
  %v3808 = vpop.f32.mrb[0].mxu0
  %3809 = vmatprep.mubr.bf16.mxu0 0
  %3810 = vmatmul.mubr.bf16.gmra.mrb[0].mxu0 %v3599
  %v3811 = vpop.f32.mrb[0].mxu0
  %v3812 = vadd.f32 %v3715, %v3811
  %v3813 = vpop.f32.mrb[0].mxu0
  %v3814 = vpop.f32.mrb[0].mxu0
  %v3815 = vadd.f32 %v3718, %v3814
  %v3816 = vpop.f32.mrb[0].mxu0
  %3817 = vdwg.mxu0
  %v3818 = vadd.f32 %v3756, %v3759
  %v3819 = vadd.f32 %v3818, %v3764
  %v3820 = vadd.f32 %v3819, %v3767
  %v3821 = vadd.f32 %v3820, %v3772
  %v3822 = vadd.f32 %v3821, %v3775
  %v3823 = vadd.f32 %v3822, %v3780
  %v3824 = vadd.f32 %v3823, %v3783
  %v3825 = vadd.f32 %v3824, %v3788
  %v3826 = vadd.f32 %v3825, %v3791
  %v3827 = vadd.f32 %v3826, %v3796
  %v3828 = vadd.f32 %v3827, %v3799
  %v3829 = vadd.f32 %v3828, %v3804
  %v3830 = vadd.f32 %v3829, %v3807
  %v3831 = vadd.f32 %v3830, %v3812
  %v3832 = vadd.f32 %v3831, %v3815
  %v3833 = vrot.slane %v3832, 4
  %v3834 = vadd.f32 %v3832, %v3833
  %v3835 = vrot.slane %v3834, 2
  %v3836 = vadd.f32 %v3834, %v3835
  %v3837 = vrot.slane %v3836, 1
  %v3838 = vadd.f32 %v3836, %v3837
  %v3839 = vmul.f32 %v3838, 0.01724138
  %v3840 = vsub.f32 %v3756, %v3839
  %v3841 = vsub.f32 %v3759, %v3839
  %v3842 = vsub.f32 %v3764, %v3839
  %v3843 = vsub.f32 %v3767, %v3839
  %v3844 = vsub.f32 %v3772, %v3839
  %v3845 = vsub.f32 %v3775, %v3839
  %v3846 = vsub.f32 %v3780, %v3839
  %v3847 = vsub.f32 %v3783, %v3839
  %v3848 = vsub.f32 %v3788, %v3839
  %v3849 = vsub.f32 %v3791, %v3839
  %v3850 = vsub.f32 %v3796, %v3839
  %v3851 = vsub.f32 %v3799, %v3839
  %v3852 = vsub.f32 %v3804, %v3839
  %v3853 = vsub.f32 %v3807, %v3839
  %v3854 = vsub.f32 %v3812, %v3839
  %v3855 = vsub.f32 %v3815, %v3839
  %v3856 = vmul.f32 %v3840, %v3840
  %v3857 = vmul.f32 %v3841, %v3841
  %v3858 = vmul.f32 %v3842, %v3842
  %v3859 = vmul.f32 %v3843, %v3843
  %v3860 = vmul.f32 %v3844, %v3844
  %v3861 = vmul.f32 %v3845, %v3845
  %v3862 = vmul.f32 %v3846, %v3846
  %v3863 = vmul.f32 %v3847, %v3847
  %v3864 = vmul.f32 %v3848, %v3848
  %v3865 = vmul.f32 %v3849, %v3849
  %v3866 = vmul.f32 %v3850, %v3850
  %v3867 = vmul.f32 %v3851, %v3851
  %v3868 = vmul.f32 %v3852, %v3852
  %v3869 = vmul.f32 %v3853, %v3853
  %v3870 = vmul.f32 %v3854, %v3854
  %v3871 = vmul.f32 %v3855, %v3855
  %v3872 = vadd.f32 %v3856, %v3857
  %v3873 = vadd.f32 %v3872, %v3858
  %v3874 = vadd.f32 %v3873, %v3859
  %v3875 = vadd.f32 %v3874, %v3860
  %v3876 = vadd.f32 %v3875, %v3861
  %v3877 = vadd.f32 %v3876, %v3862
  %v3878 = vadd.f32 %v3877, %v3863
  %v3879 = vadd.f32 %v3878, %v3864
  %v3880 = vadd.f32 %v3879, %v3865
  %v3881 = vadd.f32 %v3880, %v3866
  %v3882 = vadd.f32 %v3881, %v3867
  %v3883 = vadd.f32 %v3882, %v3868
  %v3884 = vadd.f32 %v3883, %v3869
  %v3885 = vadd.f32 %v3884, %v3870
  %v3886 = vadd.f32 %v3885, %v3871
  %v3887 = vrot.slane %v3886, 4
  %v3888 = vadd.f32 %v3886, %v3887
  %v3889 = vrot.slane %v3888, 2
  %v3890 = vadd.f32 %v3888, %v3889
  %v3891 = vrot.slane %v3890, 1
  %v3892 = vadd.f32 %v3890, %v3891
  %v3893 = vmul.f32 %v3839, %v3839
  %v3894 = vmul.f32 %v3893, 70.0
  %v3895 = vsub.f32 %v3892, %v3894
  %v3896 = vmul.f32 %v3895, 0.01724138
  %v3897 = vmax.f32 %v3896, 0.0
  %v3898 = vld [vmem:[%s7] sm:$0x1]
  %v3899 = vadd.f32 %v3897, 1e-05
  %v3900 = vrsqrt.pop %v3899
  %v3901 = vmul.f32 %v3898, %v3900
  %v3903 = vlaneseq
  %v3904 = vshrl.u32 %v3903, 7
  %v3905 = vsub.s32 0, %v3904
  %v3906 = vrot.slane %v3901, %v3905
  %v3908 = vmul.f32 %v3840, %v3906
  %v3909 = vmul.f32 %v3841, %v3906
  %v3910 = vmul.f32 %v3842, %v3906
  %v3911 = vmul.f32 %v3843, %v3906
  %v3912 = vmul.f32 %v3844, %v3906
  %v3913 = vmul.f32 %v3845, %v3906
  %v3914 = vmul.f32 %v3846, %v3906
  %v3915 = vmul.f32 %v3847, %v3906
  %v3916 = vmul.f32 %v3848, %v3906
  %v3917 = vmul.f32 %v3849, %v3906
  %v3918 = vmul.f32 %v3850, %v3906
  %v3919 = vmul.f32 %v3851, %v3906
  %v3920 = vmul.f32 %v3852, %v3906
  %v3921 = vmul.f32 %v3853, %v3906
  %v3922 = vmul.f32 %v3854, %v3906
  %v3923 = vmul.f32 %v3855, %v3906
  %v3924 = vld [vmem:[%s8] sm:$0x1]
  %v3926 = vlaneseq
  %v3927 = vshrl.u32 %v3926, 7
  %v3928 = vsub.s32 0, %v3927
  %v3929 = vrot.slane %v3924, %v3928
  %v3931 = vadd.f32 %v3908, %v3929
  %v3932 = vadd.f32 %v3909, %v3929
  %v3933 = vadd.f32 %v3910, %v3929
  %v3934 = vadd.f32 %v3911, %v3929
  %v3935 = vadd.f32 %v3912, %v3929
  %v3936 = vadd.f32 %v3913, %v3929
  %v3937 = vadd.f32 %v3914, %v3929
  %v3938 = vadd.f32 %v3915, %v3929
  %v3939 = vadd.f32 %v3916, %v3929
  %v3940 = vadd.f32 %v3917, %v3929
  %v3941 = vadd.f32 %v3918, %v3929
  %v3942 = vadd.f32 %v3919, %v3929
  %v3943 = vadd.f32 %v3920, %v3929
  %v3944 = vadd.f32 %v3921, %v3929
  %v3945 = vadd.f32 %v3922, %v3929
  %v3946 = vadd.f32 %v3923, %v3929
  %v3947 = vmax.f32 %v3931, 0.0
  %v3948 = vmax.f32 %v3932, 0.0
  %v3949 = vmax.f32 %v3933, 0.0
  %v3950 = vmax.f32 %v3934, 0.0
  %v3951 = vmax.f32 %v3935, 0.0
  %v3952 = vmax.f32 %v3936, 0.0
  %v3953 = vmax.f32 %v3937, 0.0
  %v3954 = vmax.f32 %v3938, 0.0
  %v3955 = vmax.f32 %v3939, 0.0
  %v3956 = vmax.f32 %v3940, 0.0
  %v3957 = vmax.f32 %v3941, 0.0
  %v3958 = vmax.f32 %v3942, 0.0
  %v3959 = vmax.f32 %v3943, 0.0
  %v3960 = vmax.f32 %v3944, 0.0
  %v3961 = vmax.f32 %v3945, 0.0
  %v3962 = vmax.f32 %v3946, 0.0
  %v3963 = vpack.c.bf16 %v3948, %v3947
  %v3964 = vpack.c.bf16 %v3950, %v3949
  %v3965 = vpack.c.bf16 %v3952, %v3951
  %v3966 = vpack.c.bf16 %v3954, %v3953
  %v3967 = vpack.c.bf16 %v3956, %v3955
  %v3968 = vpack.c.bf16 %v3958, %v3957
  %v3969 = vpack.c.bf16 %v3960, %v3959
  %v3970 = vpack.c.bf16 %v3962, %v3961
  %v3971 = vld [vmem:[%s9] sm:$0xf]
  %v3972 = vld [vmem:[%s9 + $0x4] sm:$0xf]
  %v3973 = vld [vmem:[%s9 + $0x8] sm:$0xf]
  %v3974 = vld [vmem:[%s9 + $0xc] sm:$0xf]
  %v3975 = vld [vmem:[%s9 + $0x10] sm:$0xf]
  %v3976 = vld [vmem:[%s9 + $0x14] sm:$0xf]
  %v3977 = vld [vmem:[%s9 + $0x18] sm:$0xf]
  %v3978 = vld [vmem:[%s9 + $0x1c] sm:$0xf]
  %v3979 = vld [vmem:[%s9 + $0x20] sm:$0xf]
  %v3980 = vld [vmem:[%s9 + $0x24] sm:$0xf]
  %v3981 = vld [vmem:[%s9 + $0x28] sm:$0xf]
  %v3982 = vld [vmem:[%s9 + $0x2c] sm:$0xf]
  %v3983 = vld [vmem:[%s9 + $0x30] sm:$0xf]
  %v3984 = vld [vmem:[%s9 + $0x34] sm:$0xf]
  %v3985 = vld [vmem:[%s9 + $0x38] sm:$0xf]
  %v3986 = vld [vmem:[%s9 + $0x3c] sm:$0xf]
  %v4003 = vunpack.c.l.b16 %v3971
  %v4004 = vunpack.c.l.b16 %v3972
  %v4005 = vunpack.c.l.b16 %v3973
  %v4006 = vunpack.c.l.b16 %v3974
  %v4007 = vunpack.c.l.b16 %v3975
  %v4008 = vunpack.c.l.b16 %v3976
  %v4009 = vunpack.c.l.b16 %v3977
  %v4010 = vunpack.c.l.b16 %v3978
  %v4011 = vunpack.c.l.b16 %v3979
  %v4012 = vunpack.c.l.b16 %v3980
  %v4013 = vunpack.c.l.b16 %v3981
  %v4014 = vunpack.c.l.b16 %v3982
  %v4015 = vunpack.c.l.b16 %v3983
  %v4016 = vunpack.c.l.b16 %v3984
  %v4017 = vunpack.c.l.b16 %v3985
  %v4018 = vunpack.c.l.b16 %v3986
  %v4019 = vpack.c.b16 %v4004, %v4003
  %v4020 = vpack.c.b16 %v4006, %v4005
  %v4021 = vpack.c.b16 %v4008, %v4007
  %v4022 = vpack.c.b16 %v4010, %v4009
  %v4023 = vpack.c.b16 %v4012, %v4011
  %v4024 = vpack.c.b16 %v4014, %v4013
  %v4025 = vpack.c.b16 %v4016, %v4015
  %v4026 = vpack.c.b16 %v4018, %v4017
  %4035 = vmatprep.subr.bf16.mxu0 0
  %4036 = vmatpush1.bf16.msra.mxu0 %v3963
  %4037 = vmatprep.subr.bf16.mxu0 0
  %4038 = vmatpush1.bf16.msra.mxu0 %v3964
  %4039 = vmatprep.subr.bf16.mxu0 0
  %4040 = vmatpush1.bf16.msra.mxu0 %v3965
  %4041 = vmatprep.subr.bf16.mxu0 0
  %4042 = vmatpush1.bf16.msra.mxu0 %v3966
  %4043 = vmatprep.subr.bf16.mxu0 0
  %4044 = vmatpush1.bf16.msra.mxu0 %v3967
  %4045 = vmatprep.subr.bf16.mxu0 0
  %4046 = vmatpush1.bf16.msra.mxu0 %v3968
  %4047 = vmatprep.subr.bf16.mxu0 0
  %4048 = vmatpush1.bf16.msra.mxu0 %v3969
  %4049 = vmatprep.subr.bf16.mxu0 0
  %4050 = vmatpush1.bf16.msra.mxu0 %v3970
  %4051 = vmatprep.subr.bf16.mxu0 0
  %4052 = vmatpush1.bf16.msra.mxu0 0
  %4053 = vmatprep.subr.bf16.mxu0 0
  %4054 = vmatpush1.bf16.msra.mxu0 0
  %4055 = vmatprep.subr.bf16.mxu0 0
  %4056 = vmatpush1.bf16.msra.mxu0 0
  %4057 = vmatprep.subr.bf16.mxu0 0
  %4058 = vmatpush1.bf16.msra.mxu0 0
  %4059 = vmatprep.subr.bf16.mxu0 0
  %4060 = vmatpush1.bf16.msra.mxu0 0
  %4061 = vmatprep.subr.bf16.mxu0 0
  %4062 = vmatpush1.bf16.msra.mxu0 0
  %4063 = vmatprep.subr.bf16.mxu0 0
  %4064 = vmatpush1.bf16.msra.mxu0 0
  %4065 = vmatprep.subr.bf16.mxu0 0
  %4066 = vmatpush1.bf16.msra.mxu0 0
  %4067 = vmatprep.mubr.bf16.mxu0 0
  %4068 = vmatmul.mubr.bf16.gmra.mrb[0].mxu0 %v4019
  %v4069 = vpop.f32.mrb[0].mxu0
  %v4070 = vadd.f32 0.0, %v4069
  %v4071 = vpop.f32.mrb[0].mxu0
  %v4072 = vpop.f32.mrb[0].mxu0
  %v4073 = vadd.f32 0.0, %v4072
  %v4074 = vpop.f32.mrb[0].mxu0
  %4075 = vmatprep.mubr.bf16.mxu0 0
  %4076 = vmatmul.mubr.bf16.gmra.mrb[0].mxu0 %v4020
  %v4077 = vpop.f32.mrb[0].mxu0
  %v4078 = vadd.f32 0.0, %v4077
  %v4079 = vpop.f32.mrb[0].mxu0
  %v4080 = vpop.f32.mrb[0].mxu0
  %v4081 = vadd.f32 0.0, %v4080
  %v4082 = vpop.f32.mrb[0].mxu0
  %4083 = vmatprep.mubr.bf16.mxu0 0
  %4084 = vmatmul.mubr.bf16.gmra.mrb[0].mxu0 %v4021
  %v4085 = vpop.f32.mrb[0].mxu0
  %v4086 = vadd.f32 0.0, %v4085
  %v4087 = vpop.f32.mrb[0].mxu0
  %v4088 = vpop.f32.mrb[0].mxu0
  %v4089 = vadd.f32 0.0, %v4088
  %v4090 = vpop.f32.mrb[0].mxu0
  %4091 = vmatprep.mubr.bf16.mxu0 0
  %4092 = vmatmul.mubr.bf16.gmra.mrb[0].mxu0 %v4022
  %v4093 = vpop.f32.mrb[0].mxu0
  %v4094 = vadd.f32 0.0, %v4093
  %v4095 = vpop.f32.mrb[0].mxu0
  %v4096 = vpop.f32.mrb[0].mxu0
  %v4097 = vadd.f32 0.0, %v4096
  %v4098 = vpop.f32.mrb[0].mxu0
  %4099 = vmatprep.mubr.bf16.mxu0 0
  %4100 = vmatmul.mubr.bf16.gmra.mrb[0].mxu0 %v4023
  %v4101 = vpop.f32.mrb[0].mxu0
  %v4102 = vadd.f32 0.0, %v4101
  %v4103 = vpop.f32.mrb[0].mxu0
  %v4104 = vpop.f32.mrb[0].mxu0
  %v4105 = vadd.f32 0.0, %v4104
  %v4106 = vpop.f32.mrb[0].mxu0
  %4107 = vmatprep.mubr.bf16.mxu0 0
  %4108 = vmatmul.mubr.bf16.gmra.mrb[0].mxu0 %v4024
  %v4109 = vpop.f32.mrb[0].mxu0
  %v4110 = vadd.f32 0.0, %v4109
  %v4111 = vpop.f32.mrb[0].mxu0
  %v4112 = vpop.f32.mrb[0].mxu0
  %v4113 = vadd.f32 0.0, %v4112
  %v4114 = vpop.f32.mrb[0].mxu0
  %4115 = vmatprep.mubr.bf16.mxu0 0
  %4116 = vmatmul.mubr.bf16.gmra.mrb[0].mxu0 %v4025
  %v4117 = vpop.f32.mrb[0].mxu0
  %v4118 = vadd.f32 0.0, %v4117
  %v4119 = vpop.f32.mrb[0].mxu0
  %v4120 = vpop.f32.mrb[0].mxu0
  %v4121 = vadd.f32 0.0, %v4120
  %v4122 = vpop.f32.mrb[0].mxu0
  %4123 = vmatprep.mubr.bf16.mxu0 0
  %4124 = vmatmul.mubr.bf16.gmra.mrb[0].mxu0 %v4026
  %v4125 = vpop.f32.mrb[0].mxu0
  %v4126 = vadd.f32 0.0, %v4125
  %v4127 = vpop.f32.mrb[0].mxu0
  %v4128 = vpop.f32.mrb[0].mxu0
  %v4129 = vadd.f32 0.0, %v4128
  %v4130 = vpop.f32.mrb[0].mxu0
  %4131 = vdwg.mxu0
  %v4132 = vpack.c.bf16 %v4073, %v4070
  %v4133 = vpack.c.bf16 %v4081, %v4078
  %v4134 = vpack.c.bf16 %v4089, %v4086
  %v4135 = vpack.c.bf16 %v4097, %v4094
  %v4136 = vpack.c.bf16 %v4105, %v4102
  %v4137 = vpack.c.bf16 %v4113, %v4110
  %v4138 = vpack.c.bf16 %v4121, %v4118
  %v4139 = vpack.c.bf16 %v4129, %v4126
  %4140 = vst [vmem:[#allocation2] sm:$0xff] %v4132
  %4141 = vst [vmem:[#allocation2 + $0x18] sm:$0xff] %v4133
  %4142 = vst [vmem:[#allocation2 + $0x30] sm:$0xff] %v4134
  %4143 = vst [vmem:[#allocation2 + $0x48] sm:$0xff] %v4135
  %4144 = vst [vmem:[#allocation2 + $0x60] sm:$0xff] %v4136
  %4145 = vst [vmem:[#allocation2 + $0x78] sm:$0xff] %v4137
  %4146 = vst [vmem:[#allocation2 + $0x90] sm:$0xff] %v4138
  %4147 = vst [vmem:[#allocation2 + $0xa8] sm:$0xff] %v4139
  %s4148 = scalar_lea.vmem %s9, 64
  %v4149 = vld [vmem:[%s4148] sm:$0xf]
  %v4150 = vld [vmem:[%s4148 + $0x4] sm:$0xf]
  %v4151 = vld [vmem:[%s4148 + $0x8] sm:$0xf]
  %v4152 = vld [vmem:[%s4148 + $0xc] sm:$0xf]
  %v4153 = vld [vmem:[%s4148 + $0x10] sm:$0xf]
  %v4154 = vld [vmem:[%s4148 + $0x14] sm:$0xf]
  %v4155 = vld [vmem:[%s4148 + $0x18] sm:$0xf]
  %v4156 = vld [vmem:[%s4148 + $0x1c] sm:$0xf]
  %v4157 = vld [vmem:[%s4148 + $0x20] sm:$0xf]
  %v4158 = vld [vmem:[%s4148 + $0x24] sm:$0xf]
  %v4159 = vld [vmem:[%s4148 + $0x28] sm:$0xf]
  %v4160 = vld [vmem:[%s4148 + $0x2c] sm:$0xf]
  %v4161 = vld [vmem:[%s4148 + $0x30] sm:$0xf]
  %v4162 = vld [vmem:[%s4148 + $0x34] sm:$0xf]
  %v4163 = vld [vmem:[%s4148 + $0x38] sm:$0xf]
  %v4164 = vld [vmem:[%s4148 + $0x3c] sm:$0xf]
  %v4181 = vunpack.c.l.b16 %v4149
  %v4182 = vunpack.c.l.b16 %v4150
  %v4183 = vunpack.c.l.b16 %v4151
  %v4184 = vunpack.c.l.b16 %v4152
  %v4185 = vunpack.c.l.b16 %v4153
  %v4186 = vunpack.c.l.b16 %v4154
  %v4187 = vunpack.c.l.b16 %v4155
  %v4188 = vunpack.c.l.b16 %v4156
  %v4189 = vunpack.c.l.b16 %v4157
  %v4190 = vunpack.c.l.b16 %v4158
  %v4191 = vunpack.c.l.b16 %v4159
  %v4192 = vunpack.c.l.b16 %v4160
  %v4193 = vunpack.c.l.b16 %v4161
  %v4194 = vunpack.c.l.b16 %v4162
  %v4195 = vunpack.c.l.b16 %v4163
  %v4196 = vunpack.c.l.b16 %v4164
  %v4197 = vpack.c.b16 %v4182, %v4181
  %v4198 = vpack.c.b16 %v4184, %v4183
  %v4199 = vpack.c.b16 %v4186, %v4185
  %v4200 = vpack.c.b16 %v4188, %v4187
  %v4201 = vpack.c.b16 %v4190, %v4189
  %v4202 = vpack.c.b16 %v4192, %v4191
  %v4203 = vpack.c.b16 %v4194, %v4193
  %v4204 = vpack.c.b16 %v4196, %v4195
  %4213 = vmatprep.subr.bf16.mxu0 0
  %4214 = vmatpush1.bf16.msra.mxu0 %v3963
  %4215 = vmatprep.subr.bf16.mxu0 0
  %4216 = vmatpush1.bf16.msra.mxu0 %v3964
  %4217 = vmatprep.subr.bf16.mxu0 0
  %4218 = vmatpush1.bf16.msra.mxu0 %v3965
  %4219 = vmatprep.subr.bf16.mxu0 0
  %4220 = vmatpush1.bf16.msra.mxu0 %v3966
  %4221 = vmatprep.subr.bf16.mxu0 0
  %4222 = vmatpush1.bf16.msra.mxu0 %v3967
  %4223 = vmatprep.subr.bf16.mxu0 0
  %4224 = vmatpush1.bf16.msra.mxu0 %v3968
  %4225 = vmatprep.subr.bf16.mxu0 0
  %4226 = vmatpush1.bf16.msra.mxu0 %v3969
  %4227 = vmatprep.subr.bf16.mxu0 0
  %4228 = vmatpush1.bf16.msra.mxu0 %v3970
  %4229 = vmatprep.subr.bf16.mxu0 0
  %4230 = vmatpush1.bf16.msra.mxu0 0
  %4231 = vmatprep.subr.bf16.mxu0 0
  %4232 = vmatpush1.bf16.msra.mxu0 0
  %4233 = vmatprep.subr.bf16.mxu0 0
  %4234 = vmatpush1.bf16.msra.mxu0 0
  %4235 = vmatprep.subr.bf16.mxu0 0
  %4236 = vmatpush1.bf16.msra.mxu0 0
  %4237 = vmatprep.subr.bf16.mxu0 0
  %4238 = vmatpush1.bf16.msra.mxu0 0
  %4239 = vmatprep.subr.bf16.mxu0 0
  %4240 = vmatpush1.bf16.msra.mxu0 0
  %4241 = vmatprep.subr.bf16.mxu0 0
  %4242 = vmatpush1.bf16.msra.mxu0 0
  %4243 = vmatprep.subr.bf16.mxu0 0
  %4244 = vmatpush1.bf16.msra.mxu0 0
  %4245 = vmatprep.mubr.bf16.mxu0 0
  %4246 = vmatmul.mubr.bf16.gmra.mrb[0].mxu0 %v4197
  %v4247 = vpop.f32.mrb[0].mxu0
  %v4248 = vadd.f32 0.0, %v4247
  %v4249 = vpop.f32.mrb[0].mxu0
  %v4250 = vpop.f32.mrb[0].mxu0
  %v4251 = vadd.f32 0.0, %v4250
  %v4252 = vpop.f32.mrb[0].mxu0
  %4253 = vmatprep.mubr.bf16.mxu0 0
  %4254 = vmatmul.mubr.bf16.gmra.mrb[0].mxu0 %v4198
  %v4255 = vpop.f32.mrb[0].mxu0
  %v4256 = vadd.f32 0.0, %v4255
  %v4257 = vpop.f32.mrb[0].mxu0
  %v4258 = vpop.f32.mrb[0].mxu0
  %v4259 = vadd.f32 0.0, %v4258
  %v4260 = vpop.f32.mrb[0].mxu0
  %4261 = vmatprep.mubr.bf16.mxu0 0
  %4262 = vmatmul.mubr.bf16.gmra.mrb[0].mxu0 %v4199
  %v4263 = vpop.f32.mrb[0].mxu0
  %v4264 = vadd.f32 0.0, %v4263
  %v4265 = vpop.f32.mrb[0].mxu0
  %v4266 = vpop.f32.mrb[0].mxu0
  %v4267 = vadd.f32 0.0, %v4266
  %v4268 = vpop.f32.mrb[0].mxu0
  %4269 = vmatprep.mubr.bf16.mxu0 0
  %4270 = vmatmul.mubr.bf16.gmra.mrb[0].mxu0 %v4200
  %v4271 = vpop.f32.mrb[0].mxu0
  %v4272 = vadd.f32 0.0, %v4271
  %v4273 = vpop.f32.mrb[0].mxu0
  %v4274 = vpop.f32.mrb[0].mxu0
  %v4275 = vadd.f32 0.0, %v4274
  %v4276 = vpop.f32.mrb[0].mxu0
  %4277 = vmatprep.mubr.bf16.mxu0 0
  %4278 = vmatmul.mubr.bf16.gmra.mrb[0].mxu0 %v4201
  %v4279 = vpop.f32.mrb[0].mxu0
  %v4280 = vadd.f32 0.0, %v4279
  %v4281 = vpop.f32.mrb[0].mxu0
  %v4282 = vpop.f32.mrb[0].mxu0
  %v4283 = vadd.f32 0.0, %v4282
  %v4284 = vpop.f32.mrb[0].mxu0
  %4285 = vmatprep.mubr.bf16.mxu0 0
  %4286 = vmatmul.mubr.bf16.gmra.mrb[0].mxu0 %v4202
  %v4287 = vpop.f32.mrb[0].mxu0
  %v4288 = vadd.f32 0.0, %v4287
  %v4289 = vpop.f32.mrb[0].mxu0
  %v4290 = vpop.f32.mrb[0].mxu0
  %v4291 = vadd.f32 0.0, %v4290
  %v4292 = vpop.f32.mrb[0].mxu0
  %4293 = vmatprep.mubr.bf16.mxu0 0
  %4294 = vmatmul.mubr.bf16.gmra.mrb[0].mxu0 %v4203
  %v4295 = vpop.f32.mrb[0].mxu0
  %v4296 = vadd.f32 0.0, %v4295
  %v4297 = vpop.f32.mrb[0].mxu0
  %v4298 = vpop.f32.mrb[0].mxu0
  %v4299 = vadd.f32 0.0, %v4298
  %v4300 = vpop.f32.mrb[0].mxu0
  %4301 = vmatprep.mubr.bf16.mxu0 0
  %4302 = vmatmul.mubr.bf16.gmra.mrb[0].mxu0 %v4204
  %v4303 = vpop.f32.mrb[0].mxu0
  %v4304 = vadd.f32 0.0, %v4303
  %v4305 = vpop.f32.mrb[0].mxu0
  %v4306 = vpop.f32.mrb[0].mxu0
  %v4307 = vadd.f32 0.0, %v4306
  %v4308 = vpop.f32.mrb[0].mxu0
  %4309 = vdwg.mxu0
  %v4310 = vpack.c.bf16 %v4251, %v4248
  %v4311 = vpack.c.bf16 %v4259, %v4256
  %v4312 = vpack.c.bf16 %v4267, %v4264
  %v4313 = vpack.c.bf16 %v4275, %v4272
  %v4314 = vpack.c.bf16 %v4283, %v4280
  %v4315 = vpack.c.bf16 %v4291, %v4288
  %v4316 = vpack.c.bf16 %v4299, %v4296
  %v4317 = vpack.c.bf16 %v4307, %v4304
  %4318 = vst [vmem:[#allocation2 + $0x8] sm:$0xff] %v4310
  %4319 = vst [vmem:[#allocation2 + $0x20] sm:$0xff] %v4311
  %4320 = vst [vmem:[#allocation2 + $0x38] sm:$0xff] %v4312
  %4321 = vst [vmem:[#allocation2 + $0x50] sm:$0xff] %v4313
  %4322 = vst [vmem:[#allocation2 + $0x68] sm:$0xff] %v4314
  %4323 = vst [vmem:[#allocation2 + $0x80] sm:$0xff] %v4315
  %4324 = vst [vmem:[#allocation2 + $0x98] sm:$0xff] %v4316
  %4325 = vst [vmem:[#allocation2 + $0xb0] sm:$0xff] %v4317
  %s4326 = scalar_lea.vmem %s9, 128
  %v4327 = vld [vmem:[%s4326] sm:$0xf]
  %v4328 = vld [vmem:[%s4326 + $0x4] sm:$0xf]
  %v4329 = vld [vmem:[%s4326 + $0x8] sm:$0xf]
  %v4330 = vld [vmem:[%s4326 + $0xc] sm:$0xf]
  %v4331 = vld [vmem:[%s4326 + $0x10] sm:$0xf]
  %v4332 = vld [vmem:[%s4326 + $0x14] sm:$0xf]
  %v4333 = vld [vmem:[%s4326 + $0x18] sm:$0xf]
  %v4334 = vld [vmem:[%s4326 + $0x1c] sm:$0xf]
  %v4335 = vld [vmem:[%s4326 + $0x20] sm:$0xf]
  %v4336 = vld [vmem:[%s4326 + $0x24] sm:$0xf]
  %v4337 = vld [vmem:[%s4326 + $0x28] sm:$0xf]
  %v4338 = vld [vmem:[%s4326 + $0x2c] sm:$0xf]
  %v4339 = vld [vmem:[%s4326 + $0x30] sm:$0xf]
  %v4340 = vld [vmem:[%s4326 + $0x34] sm:$0xf]
  %v4341 = vld [vmem:[%s4326 + $0x38] sm:$0xf]
  %v4342 = vld [vmem:[%s4326 + $0x3c] sm:$0xf]
  %v4359 = vunpack.c.l.b16 %v4327
  %v4360 = vunpack.c.l.b16 %v4328
  %v4361 = vunpack.c.l.b16 %v4329
  %v4362 = vunpack.c.l.b16 %v4330
  %v4363 = vunpack.c.l.b16 %v4331
  %v4364 = vunpack.c.l.b16 %v4332
  %v4365 = vunpack.c.l.b16 %v4333
  %v4366 = vunpack.c.l.b16 %v4334
  %v4367 = vunpack.c.l.b16 %v4335
  %v4368 = vunpack.c.l.b16 %v4336
  %v4369 = vunpack.c.l.b16 %v4337
  %v4370 = vunpack.c.l.b16 %v4338
  %v4371 = vunpack.c.l.b16 %v4339
  %v4372 = vunpack.c.l.b16 %v4340
  %v4373 = vunpack.c.l.b16 %v4341
  %v4374 = vunpack.c.l.b16 %v4342
  %v4375 = vpack.c.b16 %v4360, %v4359
  %v4376 = vpack.c.b16 %v4362, %v4361
  %v4377 = vpack.c.b16 %v4364, %v4363
  %v4378 = vpack.c.b16 %v4366, %v4365
  %v4379 = vpack.c.b16 %v4368, %v4367
  %v4380 = vpack.c.b16 %v4370, %v4369
  %v4381 = vpack.c.b16 %v4372, %v4371
  %v4382 = vpack.c.b16 %v4374, %v4373
  %4391 = vmatprep.subr.bf16.mxu0 0
  %4392 = vmatpush1.bf16.msra.mxu0 %v3963
  %4393 = vmatprep.subr.bf16.mxu0 0
  %4394 = vmatpush1.bf16.msra.mxu0 %v3964
  %4395 = vmatprep.subr.bf16.mxu0 0
  %4396 = vmatpush1.bf16.msra.mxu0 %v3965
  %4397 = vmatprep.subr.bf16.mxu0 0
  %4398 = vmatpush1.bf16.msra.mxu0 %v3966
  %4399 = vmatprep.subr.bf16.mxu0 0
  %4400 = vmatpush1.bf16.msra.mxu0 %v3967
  %4401 = vmatprep.subr.bf16.mxu0 0
  %4402 = vmatpush1.bf16.msra.mxu0 %v3968
  %4403 = vmatprep.subr.bf16.mxu0 0
  %4404 = vmatpush1.bf16.msra.mxu0 %v3969
  %4405 = vmatprep.subr.bf16.mxu0 0
  %4406 = vmatpush1.bf16.msra.mxu0 %v3970
  %4407 = vmatprep.subr.bf16.mxu0 0
  %4408 = vmatpush1.bf16.msra.mxu0 0
  %4409 = vmatprep.subr.bf16.mxu0 0
  %4410 = vmatpush1.bf16.msra.mxu0 0
  %4411 = vmatprep.subr.bf16.mxu0 0
  %4412 = vmatpush1.bf16.msra.mxu0 0
  %4413 = vmatprep.subr.bf16.mxu0 0
  %4414 = vmatpush1.bf16.msra.mxu0 0
  %4415 = vmatprep.subr.bf16.mxu0 0
  %4416 = vmatpush1.bf16.msra.mxu0 0
  %4417 = vmatprep.subr.bf16.mxu0 0
  %4418 = vmatpush1.bf16.msra.mxu0 0
  %4419 = vmatprep.subr.bf16.mxu0 0
  %4420 = vmatpush1.bf16.msra.mxu0 0
  %4421 = vmatprep.subr.bf16.mxu0 0
  %4422 = vmatpush1.bf16.msra.mxu0 0
  %4423 = vmatprep.mubr.bf16.mxu0 0
  %4424 = vmatmul.mubr.bf16.gmra.mrb[0].mxu0 %v4375
  %v4425 = vpop.f32.mrb[0].mxu0
  %v4426 = vadd.f32 0.0, %v4425
  %v4427 = vpop.f32.mrb[0].mxu0
  %v4428 = vpop.f32.mrb[0].mxu0
  %v4429 = vadd.f32 0.0, %v4428
  %v4430 = vpop.f32.mrb[0].mxu0
  %4431 = vmatprep.mubr.bf16.mxu0 0
  %4432 = vmatmul.mubr.bf16.gmra.mrb[0].mxu0 %v4376
  %v4433 = vpop.f32.mrb[0].mxu0
  %v4434 = vadd.f32 0.0, %v4433
  %v4435 = vpop.f32.mrb[0].mxu0
  %v4436 = vpop.f32.mrb[0].mxu0
  %v4437 = vadd.f32 0.0, %v4436
  %v4438 = vpop.f32.mrb[0].mxu0
  %4439 = vmatprep.mubr.bf16.mxu0 0
  %4440 = vmatmul.mubr.bf16.gmra.mrb[0].mxu0 %v4377
  %v4441 = vpop.f32.mrb[0].mxu0
  %v4442 = vadd.f32 0.0, %v4441
  %v4443 = vpop.f32.mrb[0].mxu0
  %v4444 = vpop.f32.mrb[0].mxu0
  %v4445 = vadd.f32 0.0, %v4444
  %v4446 = vpop.f32.mrb[0].mxu0
  %4447 = vmatprep.mubr.bf16.mxu0 0
  %4448 = vmatmul.mubr.bf16.gmra.mrb[0].mxu0 %v4378
  %v4449 = vpop.f32.mrb[0].mxu0
  %v4450 = vadd.f32 0.0, %v4449
  %v4451 = vpop.f32.mrb[0].mxu0
  %v4452 = vpop.f32.mrb[0].mxu0
  %v4453 = vadd.f32 0.0, %v4452
  %v4454 = vpop.f32.mrb[0].mxu0
  %4455 = vmatprep.mubr.bf16.mxu0 0
  %4456 = vmatmul.mubr.bf16.gmra.mrb[0].mxu0 %v4379
  %v4457 = vpop.f32.mrb[0].mxu0
  %v4458 = vadd.f32 0.0, %v4457
  %v4459 = vpop.f32.mrb[0].mxu0
  %v4460 = vpop.f32.mrb[0].mxu0
  %v4461 = vadd.f32 0.0, %v4460
  %v4462 = vpop.f32.mrb[0].mxu0
  %4463 = vmatprep.mubr.bf16.mxu0 0
  %4464 = vmatmul.mubr.bf16.gmra.mrb[0].mxu0 %v4380
  %v4465 = vpop.f32.mrb[0].mxu0
  %v4466 = vadd.f32 0.0, %v4465
  %v4467 = vpop.f32.mrb[0].mxu0
  %v4468 = vpop.f32.mrb[0].mxu0
  %v4469 = vadd.f32 0.0, %v4468
  %v4470 = vpop.f32.mrb[0].mxu0
  %4471 = vmatprep.mubr.bf16.mxu0 0
  %4472 = vmatmul.mubr.bf16.gmra.mrb[0].mxu0 %v4381
  %v4473 = vpop.f32.mrb[0].mxu0
  %v4474 = vadd.f32 0.0, %v4473
  %v4475 = vpop.f32.mrb[0].mxu0
  %v4476 = vpop.f32.mrb[0].mxu0
  %v4477 = vadd.f32 0.0, %v4476
  %v4478 = vpop.f32.mrb[0].mxu0
  %4479 = vmatprep.mubr.bf16.mxu0 0
  %4480 = vmatmul.mubr.bf16.gmra.mrb[0].mxu0 %v4382
  %v4481 = vpop.f32.mrb[0].mxu0
  %v4482 = vadd.f32 0.0, %v4481
  %v4483 = vpop.f32.mrb[0].mxu0
  %v4484 = vpop.f32.mrb[0].mxu0
  %v4485 = vadd.f32 0.0, %v4484
  %v4486 = vpop.f32.mrb[0].mxu0
  %4487 = vdwg.mxu0
  %v4488 = vpack.c.bf16 %v4429, %v4426
  %v4489 = vpack.c.bf16 %v4437, %v4434
  %v4490 = vpack.c.bf16 %v4445, %v4442
  %v4491 = vpack.c.bf16 %v4453, %v4450
  %v4492 = vpack.c.bf16 %v4461, %v4458
  %v4493 = vpack.c.bf16 %v4469, %v4466
  %v4494 = vpack.c.bf16 %v4477, %v4474
  %v4495 = vpack.c.bf16 %v4485, %v4482
  %4496 = vst [vmem:[#allocation2 + $0x10] sm:$0xff] %v4488
  %4497 = vst [vmem:[#allocation2 + $0x28] sm:$0xff] %v4489
  %4498 = vst [vmem:[#allocation2 + $0x40] sm:$0xff] %v4490
  %4499 = vst [vmem:[#allocation2 + $0x58] sm:$0xff] %v4491
  %4500 = vst [vmem:[#allocation2 + $0x70] sm:$0xff] %v4492
  %4501 = vst [vmem:[#allocation2 + $0x88] sm:$0xff] %v4493
  %4502 = vst [vmem:[#allocation2 + $0xa0] sm:$0xff] %v4494
  %4503 = vst [vmem:[#allocation2 + $0xb8] sm:$0xff] %v4495
  %v4504 = vld [vmem:[#allocation2] sm:$0xff]
  %v4505 = vld [vmem:[#allocation2 + $0x8] sm:$0xff]
  %v4506 = vld [vmem:[#allocation2 + $0x10] sm:$0xff]
  %v4507 = vld [vmem:[#allocation2 + $0x18] sm:$0xff]
  %v4508 = vld [vmem:[#allocation2 + $0x20] sm:$0xff]
  %v4509 = vld [vmem:[#allocation2 + $0x28] sm:$0xff]
  %v4510 = vld [vmem:[#allocation2 + $0x30] sm:$0xff]
  %v4511 = vld [vmem:[#allocation2 + $0x38] sm:$0xff]
  %v4512 = vld [vmem:[#allocation2 + $0x40] sm:$0xff]
  %v4513 = vld [vmem:[#allocation2 + $0x48] sm:$0xff]
  %v4514 = vld [vmem:[#allocation2 + $0x50] sm:$0xff]
  %v4515 = vld [vmem:[#allocation2 + $0x58] sm:$0xff]
  %v4516 = vld [vmem:[#allocation2 + $0x60] sm:$0xff]
  %v4517 = vld [vmem:[#allocation2 + $0x68] sm:$0xff]
  %v4518 = vld [vmem:[#allocation2 + $0x70] sm:$0xff]
  %v4519 = vld [vmem:[#allocation2 + $0x78] sm:$0xff]
  %v4520 = vld [vmem:[#allocation2 + $0x80] sm:$0xff]
  %v4521 = vld [vmem:[#allocation2 + $0x88] sm:$0xff]
  %v4522 = vld [vmem:[#allocation2 + $0x90] sm:$0xff]
  %v4523 = vld [vmem:[#allocation2 + $0x98] sm:$0xff]
  %v4524 = vld [vmem:[#allocation2 + $0xa0] sm:$0xff]
  %v4525 = vld [vmem:[#allocation2 + $0xa8] sm:$0xff]
  %v4526 = vld [vmem:[#allocation2 + $0xb0] sm:$0xff]
  %v4527 = vld [vmem:[#allocation2 + $0xb8] sm:$0xff]
  %v4528 = vld [vmem:[%s10] sm:$0xf]
  %v4529 = vld [vmem:[%s10 + $0x4] sm:$0xf]
  %v4530 = vld [vmem:[%s10 + $0x8] sm:$0xf]
  %v4531 = vld [vmem:[%s10 + $0xc] sm:$0xf]
  %v4532 = vld [vmem:[%s10 + $0x10] sm:$0xf]
  %v4533 = vld [vmem:[%s10 + $0x14] sm:$0xf]
  %v4534 = vld [vmem:[%s10 + $0x18] sm:$0xf]
  %v4535 = vld [vmem:[%s10 + $0x1c] sm:$0xf]
  %v4536 = vld [vmem:[%s10 + $0x20] sm:$0xf]
  %v4537 = vld [vmem:[%s10 + $0x24] sm:$0xf]
  %v4538 = vld [vmem:[%s10 + $0x28] sm:$0xf]
  %v4539 = vld [vmem:[%s10 + $0x2c] sm:$0xf]
  %v4540 = vld [vmem:[%s10 + $0x30] sm:$0xf]
  %v4541 = vld [vmem:[%s10 + $0x34] sm:$0xf]
  %v4542 = vld [vmem:[%s10 + $0x38] sm:$0xf]
  %v4543 = vld [vmem:[%s10 + $0x3c] sm:$0xf]
  %v4544 = vld [vmem:[%s10 + $0x40] sm:$0xf]
  %v4545 = vld [vmem:[%s10 + $0x44] sm:$0xf]
  %v4546 = vld [vmem:[%s10 + $0x48] sm:$0xf]
  %v4547 = vld [vmem:[%s10 + $0x4c] sm:$0xf]
  %v4548 = vld [vmem:[%s10 + $0x50] sm:$0xf]
  %v4549 = vld [vmem:[%s10 + $0x54] sm:$0xf]
  %v4550 = vld [vmem:[%s10 + $0x58] sm:$0xf]
  %v4551 = vld [vmem:[%s10 + $0x5c] sm:$0xf]
  %v4552 = vld [vmem:[%s10 + $0x60] sm:$0xf]
  %v4553 = vld [vmem:[%s10 + $0x64] sm:$0xf]
  %v4554 = vld [vmem:[%s10 + $0x68] sm:$0xf]
  %v4555 = vld [vmem:[%s10 + $0x6c] sm:$0xf]
  %v4556 = vld [vmem:[%s10 + $0x70] sm:$0xf]
  %v4557 = vld [vmem:[%s10 + $0x74] sm:$0xf]
  %v4558 = vld [vmem:[%s10 + $0x78] sm:$0xf]
  %v4559 = vld [vmem:[%s10 + $0x7c] sm:$0xf]
  %v4560 = vld [vmem:[%s10 + $0x80] sm:$0xf]
  %v4561 = vld [vmem:[%s10 + $0x84] sm:$0xf]
  %v4562 = vld [vmem:[%s10 + $0x88] sm:$0xf]
  %v4563 = vld [vmem:[%s10 + $0x8c] sm:$0xf]
  %v4564 = vld [vmem:[%s10 + $0x90] sm:$0xf]
  %v4565 = vld [vmem:[%s10 + $0x94] sm:$0xf]
  %v4566 = vld [vmem:[%s10 + $0x98] sm:$0xf]
  %v4567 = vld [vmem:[%s10 + $0x9c] sm:$0xf]
  %v4568 = vld [vmem:[%s10 + $0xa0] sm:$0xf]
  %v4569 = vld [vmem:[%s10 + $0xa4] sm:$0xf]
  %v4570 = vld [vmem:[%s10 + $0xa8] sm:$0xf]
  %v4571 = vld [vmem:[%s10 + $0xac] sm:$0xf]
  %v4572 = vld [vmem:[%s10 + $0xb0] sm:$0xf]
  %v4573 = vld [vmem:[%s10 + $0xb4] sm:$0xf]
  %v4574 = vld [vmem:[%s10 + $0xb8] sm:$0xf]
  %v4575 = vld [vmem:[%s10 + $0xbc] sm:$0xf]
  %v4624 = vunpack.c.l.b16 %v4528
  %v4625 = vunpack.c.l.b16 %v4529
  %v4626 = vunpack.c.l.b16 %v4530
  %v4627 = vunpack.c.l.b16 %v4531
  %v4628 = vunpack.c.l.b16 %v4532
  %v4629 = vunpack.c.l.b16 %v4533
  %v4630 = vunpack.c.l.b16 %v4534
  %v4631 = vunpack.c.l.b16 %v4535
  %v4632 = vunpack.c.l.b16 %v4536
  %v4633 = vunpack.c.l.b16 %v4537
  %v4634 = vunpack.c.l.b16 %v4538
  %v4635 = vunpack.c.l.b16 %v4539
  %v4636 = vunpack.c.l.b16 %v4540
  %v4637 = vunpack.c.l.b16 %v4541
  %v4638 = vunpack.c.l.b16 %v4542
  %v4639 = vunpack.c.l.b16 %v4543
  %v4640 = vunpack.c.l.b16 %v4544
  %v4641 = vunpack.c.l.b16 %v4545
  %v4642 = vunpack.c.l.b16 %v4546
  %v4643 = vunpack.c.l.b16 %v4547
  %v4644 = vunpack.c.l.b16 %v4548
  %v4645 = vunpack.c.l.b16 %v4549
  %v4646 = vunpack.c.l.b16 %v4550
  %v4647 = vunpack.c.l.b16 %v4551
  %v4648 = vunpack.c.l.b16 %v4552
  %v4649 = vunpack.c.l.b16 %v4553
  %v4650 = vunpack.c.l.b16 %v4554
  %v4651 = vunpack.c.l.b16 %v4555
  %v4652 = vunpack.c.l.b16 %v4556
  %v4653 = vunpack.c.l.b16 %v4557
  %v4654 = vunpack.c.l.b16 %v4558
  %v4655 = vunpack.c.l.b16 %v4559
  %v4656 = vunpack.c.l.b16 %v4560
  %v4657 = vunpack.c.l.b16 %v4561
  %v4658 = vunpack.c.l.b16 %v4562
  %v4659 = vunpack.c.l.b16 %v4563
  %v4660 = vunpack.c.l.b16 %v4564
  %v4661 = vunpack.c.l.b16 %v4565
  %v4662 = vunpack.c.l.b16 %v4566
  %v4663 = vunpack.c.l.b16 %v4567
  %v4664 = vunpack.c.l.b16 %v4568
  %v4665 = vunpack.c.l.b16 %v4569
  %v4666 = vunpack.c.l.b16 %v4570
  %v4667 = vunpack.c.l.b16 %v4571
  %v4668 = vunpack.c.l.b16 %v4572
  %v4669 = vunpack.c.l.b16 %v4573
  %v4670 = vunpack.c.l.b16 %v4574
  %v4671 = vunpack.c.l.b16 %v4575
  %v4672 = vpack.c.b16 %v4625, %v4624
  %v4673 = vpack.c.b16 %v4627, %v4626
  %v4674 = vpack.c.b16 %v4629, %v4628
  %v4675 = vpack.c.b16 %v4631, %v4630
  %v4676 = vpack.c.b16 %v4633, %v4632
  %v4677 = vpack.c.b16 %v4635, %v4634
  %v4678 = vpack.c.b16 %v4637, %v4636
  %v4679 = vpack.c.b16 %v4639, %v4638
  %v4680 = vpack.c.b16 %v4641, %v4640
  %v4681 = vpack.c.b16 %v4643, %v4642
  %v4682 = vpack.c.b16 %v4645, %v4644
  %v4683 = vpack.c.b16 %v4647, %v4646
  %v4684 = vpack.c.b16 %v4649, %v4648
  %v4685 = vpack.c.b16 %v4651, %v4650
  %v4686 = vpack.c.b16 %v4653, %v4652
  %v4687 = vpack.c.b16 %v4655, %v4654
  %v4688 = vpack.c.b16 %v4657, %v4656
  %v4689 = vpack.c.b16 %v4659, %v4658
  %v4690 = vpack.c.b16 %v4661, %v4660
  %v4691 = vpack.c.b16 %v4663, %v4662
  %v4692 = vpack.c.b16 %v4665, %v4664
  %v4693 = vpack.c.b16 %v4667, %v4666
  %v4694 = vpack.c.b16 %v4669, %v4668
  %v4695 = vpack.c.b16 %v4671, %v4670
  %4720 = vmatprep.subr.bf16.mxu0 0
  %4721 = vmatpush1.bf16.msra.mxu0 %v4672
  %4722 = vmatprep.subr.bf16.mxu0 0
  %4723 = vmatpush1.bf16.msra.mxu0 %v4673
  %4724 = vmatprep.subr.bf16.mxu0 0
  %4725 = vmatpush1.bf16.msra.mxu0 %v4674
  %4726 = vmatprep.subr.bf16.mxu0 0
  %4727 = vmatpush1.bf16.msra.mxu0 %v4675
  %4728 = vmatprep.subr.bf16.mxu0 0
  %4729 = vmatpush1.bf16.msra.mxu0 %v4676
  %4730 = vmatprep.subr.bf16.mxu0 0
  %4731 = vmatpush1.bf16.msra.mxu0 %v4677
  %4732 = vmatprep.subr.bf16.mxu0 0
  %4733 = vmatpush1.bf16.msra.mxu0 %v4678
  %4734 = vmatprep.subr.bf16.mxu0 0
  %4735 = vmatpush1.bf16.msra.mxu0 %v4679
  %4736 = vmatprep.subr.bf16.mxu0 0
  %4737 = vmatpush1.bf16.msra.mxu0 %v4680
  %4738 = vmatprep.subr.bf16.mxu0 0
  %4739 = vmatpush1.bf16.msra.mxu0 %v4681
  %4740 = vmatprep.subr.bf16.mxu0 0
  %4741 = vmatpush1.bf16.msra.mxu0 %v4682
  %4742 = vmatprep.subr.bf16.mxu0 0
  %4743 = vmatpush1.bf16.msra.mxu0 %v4683
  %4744 = vmatprep.subr.bf16.mxu0 0
  %4745 = vmatpush1.bf16.msra.mxu0 %v4684
  %4746 = vmatprep.subr.bf16.mxu0 0
  %4747 = vmatpush1.bf16.msra.mxu0 %v4685
  %4748 = vmatprep.subr.bf16.mxu0 0
  %4749 = vmatpush1.bf16.msra.mxu0 %v4686
  %4750 = vmatprep.subr.bf16.mxu0 0
  %4751 = vmatpush1.bf16.msra.mxu0 %v4687
  %4752 = vmatprep.mubr.bf16.mxu0 %v4505
  %4753 = vmatmul.mubr.bf16.gmra.mrb[0].mxu0 %v4504
  %v4754 = vpop.f32.mrb[0].mxu0
  %v4755 = vadd.f32 0.0, %v4754
  %v4756 = vpop.f32.mrb[0].mxu0
  %v4757 = vpop.f32.mrb[0].mxu0
  %v4758 = vadd.f32 0.0, %v4757
  %v4759 = vpop.f32.mrb[0].mxu0
  %4760 = vmatprep.mubr.bf16.mxu0 %v4508
  %4761 = vmatmul.mubr.bf16.gmra.mrb[0].mxu0 %v4507
  %v4762 = vpop.f32.mrb[0].mxu0
  %v4763 = vadd.f32 0.0, %v4762
  %v4764 = vpop.f32.mrb[0].mxu0
  %v4765 = vpop.f32.mrb[0].mxu0
  %v4766 = vadd.f32 0.0, %v4765
  %v4767 = vpop.f32.mrb[0].mxu0
  %4768 = vmatprep.mubr.bf16.mxu0 %v4511
  %4769 = vmatmul.mubr.bf16.gmra.mrb[0].mxu0 %v4510
  %v4770 = vpop.f32.mrb[0].mxu0
  %v4771 = vadd.f32 0.0, %v4770
  %v4772 = vpop.f32.mrb[0].mxu0
  %v4773 = vpop.f32.mrb[0].mxu0
  %v4774 = vadd.f32 0.0, %v4773
  %v4775 = vpop.f32.mrb[0].mxu0
  %4776 = vmatprep.mubr.bf16.mxu0 %v4514
  %4777 = vmatmul.mubr.bf16.gmra.mrb[0].mxu0 %v4513
  %v4778 = vpop.f32.mrb[0].mxu0
  %v4779 = vadd.f32 0.0, %v4778
  %v4780 = vpop.f32.mrb[0].mxu0
  %v4781 = vpop.f32.mrb[0].mxu0
  %v4782 = vadd.f32 0.0, %v4781
  %v4783 = vpop.f32.mrb[0].mxu0
  %4784 = vmatprep.mubr.bf16.mxu0 %v4517
  %4785 = vmatmul.mubr.bf16.gmra.mrb[0].mxu0 %v4516
  %v4786 = vpop.f32.mrb[0].mxu0
  %v4787 = vadd.f32 0.0, %v4786
  %v4788 = vpop.f32.mrb[0].mxu0
  %v4789 = vpop.f32.mrb[0].mxu0
  %v4790 = vadd.f32 0.0, %v4789
  %v4791 = vpop.f32.mrb[0].mxu0
  %4792 = vmatprep.mubr.bf16.mxu0 %v4520
  %4793 = vmatmul.mubr.bf16.gmra.mrb[0].mxu0 %v4519
  %v4794 = vpop.f32.mrb[0].mxu0
  %v4795 = vadd.f32 0.0, %v4794
  %v4796 = vpop.f32.mrb[0].mxu0
  %v4797 = vpop.f32.mrb[0].mxu0
  %v4798 = vadd.f32 0.0, %v4797
  %v4799 = vpop.f32.mrb[0].mxu0
  %4800 = vmatprep.mubr.bf16.mxu0 %v4523
  %4801 = vmatmul.mubr.bf16.gmra.mrb[0].mxu0 %v4522
  %v4802 = vpop.f32.mrb[0].mxu0
  %v4803 = vadd.f32 0.0, %v4802
  %v4804 = vpop.f32.mrb[0].mxu0
  %v4805 = vpop.f32.mrb[0].mxu0
  %v4806 = vadd.f32 0.0, %v4805
  %v4807 = vpop.f32.mrb[0].mxu0
  %4808 = vmatprep.mubr.bf16.mxu0 %v4526
  %4809 = vmatmul.mubr.bf16.gmra.mrb[0].mxu0 %v4525
  %v4810 = vpop.f32.mrb[0].mxu0
  %v4811 = vadd.f32 0.0, %v4810
  %v4812 = vpop.f32.mrb[0].mxu0
  %v4813 = vpop.f32.mrb[0].mxu0
  %v4814 = vadd.f32 0.0, %v4813
  %v4815 = vpop.f32.mrb[0].mxu0
  %4816 = vdwg.mxu0
  %4817 = vmatprep.subr.bf16.mxu0 0
  %4818 = vmatpush1.bf16.msra.mxu0 %v4688
  %4819 = vmatprep.subr.bf16.mxu0 0
  %4820 = vmatpush1.bf16.msra.mxu0 %v4689
  %4821 = vmatprep.subr.bf16.mxu0 0
  %4822 = vmatpush1.bf16.msra.mxu0 %v4690
  %4823 = vmatprep.subr.bf16.mxu0 0
  %4824 = vmatpush1.bf16.msra.mxu0 %v4691
  %4825 = vmatprep.subr.bf16.mxu0 0
  %4826 = vmatpush1.bf16.msra.mxu0 %v4692
  %4827 = vmatprep.subr.bf16.mxu0 0
  %4828 = vmatpush1.bf16.msra.mxu0 %v4693
  %4829 = vmatprep.subr.bf16.mxu0 0
  %4830 = vmatpush1.bf16.msra.mxu0 %v4694
  %4831 = vmatprep.subr.bf16.mxu0 0
  %4832 = vmatpush1.bf16.msra.mxu0 %v4695
  %4833 = vmatprep.subr.bf16.mxu0 0
  %4834 = vmatpush1.bf16.msra.mxu0 0
  %4835 = vmatprep.subr.bf16.mxu0 0
  %4836 = vmatpush1.bf16.msra.mxu0 0
  %4837 = vmatprep.subr.bf16.mxu0 0
  %4838 = vmatpush1.bf16.msra.mxu0 0
  %4839 = vmatprep.subr.bf16.mxu0 0
  %4840 = vmatpush1.bf16.msra.mxu0 0
  %4841 = vmatprep.subr.bf16.mxu0 0
  %4842 = vmatpush1.bf16.msra.mxu0 0
  %4843 = vmatprep.subr.bf16.mxu0 0
  %4844 = vmatpush1.bf16.msra.mxu0 0
  %4845 = vmatprep.subr.bf16.mxu0 0
  %4846 = vmatpush1.bf16.msra.mxu0 0
  %4847 = vmatprep.subr.bf16.mxu0 0
  %4848 = vmatpush1.bf16.msra.mxu0 0
  %4849 = vmatprep.mubr.bf16.mxu0 0
  %4850 = vmatmul.mubr.bf16.gmra.mrb[0].mxu0 %v4506
  %v4851 = vpop.f32.mrb[0].mxu0
  %v4852 = vadd.f32 %v4755, %v4851
  %v4853 = vpop.f32.mrb[0].mxu0
  %v4854 = vpop.f32.mrb[0].mxu0
  %v4855 = vadd.f32 %v4758, %v4854
  %v4856 = vpop.f32.mrb[0].mxu0
  %4857 = vmatprep.mubr.bf16.mxu0 0
  %4858 = vmatmul.mubr.bf16.gmra.mrb[0].mxu0 %v4509
  %v4859 = vpop.f32.mrb[0].mxu0
  %v4860 = vadd.f32 %v4763, %v4859
  %v4861 = vpop.f32.mrb[0].mxu0
  %v4862 = vpop.f32.mrb[0].mxu0
  %v4863 = vadd.f32 %v4766, %v4862
  %v4864 = vpop.f32.mrb[0].mxu0
  %4865 = vmatprep.mubr.bf16.mxu0 0
  %4866 = vmatmul.mubr.bf16.gmra.mrb[0].mxu0 %v4512
  %v4867 = vpop.f32.mrb[0].mxu0
  %v4868 = vadd.f32 %v4771, %v4867
  %v4869 = vpop.f32.mrb[0].mxu0
  %v4870 = vpop.f32.mrb[0].mxu0
  %v4871 = vadd.f32 %v4774, %v4870
  %v4872 = vpop.f32.mrb[0].mxu0
  %4873 = vmatprep.mubr.bf16.mxu0 0
  %4874 = vmatmul.mubr.bf16.gmra.mrb[0].mxu0 %v4515
  %v4875 = vpop.f32.mrb[0].mxu0
  %v4876 = vadd.f32 %v4779, %v4875
  %v4877 = vpop.f32.mrb[0].mxu0
  %v4878 = vpop.f32.mrb[0].mxu0
  %v4879 = vadd.f32 %v4782, %v4878
  %v4880 = vpop.f32.mrb[0].mxu0
  %4881 = vmatprep.mubr.bf16.mxu0 0
  %4882 = vmatmul.mubr.bf16.gmra.mrb[0].mxu0 %v4518
  %v4883 = vpop.f32.mrb[0].mxu0
  %v4884 = vadd.f32 %v4787, %v4883
  %v4885 = vpop.f32.mrb[0].mxu0
  %v4886 = vpop.f32.mrb[0].mxu0
  %v4887 = vadd.f32 %v4790, %v4886
  %v4888 = vpop.f32.mrb[0].mxu0
  %4889 = vmatprep.mubr.bf16.mxu0 0
  %4890 = vmatmul.mubr.bf16.gmra.mrb[0].mxu0 %v4521
  %v4891 = vpop.f32.mrb[0].mxu0
  %v4892 = vadd.f32 %v4795, %v4891
  %v4893 = vpop.f32.mrb[0].mxu0
  %v4894 = vpop.f32.mrb[0].mxu0
  %v4895 = vadd.f32 %v4798, %v4894
  %v4896 = vpop.f32.mrb[0].mxu0
  %4897 = vmatprep.mubr.bf16.mxu0 0
  %4898 = vmatmul.mubr.bf16.gmra.mrb[0].mxu0 %v4524
  %v4899 = vpop.f32.mrb[0].mxu0
  %v4900 = vadd.f32 %v4803, %v4899
  %v4901 = vpop.f32.mrb[0].mxu0
  %v4902 = vpop.f32.mrb[0].mxu0
  %v4903 = vadd.f32 %v4806, %v4902
  %v4904 = vpop.f32.mrb[0].mxu0
  %4905 = vmatprep.mubr.bf16.mxu0 0
  %4906 = vmatmul.mubr.bf16.gmra.mrb[0].mxu0 %v4527
  %v4907 = vpop.f32.mrb[0].mxu0
  %v4908 = vadd.f32 %v4811, %v4907
  %v4909 = vpop.f32.mrb[0].mxu0
  %v4910 = vpop.f32.mrb[0].mxu0
  %v4911 = vadd.f32 %v4814, %v4910
  %v4912 = vpop.f32.mrb[0].mxu0
  %4913 = vdwg.mxu0
  %v4914 = vadd.f32 %v4852, %v4855
  %v4915 = vadd.f32 %v4914, %v4860
  %v4916 = vadd.f32 %v4915, %v4863
  %v4917 = vadd.f32 %v4916, %v4868
  %v4918 = vadd.f32 %v4917, %v4871
  %v4919 = vadd.f32 %v4918, %v4876
  %v4920 = vadd.f32 %v4919, %v4879
  %v4921 = vadd.f32 %v4920, %v4884
  %v4922 = vadd.f32 %v4921, %v4887
  %v4923 = vadd.f32 %v4922, %v4892
  %v4924 = vadd.f32 %v4923, %v4895
  %v4925 = vadd.f32 %v4924, %v4900
  %v4926 = vadd.f32 %v4925, %v4903
  %v4927 = vadd.f32 %v4926, %v4908
  %v4928 = vadd.f32 %v4927, %v4911
  %v4929 = vrot.slane %v4928, 4
  %v4930 = vadd.f32 %v4928, %v4929
  %v4931 = vrot.slane %v4930, 2
  %v4932 = vadd.f32 %v4930, %v4931
  %v4933 = vrot.slane %v4932, 1
  %v4934 = vadd.f32 %v4932, %v4933
  %v4935 = vmul.f32 %v4934, 0.00877193
  %v4936 = vsub.f32 %v4852, %v4935
  %v4937 = vsub.f32 %v4855, %v4935
  %v4938 = vsub.f32 %v4860, %v4935
  %v4939 = vsub.f32 %v4863, %v4935
  %v4940 = vsub.f32 %v4868, %v4935
  %v4941 = vsub.f32 %v4871, %v4935
  %v4942 = vsub.f32 %v4876, %v4935
  %v4943 = vsub.f32 %v4879, %v4935
  %v4944 = vsub.f32 %v4884, %v4935
  %v4945 = vsub.f32 %v4887, %v4935
  %v4946 = vsub.f32 %v4892, %v4935
  %v4947 = vsub.f32 %v4895, %v4935
  %v4948 = vsub.f32 %v4900, %v4935
  %v4949 = vsub.f32 %v4903, %v4935
  %v4950 = vsub.f32 %v4908, %v4935
  %v4951 = vsub.f32 %v4911, %v4935
  %v4952 = vmul.f32 %v4936, %v4936
  %v4953 = vmul.f32 %v4937, %v4937
  %v4954 = vmul.f32 %v4938, %v4938
  %v4955 = vmul.f32 %v4939, %v4939
  %v4956 = vmul.f32 %v4940, %v4940
  %v4957 = vmul.f32 %v4941, %v4941
  %v4958 = vmul.f32 %v4942, %v4942
  %v4959 = vmul.f32 %v4943, %v4943
  %v4960 = vmul.f32 %v4944, %v4944
  %v4961 = vmul.f32 %v4945, %v4945
  %v4962 = vmul.f32 %v4946, %v4946
  %v4963 = vmul.f32 %v4947, %v4947
  %v4964 = vmul.f32 %v4948, %v4948
  %v4965 = vmul.f32 %v4949, %v4949
  %v4966 = vmul.f32 %v4950, %v4950
  %v4967 = vmul.f32 %v4951, %v4951
  %v4968 = vadd.f32 %v4952, %v4953
  %v4969 = vadd.f32 %v4968, %v4954
  %v4970 = vadd.f32 %v4969, %v4955
  %v4971 = vadd.f32 %v4970, %v4956
  %v4972 = vadd.f32 %v4971, %v4957
  %v4973 = vadd.f32 %v4972, %v4958
  %v4974 = vadd.f32 %v4973, %v4959
  %v4975 = vadd.f32 %v4974, %v4960
  %v4976 = vadd.f32 %v4975, %v4961
  %v4977 = vadd.f32 %v4976, %v4962
  %v4978 = vadd.f32 %v4977, %v4963
  %v4979 = vadd.f32 %v4978, %v4964
  %v4980 = vadd.f32 %v4979, %v4965
  %v4981 = vadd.f32 %v4980, %v4966
  %v4982 = vadd.f32 %v4981, %v4967
  %v4983 = vrot.slane %v4982, 4
  %v4984 = vadd.f32 %v4982, %v4983
  %v4985 = vrot.slane %v4984, 2
  %v4986 = vadd.f32 %v4984, %v4985
  %v4987 = vrot.slane %v4986, 1
  %v4988 = vadd.f32 %v4986, %v4987
  %v4989 = vmul.f32 %v4935, %v4935
  %v4990 = vmul.f32 %v4989, 14.0
  %v4991 = vsub.f32 %v4988, %v4990
  %v4992 = vmul.f32 %v4991, 0.00877193
  %v4993 = vmax.f32 %v4992, 0.0
  %v4994 = vld [vmem:[%s11] sm:$0x1]
  %v4995 = vadd.f32 %v4993, 1e-05
  %v4996 = vrsqrt.pop %v4995
  %v4997 = vmul.f32 %v4994, %v4996
  %v4999 = vlaneseq
  %v5000 = vshrl.u32 %v4999, 7
  %v5001 = vsub.s32 0, %v5000
  %v5002 = vrot.slane %v4997, %v5001
  %v5004 = vmul.f32 %v4936, %v5002
  %v5005 = vmul.f32 %v4937, %v5002
  %v5006 = vmul.f32 %v4938, %v5002
  %v5007 = vmul.f32 %v4939, %v5002
  %v5008 = vmul.f32 %v4940, %v5002
  %v5009 = vmul.f32 %v4941, %v5002
  %v5010 = vmul.f32 %v4942, %v5002
  %v5011 = vmul.f32 %v4943, %v5002
  %v5012 = vmul.f32 %v4944, %v5002
  %v5013 = vmul.f32 %v4945, %v5002
  %v5014 = vmul.f32 %v4946, %v5002
  %v5015 = vmul.f32 %v4947, %v5002
  %v5016 = vmul.f32 %v4948, %v5002
  %v5017 = vmul.f32 %v4949, %v5002
  %v5018 = vmul.f32 %v4950, %v5002
  %v5019 = vmul.f32 %v4951, %v5002
  %v5020 = vld [vmem:[%s12] sm:$0x1]
  %v5022 = vlaneseq
  %v5023 = vshrl.u32 %v5022, 7
  %v5024 = vsub.s32 0, %v5023
  %v5025 = vrot.slane %v5020, %v5024
  %v5027 = vadd.f32 %v5004, %v5025
  %v5028 = vadd.f32 %v5005, %v5025
  %v5029 = vadd.f32 %v5006, %v5025
  %v5030 = vadd.f32 %v5007, %v5025
  %v5031 = vadd.f32 %v5008, %v5025
  %v5032 = vadd.f32 %v5009, %v5025
  %v5033 = vadd.f32 %v5010, %v5025
  %v5034 = vadd.f32 %v5011, %v5025
  %v5035 = vadd.f32 %v5012, %v5025
  %v5036 = vadd.f32 %v5013, %v5025
  %v5037 = vadd.f32 %v5014, %v5025
  %v5038 = vadd.f32 %v5015, %v5025
  %v5039 = vadd.f32 %v5016, %v5025
  %v5040 = vadd.f32 %v5017, %v5025
  %v5041 = vadd.f32 %v5018, %v5025
  %v5042 = vadd.f32 %v5019, %v5025
  %v5043 = vmax.f32 %v5027, 0.0
  %v5044 = vmax.f32 %v5028, 0.0
  %v5045 = vmax.f32 %v5029, 0.0
  %v5046 = vmax.f32 %v5030, 0.0
  %v5047 = vmax.f32 %v5031, 0.0
  %v5048 = vmax.f32 %v5032, 0.0
  %v5049 = vmax.f32 %v5033, 0.0
  %v5050 = vmax.f32 %v5034, 0.0
  %v5051 = vmax.f32 %v5035, 0.0
  %v5052 = vmax.f32 %v5036, 0.0
  %v5053 = vmax.f32 %v5037, 0.0
  %v5054 = vmax.f32 %v5038, 0.0
  %v5055 = vmax.f32 %v5039, 0.0
  %v5056 = vmax.f32 %v5040, 0.0
  %v5057 = vmax.f32 %v5041, 0.0
  %v5058 = vmax.f32 %v5042, 0.0
  %v5059 = vpack.c.bf16 %v5044, %v5043
  %v5060 = vpack.c.bf16 %v5046, %v5045
  %v5061 = vpack.c.bf16 %v5048, %v5047
  %v5062 = vpack.c.bf16 %v5050, %v5049
  %v5063 = vpack.c.bf16 %v5052, %v5051
  %v5064 = vpack.c.bf16 %v5054, %v5053
  %v5065 = vpack.c.bf16 %v5056, %v5055
  %v5066 = vpack.c.bf16 %v5058, %v5057
  %v5067 = vld [vmem:[%s13] sm:$0xf]
  %v5068 = vld [vmem:[%s13 + $0x4] sm:$0xf]
  %v5069 = vld [vmem:[%s13 + $0x8] sm:$0xf]
  %v5070 = vld [vmem:[%s13 + $0xc] sm:$0xf]
  %v5071 = vld [vmem:[%s13 + $0x10] sm:$0xf]
  %v5072 = vld [vmem:[%s13 + $0x14] sm:$0xf]
  %v5073 = vld [vmem:[%s13 + $0x18] sm:$0xf]
  %v5074 = vld [vmem:[%s13 + $0x1c] sm:$0xf]
  %v5075 = vld [vmem:[%s13 + $0x20] sm:$0xf]
  %v5076 = vld [vmem:[%s13 + $0x24] sm:$0xf]
  %v5077 = vld [vmem:[%s13 + $0x28] sm:$0xf]
  %v5078 = vld [vmem:[%s13 + $0x2c] sm:$0xf]
  %v5079 = vld [vmem:[%s13 + $0x30] sm:$0xf]
  %v5080 = vld [vmem:[%s13 + $0x34] sm:$0xf]
  %v5081 = vld [vmem:[%s13 + $0x38] sm:$0xf]
  %v5082 = vld [vmem:[%s13 + $0x3c] sm:$0xf]
  %v5099 = vunpack.c.l.b16 %v5067
  %v5100 = vunpack.c.l.b16 %v5068
  %v5101 = vunpack.c.l.b16 %v5069
  %v5102 = vunpack.c.l.b16 %v5070
  %v5103 = vunpack.c.l.b16 %v5071
  %v5104 = vunpack.c.l.b16 %v5072
  %v5105 = vunpack.c.l.b16 %v5073
  %v5106 = vunpack.c.l.b16 %v5074
  %v5107 = vunpack.c.l.b16 %v5075
  %v5108 = vunpack.c.l.b16 %v5076
  %v5109 = vunpack.c.l.b16 %v5077
  %v5110 = vunpack.c.l.b16 %v5078
  %v5111 = vunpack.c.l.b16 %v5079
  %v5112 = vunpack.c.l.b16 %v5080
  %v5113 = vunpack.c.l.b16 %v5081
  %v5114 = vunpack.c.l.b16 %v5082
  %v5115 = vpack.c.b16 %v5100, %v5099
  %v5116 = vpack.c.b16 %v5102, %v5101
  %v5117 = vpack.c.b16 %v5104, %v5103
  %v5118 = vpack.c.b16 %v5106, %v5105
  %v5119 = vpack.c.b16 %v5108, %v5107
  %v5120 = vpack.c.b16 %v5110, %v5109
  %v5121 = vpack.c.b16 %v5112, %v5111
  %v5122 = vpack.c.b16 %v5114, %v5113
  %5131 = vmatprep.subr.bf16.mxu0 0
  %5132 = vmatpush1.bf16.msra.mxu0 %v5059
  %5133 = vmatprep.subr.bf16.mxu0 0
  %5134 = vmatpush1.bf16.msra.mxu0 %v5060
  %5135 = vmatprep.subr.bf16.mxu0 0
  %5136 = vmatpush1.bf16.msra.mxu0 %v5061
  %5137 = vmatprep.subr.bf16.mxu0 0
  %5138 = vmatpush1.bf16.msra.mxu0 %v5062
  %5139 = vmatprep.subr.bf16.mxu0 0
  %5140 = vmatpush1.bf16.msra.mxu0 %v5063
  %5141 = vmatprep.subr.bf16.mxu0 0
  %5142 = vmatpush1.bf16.msra.mxu0 %v5064
  %5143 = vmatprep.subr.bf16.mxu0 0
  %5144 = vmatpush1.bf16.msra.mxu0 %v5065
  %5145 = vmatprep.subr.bf16.mxu0 0
  %5146 = vmatpush1.bf16.msra.mxu0 %v5066
  %5147 = vmatprep.subr.bf16.mxu0 0
  %5148 = vmatpush1.bf16.msra.mxu0 0
  %5149 = vmatprep.subr.bf16.mxu0 0
  %5150 = vmatpush1.bf16.msra.mxu0 0
  %5151 = vmatprep.subr.bf16.mxu0 0
  %5152 = vmatpush1.bf16.msra.mxu0 0
  %5153 = vmatprep.subr.bf16.mxu0 0
  %5154 = vmatpush1.bf16.msra.mxu0 0
  %5155 = vmatprep.subr.bf16.mxu0 0
  %5156 = vmatpush1.bf16.msra.mxu0 0
  %5157 = vmatprep.subr.bf16.mxu0 0
  %5158 = vmatpush1.bf16.msra.mxu0 0
  %5159 = vmatprep.subr.bf16.mxu0 0
  %5160 = vmatpush1.bf16.msra.mxu0 0
  %5161 = vmatprep.subr.bf16.mxu0 0
  %5162 = vmatpush1.bf16.msra.mxu0 0
  %5163 = vmatprep.mubr.bf16.mxu0 0
  %5164 = vmatmul.mubr.bf16.gmra.mrb[0].mxu0 %v5115
  %v5165 = vpop.f32.mrb[0].mxu0
  %v5166 = vadd.f32 0.0, %v5165
  %v5167 = vpop.f32.mrb[0].mxu0
  %v5168 = vpop.f32.mrb[0].mxu0
  %v5169 = vadd.f32 0.0, %v5168
  %v5170 = vpop.f32.mrb[0].mxu0
  %5171 = vmatprep.mubr.bf16.mxu0 0
  %5172 = vmatmul.mubr.bf16.gmra.mrb[0].mxu0 %v5116
  %v5173 = vpop.f32.mrb[0].mxu0
  %v5174 = vadd.f32 0.0, %v5173
  %v5175 = vpop.f32.mrb[0].mxu0
  %v5176 = vpop.f32.mrb[0].mxu0
  %v5177 = vadd.f32 0.0, %v5176
  %v5178 = vpop.f32.mrb[0].mxu0
  %5179 = vmatprep.mubr.bf16.mxu0 0
  %5180 = vmatmul.mubr.bf16.gmra.mrb[0].mxu0 %v5117
  %v5181 = vpop.f32.mrb[0].mxu0
  %v5182 = vadd.f32 0.0, %v5181
  %v5183 = vpop.f32.mrb[0].mxu0
  %v5184 = vpop.f32.mrb[0].mxu0
  %v5185 = vadd.f32 0.0, %v5184
  %v5186 = vpop.f32.mrb[0].mxu0
  %5187 = vmatprep.mubr.bf16.mxu0 0
  %5188 = vmatmul.mubr.bf16.gmra.mrb[0].mxu0 %v5118
  %v5189 = vpop.f32.mrb[0].mxu0
  %v5190 = vadd.f32 0.0, %v5189
  %v5191 = vpop.f32.mrb[0].mxu0
  %v5192 = vpop.f32.mrb[0].mxu0
  %v5193 = vadd.f32 0.0, %v5192
  %v5194 = vpop.f32.mrb[0].mxu0
  %5195 = vmatprep.mubr.bf16.mxu0 0
  %5196 = vmatmul.mubr.bf16.gmra.mrb[0].mxu0 %v5119
  %v5197 = vpop.f32.mrb[0].mxu0
  %v5198 = vadd.f32 0.0, %v5197
  %v5199 = vpop.f32.mrb[0].mxu0
  %v5200 = vpop.f32.mrb[0].mxu0
  %v5201 = vadd.f32 0.0, %v5200
  %v5202 = vpop.f32.mrb[0].mxu0
  %5203 = vmatprep.mubr.bf16.mxu0 0
  %5204 = vmatmul.mubr.bf16.gmra.mrb[0].mxu0 %v5120
  %v5205 = vpop.f32.mrb[0].mxu0
  %v5206 = vadd.f32 0.0, %v5205
  %v5207 = vpop.f32.mrb[0].mxu0
  %v5208 = vpop.f32.mrb[0].mxu0
  %v5209 = vadd.f32 0.0, %v5208
  %v5210 = vpop.f32.mrb[0].mxu0
  %5211 = vmatprep.mubr.bf16.mxu0 0
  %5212 = vmatmul.mubr.bf16.gmra.mrb[0].mxu0 %v5121
  %v5213 = vpop.f32.mrb[0].mxu0
  %v5214 = vadd.f32 0.0, %v5213
  %v5215 = vpop.f32.mrb[0].mxu0
  %v5216 = vpop.f32.mrb[0].mxu0
  %v5217 = vadd.f32 0.0, %v5216
  %v5218 = vpop.f32.mrb[0].mxu0
  %5219 = vmatprep.mubr.bf16.mxu0 0
  %5220 = vmatmul.mubr.bf16.gmra.mrb[0].mxu0 %v5122
  %v5221 = vpop.f32.mrb[0].mxu0
  %v5222 = vadd.f32 0.0, %v5221
  %v5223 = vpop.f32.mrb[0].mxu0
  %v5224 = vpop.f32.mrb[0].mxu0
  %v5225 = vadd.f32 0.0, %v5224
  %v5226 = vpop.f32.mrb[0].mxu0
  %5227 = vdwg.mxu0
  %v5228 = vpack.c.bf16 %v5169, %v5166
  %v5229 = vpack.c.bf16 %v5177, %v5174
  %v5230 = vpack.c.bf16 %v5185, %v5182
  %v5231 = vpack.c.bf16 %v5193, %v5190
  %v5232 = vpack.c.bf16 %v5201, %v5198
  %v5233 = vpack.c.bf16 %v5209, %v5206
  %v5234 = vpack.c.bf16 %v5217, %v5214
  %v5235 = vpack.c.bf16 %v5225, %v5222
  %5236 = vst [vmem:[#allocation2] sm:$0xff] %v5228
  %5237 = vst [vmem:[#allocation2 + $0x18] sm:$0xff] %v5229
  %5238 = vst [vmem:[#allocation2 + $0x30] sm:$0xff] %v5230
  %5239 = vst [vmem:[#allocation2 + $0x48] sm:$0xff] %v5231
  %5240 = vst [vmem:[#allocation2 + $0x60] sm:$0xff] %v5232
  %5241 = vst [vmem:[#allocation2 + $0x78] sm:$0xff] %v5233
  %5242 = vst [vmem:[#allocation2 + $0x90] sm:$0xff] %v5234
  %5243 = vst [vmem:[#allocation2 + $0xa8] sm:$0xff] %v5235
  %s5244 = scalar_lea.vmem %s13, 64
  %v5245 = vld [vmem:[%s5244] sm:$0xf]
  %v5246 = vld [vmem:[%s5244 + $0x4] sm:$0xf]
  %v5247 = vld [vmem:[%s5244 + $0x8] sm:$0xf]
  %v5248 = vld [vmem:[%s5244 + $0xc] sm:$0xf]
  %v5249 = vld [vmem:[%s5244 + $0x10] sm:$0xf]
  %v5250 = vld [vmem:[%s5244 + $0x14] sm:$0xf]
  %v5251 = vld [vmem:[%s5244 + $0x18] sm:$0xf]
  %v5252 = vld [vmem:[%s5244 + $0x1c] sm:$0xf]
  %v5253 = vld [vmem:[%s5244 + $0x20] sm:$0xf]
  %v5254 = vld [vmem:[%s5244 + $0x24] sm:$0xf]
  %v5255 = vld [vmem:[%s5244 + $0x28] sm:$0xf]
  %v5256 = vld [vmem:[%s5244 + $0x2c] sm:$0xf]
  %v5257 = vld [vmem:[%s5244 + $0x30] sm:$0xf]
  %v5258 = vld [vmem:[%s5244 + $0x34] sm:$0xf]
  %v5259 = vld [vmem:[%s5244 + $0x38] sm:$0xf]
  %v5260 = vld [vmem:[%s5244 + $0x3c] sm:$0xf]
  %v5277 = vunpack.c.l.b16 %v5245
  %v5278 = vunpack.c.l.b16 %v5246
  %v5279 = vunpack.c.l.b16 %v5247
  %v5280 = vunpack.c.l.b16 %v5248
  %v5281 = vunpack.c.l.b16 %v5249
  %v5282 = vunpack.c.l.b16 %v5250
  %v5283 = vunpack.c.l.b16 %v5251
  %v5284 = vunpack.c.l.b16 %v5252
  %v5285 = vunpack.c.l.b16 %v5253
  %v5286 = vunpack.c.l.b16 %v5254
  %v5287 = vunpack.c.l.b16 %v5255
  %v5288 = vunpack.c.l.b16 %v5256
  %v5289 = vunpack.c.l.b16 %v5257
  %v5290 = vunpack.c.l.b16 %v5258
  %v5291 = vunpack.c.l.b16 %v5259
  %v5292 = vunpack.c.l.b16 %v5260
  %v5293 = vpack.c.b16 %v5278, %v5277
  %v5294 = vpack.c.b16 %v5280, %v5279
  %v5295 = vpack.c.b16 %v5282, %v5281
  %v5296 = vpack.c.b16 %v5284, %v5283
  %v5297 = vpack.c.b16 %v5286, %v5285
  %v5298 = vpack.c.b16 %v5288, %v5287
  %v5299 = vpack.c.b16 %v5290, %v5289
  %v5300 = vpack.c.b16 %v5292, %v5291
  %5309 = vmatprep.subr.bf16.mxu0 0
  %5310 = vmatpush1.bf16.msra.mxu0 %v5059
  %5311 = vmatprep.subr.bf16.mxu0 0
  %5312 = vmatpush1.bf16.msra.mxu0 %v5060
  %5313 = vmatprep.subr.bf16.mxu0 0
  %5314 = vmatpush1.bf16.msra.mxu0 %v5061
  %5315 = vmatprep.subr.bf16.mxu0 0
  %5316 = vmatpush1.bf16.msra.mxu0 %v5062
  %5317 = vmatprep.subr.bf16.mxu0 0
  %5318 = vmatpush1.bf16.msra.mxu0 %v5063
  %5319 = vmatprep.subr.bf16.mxu0 0
  %5320 = vmatpush1.bf16.msra.mxu0 %v5064
  %5321 = vmatprep.subr.bf16.mxu0 0
  %5322 = vmatpush1.bf16.msra.mxu0 %v5065
  %5323 = vmatprep.subr.bf16.mxu0 0
  %5324 = vmatpush1.bf16.msra.mxu0 %v5066
  %5325 = vmatprep.subr.bf16.mxu0 0
  %5326 = vmatpush1.bf16.msra.mxu0 0
  %5327 = vmatprep.subr.bf16.mxu0 0
  %5328 = vmatpush1.bf16.msra.mxu0 0
  %5329 = vmatprep.subr.bf16.mxu0 0
  %5330 = vmatpush1.bf16.msra.mxu0 0
  %5331 = vmatprep.subr.bf16.mxu0 0
  %5332 = vmatpush1.bf16.msra.mxu0 0
  %5333 = vmatprep.subr.bf16.mxu0 0
  %5334 = vmatpush1.bf16.msra.mxu0 0
  %5335 = vmatprep.subr.bf16.mxu0 0
  %5336 = vmatpush1.bf16.msra.mxu0 0
  %5337 = vmatprep.subr.bf16.mxu0 0
  %5338 = vmatpush1.bf16.msra.mxu0 0
  %5339 = vmatprep.subr.bf16.mxu0 0
  %5340 = vmatpush1.bf16.msra.mxu0 0
  %5341 = vmatprep.mubr.bf16.mxu0 0
  %5342 = vmatmul.mubr.bf16.gmra.mrb[0].mxu0 %v5293
  %v5343 = vpop.f32.mrb[0].mxu0
  %v5344 = vadd.f32 0.0, %v5343
  %v5345 = vpop.f32.mrb[0].mxu0
  %v5346 = vpop.f32.mrb[0].mxu0
  %v5347 = vadd.f32 0.0, %v5346
  %v5348 = vpop.f32.mrb[0].mxu0
  %5349 = vmatprep.mubr.bf16.mxu0 0
  %5350 = vmatmul.mubr.bf16.gmra.mrb[0].mxu0 %v5294
  %v5351 = vpop.f32.mrb[0].mxu0
  %v5352 = vadd.f32 0.0, %v5351
  %v5353 = vpop.f32.mrb[0].mxu0
  %v5354 = vpop.f32.mrb[0].mxu0
  %v5355 = vadd.f32 0.0, %v5354
  %v5356 = vpop.f32.mrb[0].mxu0
  %5357 = vmatprep.mubr.bf16.mxu0 0
  %5358 = vmatmul.mubr.bf16.gmra.mrb[0].mxu0 %v5295
  %v5359 = vpop.f32.mrb[0].mxu0
  %v5360 = vadd.f32 0.0, %v5359
  %v5361 = vpop.f32.mrb[0].mxu0
  %v5362 = vpop.f32.mrb[0].mxu0
  %v5363 = vadd.f32 0.0, %v5362
  %v5364 = vpop.f32.mrb[0].mxu0
  %5365 = vmatprep.mubr.bf16.mxu0 0
  %5366 = vmatmul.mubr.bf16.gmra.mrb[0].mxu0 %v5296
  %v5367 = vpop.f32.mrb[0].mxu0
  %v5368 = vadd.f32 0.0, %v5367
  %v5369 = vpop.f32.mrb[0].mxu0
  %v5370 = vpop.f32.mrb[0].mxu0
  %v5371 = vadd.f32 0.0, %v5370
  %v5372 = vpop.f32.mrb[0].mxu0
  %5373 = vmatprep.mubr.bf16.mxu0 0
  %5374 = vmatmul.mubr.bf16.gmra.mrb[0].mxu0 %v5297
  %v5375 = vpop.f32.mrb[0].mxu0
  %v5376 = vadd.f32 0.0, %v5375
  %v5377 = vpop.f32.mrb[0].mxu0
  %v5378 = vpop.f32.mrb[0].mxu0
  %v5379 = vadd.f32 0.0, %v5378
  %v5380 = vpop.f32.mrb[0].mxu0
  %5381 = vmatprep.mubr.bf16.mxu0 0
  %5382 = vmatmul.mubr.bf16.gmra.mrb[0].mxu0 %v5298
  %v5383 = vpop.f32.mrb[0].mxu0
  %v5384 = vadd.f32 0.0, %v5383
  %v5385 = vpop.f32.mrb[0].mxu0
  %v5386 = vpop.f32.mrb[0].mxu0
  %v5387 = vadd.f32 0.0, %v5386
  %v5388 = vpop.f32.mrb[0].mxu0
  %5389 = vmatprep.mubr.bf16.mxu0 0
  %5390 = vmatmul.mubr.bf16.gmra.mrb[0].mxu0 %v5299
  %v5391 = vpop.f32.mrb[0].mxu0
  %v5392 = vadd.f32 0.0, %v5391
  %v5393 = vpop.f32.mrb[0].mxu0
  %v5394 = vpop.f32.mrb[0].mxu0
  %v5395 = vadd.f32 0.0, %v5394
  %v5396 = vpop.f32.mrb[0].mxu0
  %5397 = vmatprep.mubr.bf16.mxu0 0
  %5398 = vmatmul.mubr.bf16.gmra.mrb[0].mxu0 %v5300
  %v5399 = vpop.f32.mrb[0].mxu0
  %v5400 = vadd.f32 0.0, %v5399
  %v5401 = vpop.f32.mrb[0].mxu0
  %v5402 = vpop.f32.mrb[0].mxu0
  %v5403 = vadd.f32 0.0, %v5402
  %v5404 = vpop.f32.mrb[0].mxu0
  %5405 = vdwg.mxu0
  %v5406 = vpack.c.bf16 %v5347, %v5344
  %v5407 = vpack.c.bf16 %v5355, %v5352
  %v5408 = vpack.c.bf16 %v5363, %v5360
  %v5409 = vpack.c.bf16 %v5371, %v5368
  %v5410 = vpack.c.bf16 %v5379, %v5376
  %v5411 = vpack.c.bf16 %v5387, %v5384
  %v5412 = vpack.c.bf16 %v5395, %v5392
  %v5413 = vpack.c.bf16 %v5403, %v5400
  %5414 = vst [vmem:[#allocation2 + $0x8] sm:$0xff] %v5406
  %5415 = vst [vmem:[#allocation2 + $0x20] sm:$0xff] %v5407
  %5416 = vst [vmem:[#allocation2 + $0x38] sm:$0xff] %v5408
  %5417 = vst [vmem:[#allocation2 + $0x50] sm:$0xff] %v5409
  %5418 = vst [vmem:[#allocation2 + $0x68] sm:$0xff] %v5410
  %5419 = vst [vmem:[#allocation2 + $0x80] sm:$0xff] %v5411
  %5420 = vst [vmem:[#allocation2 + $0x98] sm:$0xff] %v5412
  %5421 = vst [vmem:[#allocation2 + $0xb0] sm:$0xff] %v5413
  %s5422 = scalar_lea.vmem %s13, 128
  %v5423 = vld [vmem:[%s5422] sm:$0xf]
  %v5424 = vld [vmem:[%s5422 + $0x4] sm:$0xf]
  %v5425 = vld [vmem:[%s5422 + $0x8] sm:$0xf]
  %v5426 = vld [vmem:[%s5422 + $0xc] sm:$0xf]
  %v5427 = vld [vmem:[%s5422 + $0x10] sm:$0xf]
  %v5428 = vld [vmem:[%s5422 + $0x14] sm:$0xf]
  %v5429 = vld [vmem:[%s5422 + $0x18] sm:$0xf]
  %v5430 = vld [vmem:[%s5422 + $0x1c] sm:$0xf]
  %v5431 = vld [vmem:[%s5422 + $0x20] sm:$0xf]
  %v5432 = vld [vmem:[%s5422 + $0x24] sm:$0xf]
  %v5433 = vld [vmem:[%s5422 + $0x28] sm:$0xf]
  %v5434 = vld [vmem:[%s5422 + $0x2c] sm:$0xf]
  %v5435 = vld [vmem:[%s5422 + $0x30] sm:$0xf]
  %v5436 = vld [vmem:[%s5422 + $0x34] sm:$0xf]
  %v5437 = vld [vmem:[%s5422 + $0x38] sm:$0xf]
  %v5438 = vld [vmem:[%s5422 + $0x3c] sm:$0xf]
  %v5455 = vunpack.c.l.b16 %v5423
  %v5456 = vunpack.c.l.b16 %v5424
  %v5457 = vunpack.c.l.b16 %v5425
  %v5458 = vunpack.c.l.b16 %v5426
  %v5459 = vunpack.c.l.b16 %v5427
  %v5460 = vunpack.c.l.b16 %v5428
  %v5461 = vunpack.c.l.b16 %v5429
  %v5462 = vunpack.c.l.b16 %v5430
  %v5463 = vunpack.c.l.b16 %v5431
  %v5464 = vunpack.c.l.b16 %v5432
  %v5465 = vunpack.c.l.b16 %v5433
  %v5466 = vunpack.c.l.b16 %v5434
  %v5467 = vunpack.c.l.b16 %v5435
  %v5468 = vunpack.c.l.b16 %v5436
  %v5469 = vunpack.c.l.b16 %v5437
  %v5470 = vunpack.c.l.b16 %v5438
  %v5471 = vpack.c.b16 %v5456, %v5455
  %v5472 = vpack.c.b16 %v5458, %v5457
  %v5473 = vpack.c.b16 %v5460, %v5459
  %v5474 = vpack.c.b16 %v5462, %v5461
  %v5475 = vpack.c.b16 %v5464, %v5463
  %v5476 = vpack.c.b16 %v5466, %v5465
  %v5477 = vpack.c.b16 %v5468, %v5467
  %v5478 = vpack.c.b16 %v5470, %v5469
  %5487 = vmatprep.subr.bf16.mxu0 0
  %5488 = vmatpush1.bf16.msra.mxu0 %v5059
  %5489 = vmatprep.subr.bf16.mxu0 0
  %5490 = vmatpush1.bf16.msra.mxu0 %v5060
  %5491 = vmatprep.subr.bf16.mxu0 0
  %5492 = vmatpush1.bf16.msra.mxu0 %v5061
  %5493 = vmatprep.subr.bf16.mxu0 0
  %5494 = vmatpush1.bf16.msra.mxu0 %v5062
  %5495 = vmatprep.subr.bf16.mxu0 0
  %5496 = vmatpush1.bf16.msra.mxu0 %v5063
  %5497 = vmatprep.subr.bf16.mxu0 0
  %5498 = vmatpush1.bf16.msra.mxu0 %v5064
  %5499 = vmatprep.subr.bf16.mxu0 0
  %5500 = vmatpush1.bf16.msra.mxu0 %v5065
  %5501 = vmatprep.subr.bf16.mxu0 0
  %5502 = vmatpush1.bf16.msra.mxu0 %v5066
  %5503 = vmatprep.subr.bf16.mxu0 0
  %5504 = vmatpush1.bf16.msra.mxu0 0
  %5505 = vmatprep.subr.bf16.mxu0 0
  %5506 = vmatpush1.bf16.msra.mxu0 0
  %5507 = vmatprep.subr.bf16.mxu0 0
  %5508 = vmatpush1.bf16.msra.mxu0 0
  %5509 = vmatprep.subr.bf16.mxu0 0
  %5510 = vmatpush1.bf16.msra.mxu0 0
  %5511 = vmatprep.subr.bf16.mxu0 0
  %5512 = vmatpush1.bf16.msra.mxu0 0
  %5513 = vmatprep.subr.bf16.mxu0 0
  %5514 = vmatpush1.bf16.msra.mxu0 0
  %5515 = vmatprep.subr.bf16.mxu0 0
  %5516 = vmatpush1.bf16.msra.mxu0 0
  %5517 = vmatprep.subr.bf16.mxu0 0
  %5518 = vmatpush1.bf16.msra.mxu0 0
  %5519 = vmatprep.mubr.bf16.mxu0 0
  %5520 = vmatmul.mubr.bf16.gmra.mrb[0].mxu0 %v5471
  %v5521 = vpop.f32.mrb[0].mxu0
  %v5522 = vadd.f32 0.0, %v5521
  %v5523 = vpop.f32.mrb[0].mxu0
  %v5524 = vpop.f32.mrb[0].mxu0
  %v5525 = vadd.f32 0.0, %v5524
  %v5526 = vpop.f32.mrb[0].mxu0
  %5527 = vmatprep.mubr.bf16.mxu0 0
  %5528 = vmatmul.mubr.bf16.gmra.mrb[0].mxu0 %v5472
  %v5529 = vpop.f32.mrb[0].mxu0
  %v5530 = vadd.f32 0.0, %v5529
  %v5531 = vpop.f32.mrb[0].mxu0
  %v5532 = vpop.f32.mrb[0].mxu0
  %v5533 = vadd.f32 0.0, %v5532
  %v5534 = vpop.f32.mrb[0].mxu0
  %5535 = vmatprep.mubr.bf16.mxu0 0
  %5536 = vmatmul.mubr.bf16.gmra.mrb[0].mxu0 %v5473
  %v5537 = vpop.f32.mrb[0].mxu0
  %v5538 = vadd.f32 0.0, %v5537
  %v5539 = vpop.f32.mrb[0].mxu0
  %v5540 = vpop.f32.mrb[0].mxu0
  %v5541 = vadd.f32 0.0, %v5540
  %v5542 = vpop.f32.mrb[0].mxu0
  %5543 = vmatprep.mubr.bf16.mxu0 0
  %5544 = vmatmul.mubr.bf16.gmra.mrb[0].mxu0 %v5474
  %v5545 = vpop.f32.mrb[0].mxu0
  %v5546 = vadd.f32 0.0, %v5545
  %v5547 = vpop.f32.mrb[0].mxu0
  %v5548 = vpop.f32.mrb[0].mxu0
  %v5549 = vadd.f32 0.0, %v5548
  %v5550 = vpop.f32.mrb[0].mxu0
  %5551 = vmatprep.mubr.bf16.mxu0 0
  %5552 = vmatmul.mubr.bf16.gmra.mrb[0].mxu0 %v5475
  %v5553 = vpop.f32.mrb[0].mxu0
  %v5554 = vadd.f32 0.0, %v5553
  %v5555 = vpop.f32.mrb[0].mxu0
  %v5556 = vpop.f32.mrb[0].mxu0
  %v5557 = vadd.f32 0.0, %v5556
  %v5558 = vpop.f32.mrb[0].mxu0
  %5559 = vmatprep.mubr.bf16.mxu0 0
  %5560 = vmatmul.mubr.bf16.gmra.mrb[0].mxu0 %v5476
  %v5561 = vpop.f32.mrb[0].mxu0
  %v5562 = vadd.f32 0.0, %v5561
  %v5563 = vpop.f32.mrb[0].mxu0
  %v5564 = vpop.f32.mrb[0].mxu0
  %v5565 = vadd.f32 0.0, %v5564
  %v5566 = vpop.f32.mrb[0].mxu0
  %5567 = vmatprep.mubr.bf16.mxu0 0
  %5568 = vmatmul.mubr.bf16.gmra.mrb[0].mxu0 %v5477
  %v5569 = vpop.f32.mrb[0].mxu0
  %v5570 = vadd.f32 0.0, %v5569
  %v5571 = vpop.f32.mrb[0].mxu0
  %v5572 = vpop.f32.mrb[0].mxu0
  %v5573 = vadd.f32 0.0, %v5572
  %v5574 = vpop.f32.mrb[0].mxu0
  %5575 = vmatprep.mubr.bf16.mxu0 0
  %5576 = vmatmul.mubr.bf16.gmra.mrb[0].mxu0 %v5478
  %v5577 = vpop.f32.mrb[0].mxu0
  %v5578 = vadd.f32 0.0, %v5577
  %v5579 = vpop.f32.mrb[0].mxu0
  %v5580 = vpop.f32.mrb[0].mxu0
  %v5581 = vadd.f32 0.0, %v5580
  %v5582 = vpop.f32.mrb[0].mxu0
  %5583 = vdwg.mxu0
  %v5584 = vpack.c.bf16 %v5525, %v5522
  %v5585 = vpack.c.bf16 %v5533, %v5530
  %v5586 = vpack.c.bf16 %v5541, %v5538
  %v5587 = vpack.c.bf16 %v5549, %v5546
  %v5588 = vpack.c.bf16 %v5557, %v5554
  %v5589 = vpack.c.bf16 %v5565, %v5562
  %v5590 = vpack.c.bf16 %v5573, %v5570
  %v5591 = vpack.c.bf16 %v5581, %v5578
  %5592 = vst [vmem:[#allocation2 + $0x10] sm:$0xff] %v5584
  %5593 = vst [vmem:[#allocation2 + $0x28] sm:$0xff] %v5585
  %5594 = vst [vmem:[#allocation2 + $0x40] sm:$0xff] %v5586
  %5595 = vst [vmem:[#allocation2 + $0x58] sm:$0xff] %v5587
  %5596 = vst [vmem:[#allocation2 + $0x70] sm:$0xff] %v5588
  %5597 = vst [vmem:[#allocation2 + $0x88] sm:$0xff] %v5589
  %5598 = vst [vmem:[#allocation2 + $0xa0] sm:$0xff] %v5590
  %5599 = vst [vmem:[#allocation2 + $0xb8] sm:$0xff] %v5591
  %v5600 = vld [vmem:[#allocation2] sm:$0xff]
  %v5601 = vld [vmem:[#allocation2 + $0x8] sm:$0xff]
  %v5602 = vld [vmem:[#allocation2 + $0x10] sm:$0xff]
  %v5603 = vld [vmem:[#allocation2 + $0x18] sm:$0xff]
  %v5604 = vld [vmem:[#allocation2 + $0x20] sm:$0xff]
  %v5605 = vld [vmem:[#allocation2 + $0x28] sm:$0xff]
  %v5606 = vld [vmem:[#allocation2 + $0x30] sm:$0xff]
  %v5607 = vld [vmem:[#allocation2 + $0x38] sm:$0xff]
  %v5608 = vld [vmem:[#allocation2 + $0x40] sm:$0xff]
  %v5609 = vld [vmem:[#allocation2 + $0x48] sm:$0xff]
  %v5610 = vld [vmem:[#allocation2 + $0x50] sm:$0xff]
  %v5611 = vld [vmem:[#allocation2 + $0x58] sm:$0xff]
  %v5612 = vld [vmem:[#allocation2 + $0x60] sm:$0xff]
  %v5613 = vld [vmem:[#allocation2 + $0x68] sm:$0xff]
  %v5614 = vld [vmem:[#allocation2 + $0x70] sm:$0xff]
  %v5615 = vld [vmem:[#allocation2 + $0x78] sm:$0xff]
  %v5616 = vld [vmem:[#allocation2 + $0x80] sm:$0xff]
  %v5617 = vld [vmem:[#allocation2 + $0x88] sm:$0xff]
  %v5618 = vld [vmem:[#allocation2 + $0x90] sm:$0xff]
  %v5619 = vld [vmem:[#allocation2 + $0x98] sm:$0xff]
  %v5620 = vld [vmem:[#allocation2 + $0xa0] sm:$0xff]
  %v5621 = vld [vmem:[#allocation2 + $0xa8] sm:$0xff]
  %v5622 = vld [vmem:[#allocation2 + $0xb0] sm:$0xff]
  %v5623 = vld [vmem:[#allocation2 + $0xb8] sm:$0xff]
  %v5624 = vld [vmem:[%s14] sm:$0xf]
  %v5625 = vld [vmem:[%s14 + $0x4] sm:$0xf]
  %v5626 = vld [vmem:[%s14 + $0x8] sm:$0xf]
  %v5627 = vld [vmem:[%s14 + $0xc] sm:$0xf]
  %v5628 = vld [vmem:[%s14 + $0x10] sm:$0xf]
  %v5629 = vld [vmem:[%s14 + $0x14] sm:$0xf]
  %v5630 = vld [vmem:[%s14 + $0x18] sm:$0xf]
  %v5631 = vld [vmem:[%s14 + $0x1c] sm:$0xf]
  %v5632 = vld [vmem:[%s14 + $0x20] sm:$0xf]
  %v5633 = vld [vmem:[%s14 + $0x24] sm:$0xf]
  %v5634 = vld [vmem:[%s14 + $0x28] sm:$0xf]
  %v5635 = vld [vmem:[%s14 + $0x2c] sm:$0xf]
  %v5636 = vld [vmem:[%s14 + $0x30] sm:$0xf]
  %v5637 = vld [vmem:[%s14 + $0x34] sm:$0xf]
  %v5638 = vld [vmem:[%s14 + $0x38] sm:$0xf]
  %v5639 = vld [vmem:[%s14 + $0x3c] sm:$0xf]
  %v5640 = vld [vmem:[%s14 + $0x40] sm:$0xf]
  %v5641 = vld [vmem:[%s14 + $0x44] sm:$0xf]
  %v5642 = vld [vmem:[%s14 + $0x48] sm:$0xf]
  %v5643 = vld [vmem:[%s14 + $0x4c] sm:$0xf]
  %v5644 = vld [vmem:[%s14 + $0x50] sm:$0xf]
  %v5645 = vld [vmem:[%s14 + $0x54] sm:$0xf]
  %v5646 = vld [vmem:[%s14 + $0x58] sm:$0xf]
  %v5647 = vld [vmem:[%s14 + $0x5c] sm:$0xf]
  %v5648 = vld [vmem:[%s14 + $0x60] sm:$0xf]
  %v5649 = vld [vmem:[%s14 + $0x64] sm:$0xf]
  %v5650 = vld [vmem:[%s14 + $0x68] sm:$0xf]
  %v5651 = vld [vmem:[%s14 + $0x6c] sm:$0xf]
  %v5652 = vld [vmem:[%s14 + $0x70] sm:$0xf]
  %v5653 = vld [vmem:[%s14 + $0x74] sm:$0xf]
  %v5654 = vld [vmem:[%s14 + $0x78] sm:$0xf]
  %v5655 = vld [vmem:[%s14 + $0x7c] sm:$0xf]
  %v5656 = vld [vmem:[%s14 + $0x80] sm:$0xf]
  %v5657 = vld [vmem:[%s14 + $0x84] sm:$0xf]
  %v5658 = vld [vmem:[%s14 + $0x88] sm:$0xf]
  %v5659 = vld [vmem:[%s14 + $0x8c] sm:$0xf]
  %v5660 = vld [vmem:[%s14 + $0x90] sm:$0xf]
  %v5661 = vld [vmem:[%s14 + $0x94] sm:$0xf]
  %v5662 = vld [vmem:[%s14 + $0x98] sm:$0xf]
  %v5663 = vld [vmem:[%s14 + $0x9c] sm:$0xf]
  %v5664 = vld [vmem:[%s14 + $0xa0] sm:$0xf]
  %v5665 = vld [vmem:[%s14 + $0xa4] sm:$0xf]
  %v5666 = vld [vmem:[%s14 + $0xa8] sm:$0xf]
  %v5667 = vld [vmem:[%s14 + $0xac] sm:$0xf]
  %v5668 = vld [vmem:[%s14 + $0xb0] sm:$0xf]
  %v5669 = vld [vmem:[%s14 + $0xb4] sm:$0xf]
  %v5670 = vld [vmem:[%s14 + $0xb8] sm:$0xf]
  %v5671 = vld [vmem:[%s14 + $0xbc] sm:$0xf]
  %v5720 = vunpack.c.l.b16 %v5624
  %v5721 = vunpack.c.l.b16 %v5625
  %v5722 = vunpack.c.l.b16 %v5626
  %v5723 = vunpack.c.l.b16 %v5627
  %v5724 = vunpack.c.l.b16 %v5628
  %v5725 = vunpack.c.l.b16 %v5629
  %v5726 = vunpack.c.l.b16 %v5630
  %v5727 = vunpack.c.l.b16 %v5631
  %v5728 = vunpack.c.l.b16 %v5632
  %v5729 = vunpack.c.l.b16 %v5633
  %v5730 = vunpack.c.l.b16 %v5634
  %v5731 = vunpack.c.l.b16 %v5635
  %v5732 = vunpack.c.l.b16 %v5636
  %v5733 = vunpack.c.l.b16 %v5637
  %v5734 = vunpack.c.l.b16 %v5638
  %v5735 = vunpack.c.l.b16 %v5639
  %v5736 = vunpack.c.l.b16 %v5640
  %v5737 = vunpack.c.l.b16 %v5641
  %v5738 = vunpack.c.l.b16 %v5642
  %v5739 = vunpack.c.l.b16 %v5643
  %v5740 = vunpack.c.l.b16 %v5644
  %v5741 = vunpack.c.l.b16 %v5645
  %v5742 = vunpack.c.l.b16 %v5646
  %v5743 = vunpack.c.l.b16 %v5647
  %v5744 = vunpack.c.l.b16 %v5648
  %v5745 = vunpack.c.l.b16 %v5649
  %v5746 = vunpack.c.l.b16 %v5650
  %v5747 = vunpack.c.l.b16 %v5651
  %v5748 = vunpack.c.l.b16 %v5652
  %v5749 = vunpack.c.l.b16 %v5653
  %v5750 = vunpack.c.l.b16 %v5654
  %v5751 = vunpack.c.l.b16 %v5655
  %v5752 = vunpack.c.l.b16 %v5656
  %v5753 = vunpack.c.l.b16 %v5657
  %v5754 = vunpack.c.l.b16 %v5658
  %v5755 = vunpack.c.l.b16 %v5659
  %v5756 = vunpack.c.l.b16 %v5660
  %v5757 = vunpack.c.l.b16 %v5661
  %v5758 = vunpack.c.l.b16 %v5662
  %v5759 = vunpack.c.l.b16 %v5663
  %v5760 = vunpack.c.l.b16 %v5664
  %v5761 = vunpack.c.l.b16 %v5665
  %v5762 = vunpack.c.l.b16 %v5666
  %v5763 = vunpack.c.l.b16 %v5667
  %v5764 = vunpack.c.l.b16 %v5668
  %v5765 = vunpack.c.l.b16 %v5669
  %v5766 = vunpack.c.l.b16 %v5670
  %v5767 = vunpack.c.l.b16 %v5671
  %v5768 = vpack.c.b16 %v5721, %v5720
  %v5769 = vpack.c.b16 %v5723, %v5722
  %v5770 = vpack.c.b16 %v5725, %v5724
  %v5771 = vpack.c.b16 %v5727, %v5726
  %v5772 = vpack.c.b16 %v5729, %v5728
  %v5773 = vpack.c.b16 %v5731, %v5730
  %v5774 = vpack.c.b16 %v5733, %v5732
  %v5775 = vpack.c.b16 %v5735, %v5734
  %v5776 = vpack.c.b16 %v5737, %v5736
  %v5777 = vpack.c.b16 %v5739, %v5738
  %v5778 = vpack.c.b16 %v5741, %v5740
  %v5779 = vpack.c.b16 %v5743, %v5742
  %v5780 = vpack.c.b16 %v5745, %v5744
  %v5781 = vpack.c.b16 %v5747, %v5746
  %v5782 = vpack.c.b16 %v5749, %v5748
  %v5783 = vpack.c.b16 %v5751, %v5750
  %v5784 = vpack.c.b16 %v5753, %v5752
  %v5785 = vpack.c.b16 %v5755, %v5754
  %v5786 = vpack.c.b16 %v5757, %v5756
  %v5787 = vpack.c.b16 %v5759, %v5758
  %v5788 = vpack.c.b16 %v5761, %v5760
  %v5789 = vpack.c.b16 %v5763, %v5762
  %v5790 = vpack.c.b16 %v5765, %v5764
  %v5791 = vpack.c.b16 %v5767, %v5766
  %5816 = vmatprep.subr.bf16.mxu0 0
  %5817 = vmatpush1.bf16.msra.mxu0 %v5768
  %5818 = vmatprep.subr.bf16.mxu0 0
  %5819 = vmatpush1.bf16.msra.mxu0 %v5769
  %5820 = vmatprep.subr.bf16.mxu0 0
  %5821 = vmatpush1.bf16.msra.mxu0 %v5770
  %5822 = vmatprep.subr.bf16.mxu0 0
  %5823 = vmatpush1.bf16.msra.mxu0 %v5771
  %5824 = vmatprep.subr.bf16.mxu0 0
  %5825 = vmatpush1.bf16.msra.mxu0 %v5772
  %5826 = vmatprep.subr.bf16.mxu0 0
  %5827 = vmatpush1.bf16.msra.mxu0 %v5773
  %5828 = vmatprep.subr.bf16.mxu0 0
  %5829 = vmatpush1.bf16.msra.mxu0 %v5774
  %5830 = vmatprep.subr.bf16.mxu0 0
  %5831 = vmatpush1.bf16.msra.mxu0 %v5775
  %5832 = vmatprep.subr.bf16.mxu0 0
  %5833 = vmatpush1.bf16.msra.mxu0 %v5776
  %5834 = vmatprep.subr.bf16.mxu0 0
  %5835 = vmatpush1.bf16.msra.mxu0 %v5777
  %5836 = vmatprep.subr.bf16.mxu0 0
  %5837 = vmatpush1.bf16.msra.mxu0 %v5778
  %5838 = vmatprep.subr.bf16.mxu0 0
  %5839 = vmatpush1.bf16.msra.mxu0 %v5779
  %5840 = vmatprep.subr.bf16.mxu0 0
  %5841 = vmatpush1.bf16.msra.mxu0 %v5780
  %5842 = vmatprep.subr.bf16.mxu0 0
  %5843 = vmatpush1.bf16.msra.mxu0 %v5781
  %5844 = vmatprep.subr.bf16.mxu0 0
  %5845 = vmatpush1.bf16.msra.mxu0 %v5782
  %5846 = vmatprep.subr.bf16.mxu0 0
  %5847 = vmatpush1.bf16.msra.mxu0 %v5783
  %5848 = vmatprep.mubr.bf16.mxu0 %v5601
  %5849 = vmatmul.mubr.bf16.gmra.mrb[0].mxu0 %v5600
  %v5850 = vpop.f32.mrb[0].mxu0
  %v5851 = vadd.f32 0.0, %v5850
  %v5852 = vpop.f32.mrb[0].mxu0
  %v5853 = vpop.f32.mrb[0].mxu0
  %v5854 = vadd.f32 0.0, %v5853
  %v5855 = vpop.f32.mrb[0].mxu0
  %5856 = vmatprep.mubr.bf16.mxu0 %v5604
  %5857 = vmatmul.mubr.bf16.gmra.mrb[0].mxu0 %v5603
  %v5858 = vpop.f32.mrb[0].mxu0
  %v5859 = vadd.f32 0.0, %v5858
  %v5860 = vpop.f32.mrb[0].mxu0
  %v5861 = vpop.f32.mrb[0].mxu0
  %v5862 = vadd.f32 0.0, %v5861
  %v5863 = vpop.f32.mrb[0].mxu0
  %5864 = vmatprep.mubr.bf16.mxu0 %v5607
  %5865 = vmatmul.mubr.bf16.gmra.mrb[0].mxu0 %v5606
  %v5866 = vpop.f32.mrb[0].mxu0
  %v5867 = vadd.f32 0.0, %v5866
  %v5868 = vpop.f32.mrb[0].mxu0
  %v5869 = vpop.f32.mrb[0].mxu0
  %v5870 = vadd.f32 0.0, %v5869
  %v5871 = vpop.f32.mrb[0].mxu0
  %5872 = vmatprep.mubr.bf16.mxu0 %v5610
  %5873 = vmatmul.mubr.bf16.gmra.mrb[0].mxu0 %v5609
  %v5874 = vpop.f32.mrb[0].mxu0
  %v5875 = vadd.f32 0.0, %v5874
  %v5876 = vpop.f32.mrb[0].mxu0
  %v5877 = vpop.f32.mrb[0].mxu0
  %v5878 = vadd.f32 0.0, %v5877
  %v5879 = vpop.f32.mrb[0].mxu0
  %5880 = vmatprep.mubr.bf16.mxu0 %v5613
  %5881 = vmatmul.mubr.bf16.gmra.mrb[0].mxu0 %v5612
  %v5882 = vpop.f32.mrb[0].mxu0
  %v5883 = vadd.f32 0.0, %v5882
  %v5884 = vpop.f32.mrb[0].mxu0
  %v5885 = vpop.f32.mrb[0].mxu0
  %v5886 = vadd.f32 0.0, %v5885
  %v5887 = vpop.f32.mrb[0].mxu0
  %5888 = vmatprep.mubr.bf16.mxu0 %v5616
  %5889 = vmatmul.mubr.bf16.gmra.mrb[0].mxu0 %v5615
  %v5890 = vpop.f32.mrb[0].mxu0
  %v5891 = vadd.f32 0.0, %v5890
  %v5892 = vpop.f32.mrb[0].mxu0
  %v5893 = vpop.f32.mrb[0].mxu0
  %v5894 = vadd.f32 0.0, %v5893
  %v5895 = vpop.f32.mrb[0].mxu0
  %5896 = vmatprep.mubr.bf16.mxu0 %v5619
  %5897 = vmatmul.mubr.bf16.gmra.mrb[0].mxu0 %v5618
  %v5898 = vpop.f32.mrb[0].mxu0
  %v5899 = vadd.f32 0.0, %v5898
  %v5900 = vpop.f32.mrb[0].mxu0
  %v5901 = vpop.f32.mrb[0].mxu0
  %v5902 = vadd.f32 0.0, %v5901
  %v5903 = vpop.f32.mrb[0].mxu0
  %5904 = vmatprep.mubr.bf16.mxu0 %v5622
  %5905 = vmatmul.mubr.bf16.gmra.mrb[0].mxu0 %v5621
  %v5906 = vpop.f32.mrb[0].mxu0
  %v5907 = vadd.f32 0.0, %v5906
  %v5908 = vpop.f32.mrb[0].mxu0
  %v5909 = vpop.f32.mrb[0].mxu0
  %v5910 = vadd.f32 0.0, %v5909
  %v5911 = vpop.f32.mrb[0].mxu0
  %5912 = vdwg.mxu0
  %5913 = vmatprep.subr.bf16.mxu0 0
  %5914 = vmatpush1.bf16.msra.mxu0 %v5784
  %5915 = vmatprep.subr.bf16.mxu0 0
  %5916 = vmatpush1.bf16.msra.mxu0 %v5785
  %5917 = vmatprep.subr.bf16.mxu0 0
  %5918 = vmatpush1.bf16.msra.mxu0 %v5786
  %5919 = vmatprep.subr.bf16.mxu0 0
  %5920 = vmatpush1.bf16.msra.mxu0 %v5787
  %5921 = vmatprep.subr.bf16.mxu0 0
  %5922 = vmatpush1.bf16.msra.mxu0 %v5788
  %5923 = vmatprep.subr.bf16.mxu0 0
  %5924 = vmatpush1.bf16.msra.mxu0 %v5789
  %5925 = vmatprep.subr.bf16.mxu0 0
  %5926 = vmatpush1.bf16.msra.mxu0 %v5790
  %5927 = vmatprep.subr.bf16.mxu0 0
  %5928 = vmatpush1.bf16.msra.mxu0 %v5791
  %5929 = vmatprep.subr.bf16.mxu0 0
  %5930 = vmatpush1.bf16.msra.mxu0 0
  %5931 = vmatprep.subr.bf16.mxu0 0
  %5932 = vmatpush1.bf16.msra.mxu0 0
  %5933 = vmatprep.subr.bf16.mxu0 0
  %5934 = vmatpush1.bf16.msra.mxu0 0
  %5935 = vmatprep.subr.bf16.mxu0 0
  %5936 = vmatpush1.bf16.msra.mxu0 0
  %5937 = vmatprep.subr.bf16.mxu0 0
  %5938 = vmatpush1.bf16.msra.mxu0 0
  %5939 = vmatprep.subr.bf16.mxu0 0
  %5940 = vmatpush1.bf16.msra.mxu0 0
  %5941 = vmatprep.subr.bf16.mxu0 0
  %5942 = vmatpush1.bf16.msra.mxu0 0
  %5943 = vmatprep.subr.bf16.mxu0 0
  %5944 = vmatpush1.bf16.msra.mxu0 0
  %5945 = vmatprep.mubr.bf16.mxu0 0
  %5946 = vmatmul.mubr.bf16.gmra.mrb[0].mxu0 %v5602
  %v5947 = vpop.f32.mrb[0].mxu0
  %v5948 = vadd.f32 %v5851, %v5947
  %v5949 = vpop.f32.mrb[0].mxu0
  %v5950 = vpop.f32.mrb[0].mxu0
  %v5951 = vadd.f32 %v5854, %v5950
  %v5952 = vpop.f32.mrb[0].mxu0
  %5953 = vmatprep.mubr.bf16.mxu0 0
  %5954 = vmatmul.mubr.bf16.gmra.mrb[0].mxu0 %v5605
  %v5955 = vpop.f32.mrb[0].mxu0
  %v5956 = vadd.f32 %v5859, %v5955
  %v5957 = vpop.f32.mrb[0].mxu0
  %v5958 = vpop.f32.mrb[0].mxu0
  %v5959 = vadd.f32 %v5862, %v5958
  %v5960 = vpop.f32.mrb[0].mxu0
  %5961 = vmatprep.mubr.bf16.mxu0 0
  %5962 = vmatmul.mubr.bf16.gmra.mrb[0].mxu0 %v5608
  %v5963 = vpop.f32.mrb[0].mxu0
  %v5964 = vadd.f32 %v5867, %v5963
  %v5965 = vpop.f32.mrb[0].mxu0
  %v5966 = vpop.f32.mrb[0].mxu0
  %v5967 = vadd.f32 %v5870, %v5966
  %v5968 = vpop.f32.mrb[0].mxu0
  %5969 = vmatprep.mubr.bf16.mxu0 0
  %5970 = vmatmul.mubr.bf16.gmra.mrb[0].mxu0 %v5611
  %v5971 = vpop.f32.mrb[0].mxu0
  %v5972 = vadd.f32 %v5875, %v5971
  %v5973 = vpop.f32.mrb[0].mxu0
  %v5974 = vpop.f32.mrb[0].mxu0
  %v5975 = vadd.f32 %v5878, %v5974
  %v5976 = vpop.f32.mrb[0].mxu0
  %5977 = vmatprep.mubr.bf16.mxu0 0
  %5978 = vmatmul.mubr.bf16.gmra.mrb[0].mxu0 %v5614
  %v5979 = vpop.f32.mrb[0].mxu0
  %v5980 = vadd.f32 %v5883, %v5979
  %v5981 = vpop.f32.mrb[0].mxu0
  %v5982 = vpop.f32.mrb[0].mxu0
  %v5983 = vadd.f32 %v5886, %v5982
  %v5984 = vpop.f32.mrb[0].mxu0
  %5985 = vmatprep.mubr.bf16.mxu0 0
  %5986 = vmatmul.mubr.bf16.gmra.mrb[0].mxu0 %v5617
  %v5987 = vpop.f32.mrb[0].mxu0
  %v5988 = vadd.f32 %v5891, %v5987
  %v5989 = vpop.f32.mrb[0].mxu0
  %v5990 = vpop.f32.mrb[0].mxu0
  %v5991 = vadd.f32 %v5894, %v5990
  %v5992 = vpop.f32.mrb[0].mxu0
  %5993 = vmatprep.mubr.bf16.mxu0 0
  %5994 = vmatmul.mubr.bf16.gmra.mrb[0].mxu0 %v5620
  %v5995 = vpop.f32.mrb[0].mxu0
  %v5996 = vadd.f32 %v5899, %v5995
  %v5997 = vpop.f32.mrb[0].mxu0
  %v5998 = vpop.f32.mrb[0].mxu0
  %v5999 = vadd.f32 %v5902, %v5998
  %v6000 = vpop.f32.mrb[0].mxu0
  %6001 = vmatprep.mubr.bf16.mxu0 0
  %6002 = vmatmul.mubr.bf16.gmra.mrb[0].mxu0 %v5623
  %v6003 = vpop.f32.mrb[0].mxu0
  %v6004 = vadd.f32 %v5907, %v6003
  %v6005 = vpop.f32.mrb[0].mxu0
  %v6006 = vpop.f32.mrb[0].mxu0
  %v6007 = vadd.f32 %v5910, %v6006
  %v6008 = vpop.f32.mrb[0].mxu0
  %6009 = vdwg.mxu0
  %v6010 = vadd.f32 %v5948, %v5951
  %v6011 = vadd.f32 %v6010, %v5956
  %v6012 = vadd.f32 %v6011, %v5959
  %v6013 = vadd.f32 %v6012, %v5964
  %v6014 = vadd.f32 %v6013, %v5967
  %v6015 = vadd.f32 %v6014, %v5972
  %v6016 = vadd.f32 %v6015, %v5975
  %v6017 = vadd.f32 %v6016, %v5980
  %v6018 = vadd.f32 %v6017, %v5983
  %v6019 = vadd.f32 %v6018, %v5988
  %v6020 = vadd.f32 %v6019, %v5991
  %v6021 = vadd.f32 %v6020, %v5996
  %v6022 = vadd.f32 %v6021, %v5999
  %v6023 = vadd.f32 %v6022, %v6004
  %v6024 = vadd.f32 %v6023, %v6007
  %v6025 = vrot.slane %v6024, 4
  %v6026 = vadd.f32 %v6024, %v6025
  %v6027 = vrot.slane %v6026, 2
  %v6028 = vadd.f32 %v6026, %v6027
  %v6029 = vrot.slane %v6028, 1
  %v6030 = vadd.f32 %v6028, %v6029
  %v6031 = vmul.f32 %v6030, 0.008474576
  %v6032 = vsub.f32 %v5948, %v6031
  %v6033 = vsub.f32 %v5951, %v6031
  %v6034 = vsub.f32 %v5956, %v6031
  %v6035 = vsub.f32 %v5959, %v6031
  %v6036 = vsub.f32 %v5964, %v6031
  %v6037 = vsub.f32 %v5967, %v6031
  %v6038 = vsub.f32 %v5972, %v6031
  %v6039 = vsub.f32 %v5975, %v6031
  %v6040 = vsub.f32 %v5980, %v6031
  %v6041 = vsub.f32 %v5983, %v6031
  %v6042 = vsub.f32 %v5988, %v6031
  %v6043 = vsub.f32 %v5991, %v6031
  %v6044 = vsub.f32 %v5996, %v6031
  %v6045 = vsub.f32 %v5999, %v6031
  %v6046 = vsub.f32 %v6004, %v6031
  %v6047 = vsub.f32 %v6007, %v6031
  %v6048 = vmul.f32 %v6032, %v6032
  %v6049 = vmul.f32 %v6033, %v6033
  %v6050 = vmul.f32 %v6034, %v6034
  %v6051 = vmul.f32 %v6035, %v6035
  %v6052 = vmul.f32 %v6036, %v6036
  %v6053 = vmul.f32 %v6037, %v6037
  %v6054 = vmul.f32 %v6038, %v6038
  %v6055 = vmul.f32 %v6039, %v6039
  %v6056 = vmul.f32 %v6040, %v6040
  %v6057 = vmul.f32 %v6041, %v6041
  %v6058 = vmul.f32 %v6042, %v6042
  %v6059 = vmul.f32 %v6043, %v6043
  %v6060 = vmul.f32 %v6044, %v6044
  %v6061 = vmul.f32 %v6045, %v6045
  %v6062 = vmul.f32 %v6046, %v6046
  %v6063 = vmul.f32 %v6047, %v6047
  %v6064 = vadd.f32 %v6048, %v6049
  %v6065 = vadd.f32 %v6064, %v6050
  %v6066 = vadd.f32 %v6065, %v6051
  %v6067 = vadd.f32 %v6066, %v6052
  %v6068 = vadd.f32 %v6067, %v6053
  %v6069 = vadd.f32 %v6068, %v6054
  %v6070 = vadd.f32 %v6069, %v6055
  %v6071 = vadd.f32 %v6070, %v6056
  %v6072 = vadd.f32 %v6071, %v6057
  %v6073 = vadd.f32 %v6072, %v6058
  %v6074 = vadd.f32 %v6073, %v6059
  %v6075 = vadd.f32 %v6074, %v6060
  %v6076 = vadd.f32 %v6075, %v6061
  %v6077 = vadd.f32 %v6076, %v6062
  %v6078 = vadd.f32 %v6077, %v6063
  %v6079 = vrot.slane %v6078, 4
  %v6080 = vadd.f32 %v6078, %v6079
  %v6081 = vrot.slane %v6080, 2
  %v6082 = vadd.f32 %v6080, %v6081
  %v6083 = vrot.slane %v6082, 1
  %v6084 = vadd.f32 %v6082, %v6083
  %v6085 = vmul.f32 %v6031, %v6031
  %v6086 = vmul.f32 %v6085, 10.0
  %v6087 = vsub.f32 %v6084, %v6086
  %v6088 = vmul.f32 %v6087, 0.008474576
  %v6089 = vmax.f32 %v6088, 0.0
  %v6090 = vld [vmem:[%s15] sm:$0x1]
  %v6091 = vadd.f32 %v6089, 1e-05
  %v6092 = vrsqrt.pop %v6091
  %v6093 = vmul.f32 %v6090, %v6092
  %v6095 = vlaneseq
  %v6096 = vshrl.u32 %v6095, 7
  %v6097 = vsub.s32 0, %v6096
  %v6098 = vrot.slane %v6093, %v6097
  %v6100 = vmul.f32 %v6032, %v6098
  %v6101 = vmul.f32 %v6033, %v6098
  %v6102 = vmul.f32 %v6034, %v6098
  %v6103 = vmul.f32 %v6035, %v6098
  %v6104 = vmul.f32 %v6036, %v6098
  %v6105 = vmul.f32 %v6037, %v6098
  %v6106 = vmul.f32 %v6038, %v6098
  %v6107 = vmul.f32 %v6039, %v6098
  %v6108 = vmul.f32 %v6040, %v6098
  %v6109 = vmul.f32 %v6041, %v6098
  %v6110 = vmul.f32 %v6042, %v6098
  %v6111 = vmul.f32 %v6043, %v6098
  %v6112 = vmul.f32 %v6044, %v6098
  %v6113 = vmul.f32 %v6045, %v6098
  %v6114 = vmul.f32 %v6046, %v6098
  %v6115 = vmul.f32 %v6047, %v6098
  %v6116 = vld [vmem:[%s16] sm:$0x1]
  %v6118 = vlaneseq
  %v6119 = vshrl.u32 %v6118, 7
  %v6120 = vsub.s32 0, %v6119
  %v6121 = vrot.slane %v6116, %v6120
  %v6123 = vadd.f32 %v6100, %v6121
  %v6124 = vadd.f32 %v6101, %v6121
  %v6125 = vadd.f32 %v6102, %v6121
  %v6126 = vadd.f32 %v6103, %v6121
  %v6127 = vadd.f32 %v6104, %v6121
  %v6128 = vadd.f32 %v6105, %v6121
  %v6129 = vadd.f32 %v6106, %v6121
  %v6130 = vadd.f32 %v6107, %v6121
  %v6131 = vadd.f32 %v6108, %v6121
  %v6132 = vadd.f32 %v6109, %v6121
  %v6133 = vadd.f32 %v6110, %v6121
  %v6134 = vadd.f32 %v6111, %v6121
  %v6135 = vadd.f32 %v6112, %v6121
  %v6136 = vadd.f32 %v6113, %v6121
  %v6137 = vadd.f32 %v6114, %v6121
  %v6138 = vadd.f32 %v6115, %v6121
  %v6139 = vmax.f32 %v6123, 0.0
  %v6140 = vmax.f32 %v6124, 0.0
  %v6141 = vmax.f32 %v6125, 0.0
  %v6142 = vmax.f32 %v6126, 0.0
  %v6143 = vmax.f32 %v6127, 0.0
  %v6144 = vmax.f32 %v6128, 0.0
  %v6145 = vmax.f32 %v6129, 0.0
  %v6146 = vmax.f32 %v6130, 0.0
  %v6147 = vmax.f32 %v6131, 0.0
  %v6148 = vmax.f32 %v6132, 0.0
  %v6149 = vmax.f32 %v6133, 0.0
  %v6150 = vmax.f32 %v6134, 0.0
  %v6151 = vmax.f32 %v6135, 0.0
  %v6152 = vmax.f32 %v6136, 0.0
  %v6153 = vmax.f32 %v6137, 0.0
  %v6154 = vmax.f32 %v6138, 0.0
  %6155 = vst [vmem:[%s17] sm:$0xff] %v6139
  %6156 = vst [vmem:[%s17 + $0x8] sm:$0xff] %v6140
  %6157 = vst [vmem:[%s17 + $0x10] sm:$0xff] %v6141
  %6158 = vst [vmem:[%s17 + $0x18] sm:$0xff] %v6142
  %6159 = vst [vmem:[%s17 + $0x20] sm:$0xff] %v6143
  %6160 = vst [vmem:[%s17 + $0x28] sm:$0xff] %v6144
  %6161 = vst [vmem:[%s17 + $0x30] sm:$0xff] %v6145
  %6162 = vst [vmem:[%s17 + $0x38] sm:$0xff] %v6146
  %6163 = vst [vmem:[%s17 + $0x40] sm:$0xff] %v6147
  %6164 = vst [vmem:[%s17 + $0x48] sm:$0xff] %v6148
  %6165 = vst [vmem:[%s17 + $0x50] sm:$0xff] %v6149
  %6166 = vst [vmem:[%s17 + $0x58] sm:$0xff] %v6150
  %6167 = vst [vmem:[%s17 + $0x60] sm:$0xff] %v6151
  %6168 = vst [vmem:[%s17 + $0x68] sm:$0xff] %v6152
  %6169 = vst [vmem:[%s17 + $0x70] sm:$0xff] %v6153
  %6170 = vst [vmem:[%s17 + $0x78] sm:$0xff] %v6154
  // Predicated region
  $region70: #{infogen_forward.1} parent=0 // pred_check
    _
  $region71: #{infogen_forward.1} parent=0 // pred_check_branch
    %6172 = sbr.rel (0) target = $region73
  $region72: #{infogen_forward.1} parent=0 // pred_region
    _
  $region73: #{infogen_forward.1} parent=0 // pred_fallthru
    _
  // Predicated region
  $region74: #{infogen_forward.1} parent=0 // pred_check
    _
  $region75: #{infogen_forward.1} parent=0 // pred_check_branch
    %6174 = sbr.rel (0) target = $region77
  $region76: #{infogen_forward.1} parent=0 // pred_region
    _
  $region77: #{infogen_forward.1} parent=0 // pred_fallthru
    _

</llo_original>
